<compile_context>
chip_gen: v7x
topology: tpu7x:2x2x1
jax: 0.10.0
libtpu: 0.0.40
codegen_flags: <defaults>
</compile_context>

<pallas_src>
import functools

import jax
import jax.numpy as jnp
from jax.experimental import pallas as pl
from jax.experimental.pallas import tpu as pltpu

NDF = 25
BN_EPS = 1e-5
LRELU_SLOPE = 0.2

C1P = 32   # conv1 output channels (25) zero-padded
C2P = 64   # conv2 output channels (50) zero-padded

_VMEM_LIMIT = 32 * 1024 * 1024


def _mosaic_params():
    return pltpu.CompilerParams(
        dimension_semantics=("parallel",),
        vmem_limit_bytes=_VMEM_LIMIT,
    )


# -----------------------------------------------------------------------------
# Pallas kernels
# -----------------------------------------------------------------------------
def _conv1_kernel(p_ref, w_ref, o_ref):
    # (TM1, 16) @ (16, 32) -> LeakyReLU(0.2)
    y = jnp.dot(p_ref[...], w_ref[...], preferred_element_type=jnp.float32)
    o_ref[...] = jnp.where(y > 0, y, LRELU_SLOPE * y).astype(o_ref.dtype)


def _conv2_stats_kernel(p_ref, w_ref, y_ref, sum_ref, ssq_ref):
    # (TM2, 800) @ (800, 64) -> pre-BN activations + per-tile partial BN stats.
    y = jnp.dot(p_ref[...], w_ref[...], preferred_element_type=jnp.float32)
    y_ref[...] = y
    sum_ref[...] = jnp.sum(y, axis=0, keepdims=True)[None]        # (1, 1, 64)
    ssq_ref[...] = jnp.sum(y * y, axis=0, keepdims=True)[None]    # (1, 1, 64)


def _bn_lrelu_conv3_sigmoid_kernel(y_ref, mean_ref, inv_ref, w3_ref, o_ref):
    # BN-apply (batch stats) + LeakyReLU + conv3 (full 5x5x50 window) + sigmoid.
    a = y_ref[...].astype(jnp.float32)                      # (TB, 25, 64)
    xn = (a - mean_ref[...][None]) * inv_ref[...][None]     # broadcast (1,1,64)
    h = jnp.where(xn > 0, xn, LRELU_SLOPE * xn)
    prod = h * w3_ref[...][None]                            # (TB, 25, 64)
    s = jnp.sum(prod, axis=2)                               # (TB, 25)
    s = jnp.sum(s, axis=1, keepdims=True)                   # (TB, 1)
    o_ref[...] = jax.nn.sigmoid(s).astype(o_ref.dtype)


# -----------------------------------------------------------------------------
# Glue: im2col (contiguous slicing, fused by XLA) and weight repacking
# -----------------------------------------------------------------------------
def _im2col(x_nhwc, kh, kw, stride):
    """(B,H,W,C) -> (B*OH*OW, kh*kw*C) with feature ordering (i, j, c)."""
    b, h, w, c = x_nhwc.shape
    oh = (h - kh) // stride + 1
    ow = (w - kw) // stride + 1
    cols = []
    for i in range(kh):
        for j in range(kw):
            cols.append(
                x_nhwc[:, i:i + stride * oh:stride, j:j + stride * ow:stride, :]
            )
    p = jnp.stack(cols, axis=3)  # (B, OH, OW, kh*kw, C)
    return p.reshape(b * oh * ow, kh * kw * c), oh, ow


def _pack_conv_weight(w_oihw, cin_pad, cout_pad):
    """(Cout, Cin, kh, kw) -> (kh*kw*cin_pad, cout_pad), zero-padded channels."""
    cout, cin, kh, kw = w_oihw.shape
    w = jnp.transpose(w_oihw, (2, 3, 1, 0))                  # (kh, kw, cin, cout)
    w = jnp.pad(w, ((0, 0), (0, 0), (0, cin_pad - cin), (0, cout_pad - cout)))
    return w.reshape(kh * kw * cin_pad, cout_pad)


def _pack_conv3_weight(w_oihw, cin_pad):
    """(1, Cin, 5, 5) -> (25, cin_pad); tap p = i*5 + j matches (oy, ox) rows."""
    _, cin, kh, kw = w_oihw.shape
    w = jnp.transpose(w_oihw[0], (1, 2, 0))                  # (kh, kw, cin)
    w = jnp.pad(w, ((0, 0), (0, 0), (0, cin_pad - cin)))
    return w.reshape(kh * kw, cin_pad)


# -----------------------------------------------------------------------------
# Forward pass
# -----------------------------------------------------------------------------
@functools.partial(jax.jit, static_argnames=("tile_b", "compute_dtype"))
def discriminator1_forward(x_nchw, w1, w2, w3, *, tile_b=8,
                           compute_dtype=jnp.float32):
    """x_nchw: (B,1,28,28) float32; returns (B,1) float32 sigmoid scores.

    `compute_dtype=jnp.bfloat16` halves HBM/VMEM traffic of the matmul
    operands on v6e/v7x (f32 MXU accumulation and f32 BN/activation epilogues
    are kept either way)."""
    b = x_nchw.shape[0]
    bp = tile_b * (-(-b // tile_b))            # pad batch to a tile multiple
    nb = bp // tile_b

    x = jnp.transpose(x_nchw, (0, 2, 3, 1)).astype(jnp.float32)   # NCHW -> NHWC
    if bp != b:
        # Zero-padded samples produce exactly-zero conv2 pre-BN rows, so they
        # do not perturb the (real-count-normalized) batch statistics.
        x = jnp.pad(x, ((0, bp - b), (0, 0), (0, 0), (0, 0)))

    # ---- Conv1 (1->25, k=4, s=2) + LeakyReLU --------------------------------
    p1, oh1, ow1 = _im2col(x, 4, 4, 2)                      # (Bp*169, 16)
    w1p = _pack_conv_weight(w1, 1, C1P)                     # (16, 32)
    m1 = bp * oh1 * ow1
    tm1 = tile_b * oh1 * ow1
    y1 = pl.pallas_call(
        _conv1_kernel,
        out_shape=jax.ShapeDtypeStruct((m1, C1P), compute_dtype),
        grid=(nb,),
        in_specs=[
            pl.BlockSpec((tm1, 16), lambda i: (i, 0)),
            pl.BlockSpec((16, C1P), lambda i: (0, 0)),
        ],
        out_specs=pl.BlockSpec((tm1, C1P), lambda i: (i, 0)),
        compiler_params=_mosaic_params(),
        cost_estimate=pl.CostEstimate(
            flops=2 * m1 * 16 * C1P, transcendentals=0,
            bytes_accessed=4 * (m1 * 16 + 16 * C1P + m1 * C1P)),
    )(p1.astype(compute_dtype), w1p.astype(compute_dtype))
    y1 = y1.reshape(bp, oh1, ow1, C1P)                      # (Bp, 13, 13, 32)

    # ---- Conv2 (25->50, k=5, s=2) matmul + per-tile BN partial stats --------
    p2, oh2, ow2 = _im2col(y1, 5, 5, 2)                     # (Bp*25, 800)
    w2p = _pack_conv_weight(w2, C1P, C2P)                   # (800, 64)
    k2 = 25 * C1P
    m2 = bp * oh2 * ow2
    tm2 = tile_b * oh2 * ow2
    y2, psum, pssq = pl.pallas_call(
        _conv2_stats_kernel,
        out_shape=(
            jax.ShapeDtypeStruct((m2, C2P), jnp.float32),
            jax.ShapeDtypeStruct((nb, 1, C2P), jnp.float32),
            jax.ShapeDtypeStruct((nb, 1, C2P), jnp.float32),
        ),
        grid=(nb,),
        in_specs=[
            pl.BlockSpec((tm2, k2), lambda i: (i, 0)),
            pl.BlockSpec((k2, C2P), lambda i: (0, 0)),
        ],
        out_specs=(
            pl.BlockSpec((tm2, C2P), lambda i: (i, 0)),
            pl.BlockSpec((1, 1, C2P), lambda i: (i, 0, 0)),
            pl.BlockSpec((1, 1, C2P), lambda i: (i, 0, 0)),
        ),
        compiler_params=_mosaic_params(),
        cost_estimate=pl.CostEstimate(
            flops=2 * m2 * k2 * C2P, transcendentals=0,
            bytes_accessed=4 * (m2 * k2 + k2 * C2P + m2 * C2P)),
    )(p2.astype(compute_dtype), w2p.astype(compute_dtype))

    # ---- Finalize BatchNorm batch statistics (training mode, biased var) ----
    n_real = float(b * oh2 * ow2)               # padded samples contribute 0
    tot = jnp.sum(psum, axis=0)                 # (1, 64)
    tsq = jnp.sum(pssq, axis=0)                 # (1, 64)
    mean = tot / n_real
    var = jnp.maximum(tsq / n_real - mean * mean, 0.0)
    invstd = jax.lax.rsqrt(var + BN_EPS)

    # ---- BN apply + LeakyReLU + Conv3 (50->1, k=5) + Sigmoid (fused) --------
    y2r = y2.reshape(bp, oh2 * ow2, C2P)        # (Bp, 25, 64)
    w3p = _pack_conv3_weight(w3, C2P)           # (25, 64)
    out = pl.pallas_call(
        _bn_lrelu_conv3_sigmoid_kernel,
        out_shape=jax.ShapeDtypeStruct((bp, 1), jnp.float32),
        grid=(nb,),
        in_specs=[
            pl.BlockSpec((tile_b, oh2 * ow2, C2P), lambda i: (i, 0, 0)),
            pl.BlockSpec((1, C2P), lambda i: (0, 0)),
            pl.BlockSpec((1, C2P), lambda i: (0, 0)),
            pl.BlockSpec((oh2 * ow2, C2P), lambda i: (0, 0)),
        ],
        out_specs=pl.BlockSpec((tile_b, 1), lambda i: (i, 0)),
        compiler_params=_mosaic_params(),
        cost_estimate=pl.CostEstimate(
            flops=6 * bp * oh2 * ow2 * C2P, transcendentals=bp,
            bytes_accessed=4 * (bp * oh2 * ow2 * C2P + oh2 * ow2 * C2P
                                + 2 * C2P + bp)),
    )(y2r, mean, invstd, w3p)

    return out[:b]                              # (B, 1), matches flatten()


def init_params(key):
    k1, k2, k3 = jax.random.split(key, 3)
    # Deterministic synthetic weights (DCGAN-style N(0, 0.02)).
    w1 = 0.02 * jax.random.normal(k1, (NDF, 1, 4, 4), jnp.float32)
    w2 = 0.02 * jax.random.normal(k2, (NDF * 2, NDF, 5, 5), jnp.float32)
    w3 = 0.02 * jax.random.normal(k3, (1, NDF * 2, 5, 5), jnp.float32)
    return w1, w2, w3


if __name__ == "__main__":
    key = jax.random.PRNGKey(0)
    kx, kp = jax.random.split(key)
    batch = 2
    x = jax.random.normal(kx, (batch, 1, 28, 28), jnp.float32)  # MNIST-shaped
    w1, w2, w3 = init_params(kp)

    out = discriminator1_forward(x, w1, w2, w3)
    out = jax.block_until_ready(out)
    assert out.shape == (batch, 1), out.shape
    assert bool(jnp.all(jnp.isfinite(out)))
    assert bool(jnp.all((out >= 0.0) & (out <= 1.0)))
    print("KERNEL_OK")
</pallas_src>

<mosaic_0001>
module attributes {stable_mosaic.version = 11 : i64} {
  func.func @_conv1_kernel(%arg0: i32, %arg1: memref<1352x16xf32, #tpu.memory_space<vmem>>, %arg2: memref<16x32xf32, #tpu.memory_space<vmem>>, %arg3: memref<1352x32xf32, #tpu.memory_space<vmem>>) attributes {dimension_semantics = [#tpu.dimension_semantics<parallel>], iteration_bounds = array<i64: 1>, scalar_prefetch = 0 : i64, scratch_operands = 0 : i64, tpu.core_type = #tpu.core_type<tc>, window_params = [{transform_indices = @transform_0, window_bounds = array<i64: 1352, 16>}, {pipeline_mode = #tpu.pipeline_mode<synchronous>, transform_indices = @transform_1, window_bounds = array<i64: 16, 32>}, {transform_indices = @transform_2, window_bounds = array<i64: 1352, 32>}]} {
    %c0 = arith.constant 0 : index
    %c0_0 = arith.constant 0 : index
    %0 = vector.load %arg1[%c0, %c0_0] : memref<1352x16xf32, #tpu.memory_space<vmem>>, vector<1352x16xf32>
    %c0_1 = arith.constant 0 : index
    %c0_2 = arith.constant 0 : index
    %1 = vector.load %arg2[%c0_1, %c0_2] : memref<16x32xf32, #tpu.memory_space<vmem>>, vector<16x32xf32>
    %cst = arith.constant dense<0.000000e+00> : vector<1352x32xf32>
    %2 = tpu.matmul %0, %1, %cst {dimension_numbers = #tpu.dot_dimension_numbers<[1], [0], [0], [1], [0, 0, 1, 1], [], []>} : vector<1352x16xf32>, vector<16x32xf32>, vector<1352x32xf32> -> vector<1352x32xf32>
    %cst_3 = arith.constant 0.000000e+00 : f32
    %3 = vector.broadcast %cst_3 : f32 to vector<1352x32xf32>
    %4 = arith.cmpf ogt, %2, %3 : vector<1352x32xf32>
    %cst_4 = arith.constant 2.000000e-01 : f32
    %5 = vector.broadcast %cst_4 : f32 to vector<1352x32xf32>
    %6 = arith.mulf %5, %2 : vector<1352x32xf32>
    %7 = arith.select %4, %2, %6 : vector<1352x32xi1>, vector<1352x32xf32>
    %c0_5 = arith.constant 0 : index
    %c0_6 = arith.constant 0 : index
    %8 = vector.load %arg3[%c0_5, %c0_6] : memref<1352x32xf32, #tpu.memory_space<vmem>>, vector<1352x32xf32>
    tpu.vector_store %arg3[%c0_5, %c0_6], %7 {strides = array<i32>} : memref<1352x32xf32, #tpu.memory_space<vmem>>, vector<1352x32xf32>,
    return
  }
  func.func @transform_0(%arg0: i32) -> (i32, i32) {
    %c0_i32 = arith.constant 0 : i32
    %c0_i32_0 = arith.constant 0 : i32
    return %arg0, %c0_i32 : i32, i32
  }
  func.func @transform_1(%arg0: i32) -> (i32, i32) {
    %c0_i32 = arith.constant 0 : i32
    %c0_i32_0 = arith.constant 0 : i32
    %c0_i32_1 = arith.constant 0 : i32
    return %c0_i32, %c0_i32_0 : i32, i32
  }
  func.func @transform_2(%arg0: i32) -> (i32, i32) {
    %c0_i32 = arith.constant 0 : i32
    %c0_i32_0 = arith.constant 0 : i32
    return %arg0, %c0_i32 : i32, i32
  }
}

module attributes {stable_mosaic.version = 11 : i64} {
  func.func @_conv2_stats_kernel(%arg0: i32, %arg1: memref<200x800xf32, #tpu.memory_space<vmem>>, %arg2: memref<800x64xf32, #tpu.memory_space<vmem>>, %arg3: memref<200x64xf32, #tpu.memory_space<vmem>>, %arg4: memref<1x1x64xf32, #tpu.memory_space<vmem>>, %arg5: memref<1x1x64xf32, #tpu.memory_space<vmem>>) attributes {dimension_semantics = [#tpu.dimension_semantics<parallel>], iteration_bounds = array<i64: 1>, scalar_prefetch = 0 : i64, scratch_operands = 0 : i64, tpu.core_type = #tpu.core_type<tc>, window_params = [{transform_indices = @transform_0, window_bounds = array<i64: 200, 800>}, {pipeline_mode = #tpu.pipeline_mode<synchronous>, transform_indices = @transform_1, window_bounds = array<i64: 800, 64>}, {transform_indices = @transform_2, window_bounds = array<i64: 200, 64>}, {transform_indices = @transform_3, window_bounds = array<i64: 1, 1, 64>}, {transform_indices = @transform_4, window_bounds = array<i64: 1, 1, 64>}]} {
    %c0 = arith.constant 0 : index
    %c0_0 = arith.constant 0 : index
    %0 = vector.load %arg1[%c0, %c0_0] : memref<200x800xf32, #tpu.memory_space<vmem>>, vector<200x800xf32>
    %c0_1 = arith.constant 0 : index
    %c0_2 = arith.constant 0 : index
    %1 = vector.load %arg2[%c0_1, %c0_2] : memref<800x64xf32, #tpu.memory_space<vmem>>, vector<800x64xf32>
    %cst = arith.constant dense<0.000000e+00> : vector<200x64xf32>
    %2 = tpu.matmul %0, %1, %cst {dimension_numbers = #tpu.dot_dimension_numbers<[1], [0], [0], [1], [0, 0, 1, 1], [], []>} : vector<200x800xf32>, vector<800x64xf32>, vector<200x64xf32> -> vector<200x64xf32>
    %c0_3 = arith.constant 0 : index
    %c0_4 = arith.constant 0 : index
    %3 = vector.load %arg3[%c0_3, %c0_4] : memref<200x64xf32, #tpu.memory_space<vmem>>, vector<200x64xf32>
    tpu.vector_store %arg3[%c0_3, %c0_4], %2 {strides = array<i32>} : memref<200x64xf32, #tpu.memory_space<vmem>>, vector<200x64xf32>,
    %cst_5 = arith.constant dense<0.000000e+00> : vector<64xf32>
    %4 = vector.multi_reduction <add>, %2, %cst_5 [0] : vector<200x64xf32> to vector<64xf32>
    %5 = vector.shape_cast %4 : vector<64xf32> to vector<1x64xf32>
    %6 = vector.shape_cast %5 : vector<1x64xf32> to vector<1x1x64xf32>
    %c0_6 = arith.constant 0 : index
    %c0_7 = arith.constant 0 : index
    %c0_8 = arith.constant 0 : index
    %7 = vector.load %arg4[%c0_6, %c0_7, %c0_8] : memref<1x1x64xf32, #tpu.memory_space<vmem>>, vector<1x1x64xf32>
    tpu.vector_store %arg4[%c0_6, %c0_7, %c0_8], %6 {strides = array<i32>} : memref<1x1x64xf32, #tpu.memory_space<vmem>>, vector<1x1x64xf32>,
    %8 = arith.mulf %2, %2 : vector<200x64xf32>
    %cst_9 = arith.constant dense<0.000000e+00> : vector<64xf32>
    %9 = vector.multi_reduction <add>, %8, %cst_9 [0] : vector<200x64xf32> to vector<64xf32>
    %10 = vector.shape_cast %9 : vector<64xf32> to vector<1x64xf32>
    %11 = vector.shape_cast %10 : vector<1x64xf32> to vector<1x1x64xf32>
    %c0_10 = arith.constant 0 : index
    %c0_11 = arith.constant 0 : index
    %c0_12 = arith.constant 0 : index
    %12 = vector.load %arg5[%c0_10, %c0_11, %c0_12] : memref<1x1x64xf32, #tpu.memory_space<vmem>>, vector<1x1x64xf32>
    tpu.vector_store %arg5[%c0_10, %c0_11, %c0_12], %11 {strides = array<i32>} : memref<1x1x64xf32, #tpu.memory_space<vmem>>, vector<1x1x64xf32>,
    return
  }
  func.func @transform_0(%arg0: i32) -> (i32, i32) {
    %c0_i32 = arith.constant 0 : i32
    %c0_i32_0 = arith.constant 0 : i32
    return %arg0, %c0_i32 : i32, i32
  }
  func.func @transform_1(%arg0: i32) -> (i32, i32) {
    %c0_i32 = arith.constant 0 : i32
    %c0_i32_0 = arith.constant 0 : i32
    %c0_i32_1 = arith.constant 0 : i32
    return %c0_i32, %c0_i32_0 : i32, i32
  }
  func.func @transform_2(%arg0: i32) -> (i32, i32) {
    %c0_i32 = arith.constant 0 : i32
    %c0_i32_0 = arith.constant 0 : i32
    return %arg0, %c0_i32 : i32, i32
  }
  func.func @transform_3(%arg0: i32) -> (i32, i32, i32) {
    %c0_i32 = arith.constant 0 : i32
    %c0_i32_0 = arith.constant 0 : i32
    %c0_i32_1 = arith.constant 0 : i32
    return %arg0, %c0_i32, %c0_i32_0 : i32, i32, i32
  }
  func.func @transform_4(%arg0: i32) -> (i32, i32, i32) {
    %c0_i32 = arith.constant 0 : i32
    %c0_i32_0 = arith.constant 0 : i32
    %c0_i32_1 = arith.constant 0 : i32
    return %arg0, %c0_i32, %c0_i32_0 : i32, i32, i32
  }
}

module attributes {stable_mosaic.version = 11 : i64} {
  func.func @_bn_lrelu_conv3_sigmoid_kernel(%arg0: i32, %arg1: memref<8x25x64xf32, #tpu.memory_space<vmem>>, %arg2: memref<1x64xf32, #tpu.memory_space<vmem>>, %arg3: memref<1x64xf32, #tpu.memory_space<vmem>>, %arg4: memref<25x64xf32, #tpu.memory_space<vmem>>, %arg5: memref<8x1xf32, #tpu.memory_space<vmem>>) attributes {dimension_semantics = [#tpu.dimension_semantics<parallel>], iteration_bounds = array<i64: 1>, scalar_prefetch = 0 : i64, scratch_operands = 0 : i64, tpu.core_type = #tpu.core_type<tc>, window_params = [{transform_indices = @transform_0, window_bounds = array<i64: 8, 25, 64>}, {pipeline_mode = #tpu.pipeline_mode<synchronous>, transform_indices = @transform_1, window_bounds = array<i64: 1, 64>}, {pipeline_mode = #tpu.pipeline_mode<synchronous>, transform_indices = @transform_2, window_bounds = array<i64: 1, 64>}, {pipeline_mode = #tpu.pipeline_mode<synchronous>, transform_indices = @transform_3, window_bounds = array<i64: 25, 64>}, {transform_indices = @transform_4, window_bounds = array<i64: 8, 1>}]} {
    %c0 = arith.constant 0 : index
    %c0_0 = arith.constant 0 : index
    %c0_1 = arith.constant 0 : index
    %0 = vector.load %arg1[%c0, %c0_0, %c0_1] : memref<8x25x64xf32, #tpu.memory_space<vmem>>, vector<8x25x64xf32>
    %c0_2 = arith.constant 0 : index
    %c0_3 = arith.constant 0 : index
    %1 = vector.load %arg2[%c0_2, %c0_3] : memref<1x64xf32, #tpu.memory_space<vmem>>, vector<1x64xf32>
    %2 = vector.shape_cast %1 : vector<1x64xf32> to vector<1x1x64xf32>
    %3 = vector.broadcast %2 : vector<1x1x64xf32> to vector<8x25x64xf32>
    %4 = arith.subf %0, %3 : vector<8x25x64xf32>
    %c0_4 = arith.constant 0 : index
    %c0_5 = arith.constant 0 : index
    %5 = vector.load %arg3[%c0_4, %c0_5] : memref<1x64xf32, #tpu.memory_space<vmem>>, vector<1x64xf32>
    %6 = vector.shape_cast %5 : vector<1x64xf32> to vector<1x1x64xf32>
    %7 = vector.broadcast %6 : vector<1x1x64xf32> to vector<8x25x64xf32>
    %8 = arith.mulf %4, %7 : vector<8x25x64xf32>
    %cst = arith.constant 0.000000e+00 : f32
    %9 = vector.broadcast %cst : f32 to vector<8x25x64xf32>
    %10 = arith.cmpf ogt, %8, %9 : vector<8x25x64xf32>
    %cst_6 = arith.constant 2.000000e-01 : f32
    %11 = vector.broadcast %cst_6 : f32 to vector<8x25x64xf32>
    %12 = arith.mulf %11, %8 : vector<8x25x64xf32>
    %13 = arith.select %10, %8, %12 : vector<8x25x64xi1>, vector<8x25x64xf32>
    %c0_7 = arith.constant 0 : index
    %c0_8 = arith.constant 0 : index
    %14 = vector.load %arg4[%c0_7, %c0_8] : memref<25x64xf32, #tpu.memory_space<vmem>>, vector<25x64xf32>
    %15 = vector.shape_cast %14 : vector<25x64xf32> to vector<1x25x64xf32>
    %16 = vector.broadcast %15 : vector<1x25x64xf32> to vector<8x25x64xf32>
    %17 = arith.mulf %13, %16 : vector<8x25x64xf32>
    %cst_9 = arith.constant dense<0.000000e+00> : vector<8x25xf32>
    %18 = vector.multi_reduction <add>, %17, %cst_9 [2] : vector<8x25x64xf32> to vector<8x25xf32>
    %cst_10 = arith.constant dense<0.000000e+00> : vector<8xf32>
    %19 = vector.multi_reduction <add>, %18, %cst_10 [1] : vector<8x25xf32> to vector<8xf32>
    %20 = vector.shape_cast %19 : vector<8xf32> to vector<8x1xf32>
    %21 = arith.negf %20 : vector<8x1xf32>
    %22 = math.exp %21 : vector<8x1xf32>
    %cst_11 = arith.constant 1.000000e+00 : f32
    %23 = vector.broadcast %cst_11 : f32 to vector<8x1xf32>
    %24 = arith.addf %23, %22 : vector<8x1xf32>
    %25 = arith.divf %23, %24 : vector<8x1xf32>
    %c0_12 = arith.constant 0 : index
    %c0_13 = arith.constant 0 : index
    %26 = vector.load %arg5[%c0_12, %c0_13] : memref<8x1xf32, #tpu.memory_space<vmem>>, vector<8x1xf32>
    tpu.vector_store %arg5[%c0_12, %c0_13], %25 {strides = array<i32>} : memref<8x1xf32, #tpu.memory_space<vmem>>, vector<8x1xf32>,
    return
  }
  func.func @transform_0(%arg0: i32) -> (i32, i32, i32) {
    %c0_i32 = arith.constant 0 : i32
    %c0_i32_0 = arith.constant 0 : i32
    %c0_i32_1 = arith.constant 0 : i32
    return %arg0, %c0_i32, %c0_i32_0 : i32, i32, i32
  }
  func.func @transform_1(%arg0: i32) -> (i32, i32) {
    %c0_i32 = arith.constant 0 : i32
    %c0_i32_0 = arith.constant 0 : i32
    %c0_i32_1 = arith.constant 0 : i32
    return %c0_i32, %c0_i32_0 : i32, i32
  }
  func.func @transform_2(%arg0: i32) -> (i32, i32) {
    %c0_i32 = arith.constant 0 : i32
    %c0_i32_0 = arith.constant 0 : i32
    %c0_i32_1 = arith.constant 0 : i32
    return %c0_i32, %c0_i32_0 : i32, i32
  }
  func.func @transform_3(%arg0: i32) -> (i32, i32) {
    %c0_i32 = arith.constant 0 : i32
    %c0_i32_0 = arith.constant 0 : i32
    %c0_i32_1 = arith.constant 0 : i32
    return %c0_i32, %c0_i32_0 : i32, i32
  }
  func.func @transform_4(%arg0: i32) -> (i32, i32) {
    %c0_i32 = arith.constant 0 : i32
    %c0_i32_0 = arith.constant 0 : i32
    return %arg0, %c0_i32 : i32, i32
  }
}

</mosaic_0001>

<llo_original>
// kernel: discriminator1_forward.3
$region0: #{discriminator1_forward.3}
  #allocation0 [shape = 'u32[]', space=smem, size = 0x4, offset = 0x4, fixed_abs, tag = 'smem constant byte address 0x4 - core index']
  #allocation1 [shape = 'u32[144,128]{1,0:T(1,128)}', space=vmem, size = 0x12000, scoped, tag = 'internal scratch']
  %s0 = inlined_call_operand.vmem [shape: f32[1352,16], index: 0, kind: input, shape index: {}]
  %s1 = inlined_call_operand.vmem [shape: f32[16,32], index: 1, kind: input, shape index: {}]
  %s2 = inlined_call_operand.vmem [shape: f32[1352,32], index: 2, kind: output, shape index: {}]
  %s3 = sld [smem:[#allocation0]]
  $region18: #{discriminator1_forward.3} parent=0
    _
  %s5 = ssub.s32 1, %s3
  %s6 = scalar_select 0, %s5, %s3
  // Predicated region
  $region2: #{discriminator1_forward.3} parent=0 // pred_check
    _
  $region3: #{discriminator1_forward.3} parent=0 // pred_check_branch
    %8 = sbr.rel (0) target = $region5
  $region4: #{discriminator1_forward.3} parent=0 // pred_region
    _
  $region5: #{discriminator1_forward.3} parent=0 // pred_fallthru
    _
  // Predicated region
  $region6: #{discriminator1_forward.3} parent=0 // pred_check
    _
  $region7: #{discriminator1_forward.3} parent=0 // pred_check_branch
    %10 = sbr.rel (0) target = $region9
  $region8: #{discriminator1_forward.3} parent=0 // pred_region
    _
  $region9: #{discriminator1_forward.3} parent=0 // pred_fallthru
    _
  %v11 = vld [vmem:[%s0] sm:$0xff]
  %v12 = vld [vmem:[%s0 + $0x8] sm:$0xff]
  %v13 = vld [vmem:[%s0 + $0x10] sm:$0xff]
  %v14 = vld [vmem:[%s0 + $0x18] sm:$0xff]
  %v15 = vld [vmem:[%s0 + $0x20] sm:$0xff]
  %v16 = vld [vmem:[%s0 + $0x28] sm:$0xff]
  %v17 = vld [vmem:[%s0 + $0x30] sm:$0xff]
  %v18 = vld [vmem:[%s0 + $0x38] sm:$0xff]
  %v19 = vld [vmem:[%s0 + $0x40] sm:$0xff]
  %v20 = vld [vmem:[%s0 + $0x48] sm:$0xff]
  %v21 = vld [vmem:[%s0 + $0x50] sm:$0xff]
  %v22 = vld [vmem:[%s0 + $0x58] sm:$0xff]
  %v23 = vld [vmem:[%s0 + $0x60] sm:$0xff]
  %v24 = vld [vmem:[%s0 + $0x68] sm:$0xff]
  %v25 = vld [vmem:[%s0 + $0x70] sm:$0xff]
  %v26 = vld [vmem:[%s0 + $0x78] sm:$0xff]
  %v27 = vld [vmem:[%s0 + $0x80] sm:$0xff]
  %v28 = vld [vmem:[%s0 + $0x88] sm:$0xff]
  %v29 = vld [vmem:[%s0 + $0x90] sm:$0xff]
  %v30 = vld [vmem:[%s0 + $0x98] sm:$0xff]
  %v31 = vld [vmem:[%s0 + $0xa0] sm:$0xff]
  %v32 = vld [vmem:[%s0 + $0xa8] sm:$0xff]
  %v33 = vld [vmem:[%s0 + $0xb0] sm:$0xff]
  %v34 = vld [vmem:[%s0 + $0xb8] sm:$0xff]
  %v35 = vld [vmem:[%s0 + $0xc0] sm:$0xff]
  %v36 = vld [vmem:[%s0 + $0xc8] sm:$0xff]
  %v37 = vld [vmem:[%s0 + $0xd0] sm:$0xff]
  %v38 = vld [vmem:[%s0 + $0xd8] sm:$0xff]
  %v39 = vld [vmem:[%s0 + $0xe0] sm:$0xff]
  %v40 = vld [vmem:[%s0 + $0xe8] sm:$0xff]
  %v41 = vld [vmem:[%s0 + $0xf0] sm:$0xff]
  %v42 = vld [vmem:[%s0 + $0xf8] sm:$0xff]
  %v43 = vld [vmem:[%s0 + $0x100] sm:$0xff]
  %v44 = vld [vmem:[%s0 + $0x108] sm:$0xff]
  %v45 = vld [vmem:[%s0 + $0x110] sm:$0xff]
  %v46 = vld [vmem:[%s0 + $0x118] sm:$0xff]
  %v47 = vld [vmem:[%s0 + $0x120] sm:$0xff]
  %v48 = vld [vmem:[%s0 + $0x128] sm:$0xff]
  %v49 = vld [vmem:[%s0 + $0x130] sm:$0xff]
  %v50 = vld [vmem:[%s0 + $0x138] sm:$0xff]
  %v51 = vld [vmem:[%s0 + $0x140] sm:$0xff]
  %v52 = vld [vmem:[%s0 + $0x148] sm:$0xff]
  %v53 = vld [vmem:[%s0 + $0x150] sm:$0xff]
  %v54 = vld [vmem:[%s0 + $0x158] sm:$0xff]
  %v55 = vld [vmem:[%s0 + $0x160] sm:$0xff]
  %v56 = vld [vmem:[%s0 + $0x168] sm:$0xff]
  %v57 = vld [vmem:[%s0 + $0x170] sm:$0xff]
  %v58 = vld [vmem:[%s0 + $0x178] sm:$0xff]
  %v59 = vld [vmem:[%s0 + $0x180] sm:$0xff]
  %v60 = vld [vmem:[%s0 + $0x188] sm:$0xff]
  %v61 = vld [vmem:[%s0 + $0x190] sm:$0xff]
  %v62 = vld [vmem:[%s0 + $0x198] sm:$0xff]
  %v63 = vld [vmem:[%s0 + $0x1a0] sm:$0xff]
  %v64 = vld [vmem:[%s0 + $0x1a8] sm:$0xff]
  %v65 = vld [vmem:[%s0 + $0x1b0] sm:$0xff]
  %v66 = vld [vmem:[%s0 + $0x1b8] sm:$0xff]
  %v67 = vld [vmem:[%s0 + $0x1c0] sm:$0xff]
  %v68 = vld [vmem:[%s0 + $0x1c8] sm:$0xff]
  %v69 = vld [vmem:[%s0 + $0x1d0] sm:$0xff]
  %v70 = vld [vmem:[%s0 + $0x1d8] sm:$0xff]
  %v71 = vld [vmem:[%s0 + $0x1e0] sm:$0xff]
  %v72 = vld [vmem:[%s0 + $0x1e8] sm:$0xff]
  %v73 = vld [vmem:[%s0 + $0x1f0] sm:$0xff]
  %v74 = vld [vmem:[%s0 + $0x1f8] sm:$0xff]
  %v75 = vld [vmem:[%s0 + $0x200] sm:$0xff]
  %v76 = vld [vmem:[%s0 + $0x208] sm:$0xff]
  %v77 = vld [vmem:[%s0 + $0x210] sm:$0xff]
  %v78 = vld [vmem:[%s0 + $0x218] sm:$0xff]
  %v79 = vld [vmem:[%s0 + $0x220] sm:$0xff]
  %v80 = vld [vmem:[%s0 + $0x228] sm:$0xff]
  %v81 = vld [vmem:[%s0 + $0x230] sm:$0xff]
  %v82 = vld [vmem:[%s0 + $0x238] sm:$0xff]
  %v83 = vld [vmem:[%s0 + $0x240] sm:$0xff]
  %v84 = vld [vmem:[%s0 + $0x248] sm:$0xff]
  %v85 = vld [vmem:[%s0 + $0x250] sm:$0xff]
  %v86 = vld [vmem:[%s0 + $0x258] sm:$0xff]
  %v87 = vld [vmem:[%s0 + $0x260] sm:$0xff]
  %v88 = vld [vmem:[%s0 + $0x268] sm:$0xff]
  %v89 = vld [vmem:[%s0 + $0x270] sm:$0xff]
  %v90 = vld [vmem:[%s0 + $0x278] sm:$0xff]
  %v91 = vld [vmem:[%s0 + $0x280] sm:$0xff]
  %v92 = vld [vmem:[%s0 + $0x288] sm:$0xff]
  %v93 = vld [vmem:[%s0 + $0x290] sm:$0xff]
  %v94 = vld [vmem:[%s0 + $0x298] sm:$0xff]
  %v95 = vld [vmem:[%s0 + $0x2a0] sm:$0xff]
  %v96 = vld [vmem:[%s0 + $0x2a8] sm:$0xff]
  %v97 = vld [vmem:[%s0 + $0x2b0] sm:$0xff]
  %v98 = vld [vmem:[%s0 + $0x2b8] sm:$0xff]
  %v99 = vld [vmem:[%s0 + $0x2c0] sm:$0xff]
  %v100 = vld [vmem:[%s0 + $0x2c8] sm:$0xff]
  %v101 = vld [vmem:[%s0 + $0x2d0] sm:$0xff]
  %v102 = vld [vmem:[%s0 + $0x2d8] sm:$0xff]
  %v103 = vld [vmem:[%s0 + $0x2e0] sm:$0xff]
  %v104 = vld [vmem:[%s0 + $0x2e8] sm:$0xff]
  %v105 = vld [vmem:[%s0 + $0x2f0] sm:$0xff]
  %v106 = vld [vmem:[%s0 + $0x2f8] sm:$0xff]
  %v107 = vld [vmem:[%s0 + $0x300] sm:$0xff]
  %v108 = vld [vmem:[%s0 + $0x308] sm:$0xff]
  %v109 = vld [vmem:[%s0 + $0x310] sm:$0xff]
  %v110 = vld [vmem:[%s0 + $0x318] sm:$0xff]
  %v111 = vld [vmem:[%s0 + $0x320] sm:$0xff]
  %v112 = vld [vmem:[%s0 + $0x328] sm:$0xff]
  %v113 = vld [vmem:[%s0 + $0x330] sm:$0xff]
  %v114 = vld [vmem:[%s0 + $0x338] sm:$0xff]
  %v115 = vld [vmem:[%s0 + $0x340] sm:$0xff]
  %v116 = vld [vmem:[%s0 + $0x348] sm:$0xff]
  %v117 = vld [vmem:[%s0 + $0x350] sm:$0xff]
  %v118 = vld [vmem:[%s0 + $0x358] sm:$0xff]
  %v119 = vld [vmem:[%s0 + $0x360] sm:$0xff]
  %v120 = vld [vmem:[%s0 + $0x368] sm:$0xff]
  %v121 = vld [vmem:[%s0 + $0x370] sm:$0xff]
  %v122 = vld [vmem:[%s0 + $0x378] sm:$0xff]
  %v123 = vld [vmem:[%s0 + $0x380] sm:$0xff]
  %v124 = vld [vmem:[%s0 + $0x388] sm:$0xff]
  %v125 = vld [vmem:[%s0 + $0x390] sm:$0xff]
  %v126 = vld [vmem:[%s0 + $0x398] sm:$0xff]
  %v127 = vld [vmem:[%s0 + $0x3a0] sm:$0xff]
  %v128 = vld [vmem:[%s0 + $0x3a8] sm:$0xff]
  %v129 = vld [vmem:[%s0 + $0x3b0] sm:$0xff]
  %v130 = vld [vmem:[%s0 + $0x3b8] sm:$0xff]
  %v131 = vld [vmem:[%s0 + $0x3c0] sm:$0xff]
  %v132 = vld [vmem:[%s0 + $0x3c8] sm:$0xff]
  %v133 = vld [vmem:[%s0 + $0x3d0] sm:$0xff]
  %v134 = vld [vmem:[%s0 + $0x3d8] sm:$0xff]
  %v135 = vld [vmem:[%s0 + $0x3e0] sm:$0xff]
  %v136 = vld [vmem:[%s0 + $0x3e8] sm:$0xff]
  %v137 = vld [vmem:[%s0 + $0x3f0] sm:$0xff]
  %v138 = vld [vmem:[%s0 + $0x3f8] sm:$0xff]
  %v139 = vld [vmem:[%s0 + $0x400] sm:$0xff]
  %v140 = vld [vmem:[%s0 + $0x408] sm:$0xff]
  %v141 = vld [vmem:[%s0 + $0x410] sm:$0xff]
  %v142 = vld [vmem:[%s0 + $0x418] sm:$0xff]
  %v143 = vld [vmem:[%s0 + $0x420] sm:$0xff]
  %v144 = vld [vmem:[%s0 + $0x428] sm:$0xff]
  %v145 = vld [vmem:[%s0 + $0x430] sm:$0xff]
  %v146 = vld [vmem:[%s0 + $0x438] sm:$0xff]
  %v147 = vld [vmem:[%s0 + $0x440] sm:$0xff]
  %v148 = vld [vmem:[%s0 + $0x448] sm:$0xff]
  %v149 = vld [vmem:[%s0 + $0x450] sm:$0xff]
  %v150 = vld [vmem:[%s0 + $0x458] sm:$0xff]
  %v151 = vld [vmem:[%s0 + $0x460] sm:$0xff]
  %v152 = vld [vmem:[%s0 + $0x468] sm:$0xff]
  %v153 = vld [vmem:[%s0 + $0x470] sm:$0xff]
  %v154 = vld [vmem:[%s0 + $0x478] sm:$0xff]
  %v155 = vld [vmem:[%s0 + $0x480] sm:$0xff]
  %v156 = vld [vmem:[%s0 + $0x488] sm:$0xff]
  %v157 = vld [vmem:[%s0 + $0x490] sm:$0xff]
  %v158 = vld [vmem:[%s0 + $0x498] sm:$0xff]
  %v159 = vld [vmem:[%s0 + $0x4a0] sm:$0xff]
  %v160 = vld [vmem:[%s0 + $0x4a8] sm:$0xff]
  %v161 = vld [vmem:[%s0 + $0x4b0] sm:$0xff]
  %v162 = vld [vmem:[%s0 + $0x4b8] sm:$0xff]
  %v163 = vld [vmem:[%s0 + $0x4c0] sm:$0xff]
  %v164 = vld [vmem:[%s0 + $0x4c8] sm:$0xff]
  %v165 = vld [vmem:[%s0 + $0x4d0] sm:$0xff]
  %v166 = vld [vmem:[%s0 + $0x4d8] sm:$0xff]
  %v167 = vld [vmem:[%s0 + $0x4e0] sm:$0xff]
  %v168 = vld [vmem:[%s0 + $0x4e8] sm:$0xff]
  %v169 = vld [vmem:[%s0 + $0x4f0] sm:$0xff]
  %v170 = vld [vmem:[%s0 + $0x4f8] sm:$0xff]
  %v171 = vld [vmem:[%s0 + $0x500] sm:$0xff]
  %v172 = vld [vmem:[%s0 + $0x508] sm:$0xff]
  %v173 = vld [vmem:[%s0 + $0x510] sm:$0xff]
  %v174 = vld [vmem:[%s0 + $0x518] sm:$0xff]
  %v175 = vld [vmem:[%s0 + $0x520] sm:$0xff]
  %v176 = vld [vmem:[%s0 + $0x528] sm:$0xff]
  %v177 = vld [vmem:[%s0 + $0x530] sm:$0xff]
  %v178 = vld [vmem:[%s0 + $0x538] sm:$0xff]
  %v179 = vld [vmem:[%s0 + $0x540] sm:$0xff]
  %v180 = vld [vmem:[%s1] sm:$0xff]
  %v181 = vld [vmem:[%s1 + $0x8] sm:$0xff]
  %vm182 = vcmask 130048
  %v184 = vsel %vm182, %v11, 0
  %v187 = vsel %vm182, %v12, 0
  %v190 = vsel %vm182, %v13, 0
  %v193 = vsel %vm182, %v14, 0
  %v196 = vsel %vm182, %v15, 0
  %v199 = vsel %vm182, %v16, 0
  %v202 = vsel %vm182, %v17, 0
  %v205 = vsel %vm182, %v18, 0
  %v208 = vsel %vm182, %v19, 0
  %v211 = vsel %vm182, %v20, 0
  %v214 = vsel %vm182, %v21, 0
  %v217 = vsel %vm182, %v22, 0
  %v220 = vsel %vm182, %v23, 0
  %v223 = vsel %vm182, %v24, 0
  %v226 = vsel %vm182, %v25, 0
  %v229 = vsel %vm182, %v26, 0
  %v232 = vsel %vm182, %v27, 0
  %v235 = vsel %vm182, %v28, 0
  %v238 = vsel %vm182, %v29, 0
  %v241 = vsel %vm182, %v30, 0
  %v244 = vsel %vm182, %v31, 0
  %v247 = vsel %vm182, %v32, 0
  %v250 = vsel %vm182, %v33, 0
  %v253 = vsel %vm182, %v34, 0
  %v256 = vsel %vm182, %v35, 0
  %v259 = vsel %vm182, %v36, 0
  %v262 = vsel %vm182, %v37, 0
  %v265 = vsel %vm182, %v38, 0
  %v268 = vsel %vm182, %v39, 0
  %v271 = vsel %vm182, %v40, 0
  %v274 = vsel %vm182, %v41, 0
  %v277 = vsel %vm182, %v42, 0
  %v280 = vsel %vm182, %v43, 0
  %v283 = vsel %vm182, %v44, 0
  %v286 = vsel %vm182, %v45, 0
  %v289 = vsel %vm182, %v46, 0
  %v292 = vsel %vm182, %v47, 0
  %v295 = vsel %vm182, %v48, 0
  %v298 = vsel %vm182, %v49, 0
  %v301 = vsel %vm182, %v50, 0
  %v304 = vsel %vm182, %v51, 0
  %v307 = vsel %vm182, %v52, 0
  %v310 = vsel %vm182, %v53, 0
  %v313 = vsel %vm182, %v54, 0
  %v316 = vsel %vm182, %v55, 0
  %v319 = vsel %vm182, %v56, 0
  %v322 = vsel %vm182, %v57, 0
  %v325 = vsel %vm182, %v58, 0
  %v328 = vsel %vm182, %v59, 0
  %v331 = vsel %vm182, %v60, 0
  %v334 = vsel %vm182, %v61, 0
  %v337 = vsel %vm182, %v62, 0
  %v340 = vsel %vm182, %v63, 0
  %v343 = vsel %vm182, %v64, 0
  %v346 = vsel %vm182, %v65, 0
  %v349 = vsel %vm182, %v66, 0
  %v352 = vsel %vm182, %v67, 0
  %v355 = vsel %vm182, %v68, 0
  %v358 = vsel %vm182, %v69, 0
  %v361 = vsel %vm182, %v70, 0
  %v364 = vsel %vm182, %v71, 0
  %v367 = vsel %vm182, %v72, 0
  %v370 = vsel %vm182, %v73, 0
  %v373 = vsel %vm182, %v74, 0
  %v376 = vsel %vm182, %v75, 0
  %v379 = vsel %vm182, %v76, 0
  %v382 = vsel %vm182, %v77, 0
  %v385 = vsel %vm182, %v78, 0
  %v388 = vsel %vm182, %v79, 0
  %v391 = vsel %vm182, %v80, 0
  %v394 = vsel %vm182, %v81, 0
  %v397 = vsel %vm182, %v82, 0
  %v400 = vsel %vm182, %v83, 0
  %v403 = vsel %vm182, %v84, 0
  %v406 = vsel %vm182, %v85, 0
  %v409 = vsel %vm182, %v86, 0
  %v412 = vsel %vm182, %v87, 0
  %v415 = vsel %vm182, %v88, 0
  %v418 = vsel %vm182, %v89, 0
  %v421 = vsel %vm182, %v90, 0
  %v424 = vsel %vm182, %v91, 0
  %v427 = vsel %vm182, %v92, 0
  %v430 = vsel %vm182, %v93, 0
  %v433 = vsel %vm182, %v94, 0
  %v436 = vsel %vm182, %v95, 0
  %v439 = vsel %vm182, %v96, 0
  %v442 = vsel %vm182, %v97, 0
  %v445 = vsel %vm182, %v98, 0
  %v448 = vsel %vm182, %v99, 0
  %v451 = vsel %vm182, %v100, 0
  %v454 = vsel %vm182, %v101, 0
  %v457 = vsel %vm182, %v102, 0
  %v460 = vsel %vm182, %v103, 0
  %v463 = vsel %vm182, %v104, 0
  %v466 = vsel %vm182, %v105, 0
  %v469 = vsel %vm182, %v106, 0
  %v472 = vsel %vm182, %v107, 0
  %v475 = vsel %vm182, %v108, 0
  %v478 = vsel %vm182, %v109, 0
  %v481 = vsel %vm182, %v110, 0
  %v484 = vsel %vm182, %v111, 0
  %v487 = vsel %vm182, %v112, 0
  %v490 = vsel %vm182, %v113, 0
  %v493 = vsel %vm182, %v114, 0
  %v496 = vsel %vm182, %v115, 0
  %v499 = vsel %vm182, %v116, 0
  %v502 = vsel %vm182, %v117, 0
  %v505 = vsel %vm182, %v118, 0
  %v508 = vsel %vm182, %v119, 0
  %v511 = vsel %vm182, %v120, 0
  %v514 = vsel %vm182, %v121, 0
  %v517 = vsel %vm182, %v122, 0
  %v520 = vsel %vm182, %v123, 0
  %v523 = vsel %vm182, %v124, 0
  %v526 = vsel %vm182, %v125, 0
  %v529 = vsel %vm182, %v126, 0
  %v532 = vsel %vm182, %v127, 0
  %v535 = vsel %vm182, %v128, 0
  %v538 = vsel %vm182, %v129, 0
  %v541 = vsel %vm182, %v130, 0
  %v544 = vsel %vm182, %v131, 0
  %v547 = vsel %vm182, %v132, 0
  %v550 = vsel %vm182, %v133, 0
  %v553 = vsel %vm182, %v134, 0
  %v556 = vsel %vm182, %v135, 0
  %v559 = vsel %vm182, %v136, 0
  %v562 = vsel %vm182, %v137, 0
  %v565 = vsel %vm182, %v138, 0
  %v568 = vsel %vm182, %v139, 0
  %v571 = vsel %vm182, %v140, 0
  %v574 = vsel %vm182, %v141, 0
  %v577 = vsel %vm182, %v142, 0
  %v580 = vsel %vm182, %v143, 0
  %v583 = vsel %vm182, %v144, 0
  %v586 = vsel %vm182, %v145, 0
  %v589 = vsel %vm182, %v146, 0
  %v592 = vsel %vm182, %v147, 0
  %v595 = vsel %vm182, %v148, 0
  %v598 = vsel %vm182, %v149, 0
  %v601 = vsel %vm182, %v150, 0
  %v604 = vsel %vm182, %v151, 0
  %v607 = vsel %vm182, %v152, 0
  %v610 = vsel %vm182, %v153, 0
  %v613 = vsel %vm182, %v154, 0
  %v616 = vsel %vm182, %v155, 0
  %v619 = vsel %vm182, %v156, 0
  %v622 = vsel %vm182, %v157, 0
  %v625 = vsel %vm182, %v158, 0
  %v628 = vsel %vm182, %v159, 0
  %v631 = vsel %vm182, %v160, 0
  %v634 = vsel %vm182, %v161, 0
  %v637 = vsel %vm182, %v162, 0
  %v640 = vsel %vm182, %v163, 0
  %v643 = vsel %vm182, %v164, 0
  %v646 = vsel %vm182, %v165, 0
  %v649 = vsel %vm182, %v166, 0
  %v652 = vsel %vm182, %v167, 0
  %v655 = vsel %vm182, %v168, 0
  %v658 = vsel %vm182, %v169, 0
  %v661 = vsel %vm182, %v170, 0
  %v664 = vsel %vm182, %v171, 0
  %v667 = vsel %vm182, %v172, 0
  %v670 = vsel %vm182, %v173, 0
  %v673 = vsel %vm182, %v174, 0
  %v676 = vsel %vm182, %v175, 0
  %v679 = vsel %vm182, %v176, 0
  %v682 = vsel %vm182, %v177, 0
  %v685 = vsel %vm182, %v178, 0
  %v688 = vsel %vm182, %v179, 0
  %690 = vmatprep.subr.mxu0 0.0
  %691 = vmatpush1.msra.mxu0 %v180
  %692 = vmatprep.subr.mxu0 0.0
  %693 = vmatpush1.msra.mxu0 %v181
  %694 = vmatprep.subr.mxu0 0.0
  %695 = vmatpush1.msra.mxu0 0.0
  %696 = vmatprep.subr.mxu0 0.0
  %697 = vmatpush1.msra.mxu0 0.0
  %698 = vmatprep.subr.mxu0 0.0
  %699 = vmatpush1.msra.mxu0 0.0
  %700 = vmatprep.subr.mxu0 0.0
  %701 = vmatpush1.msra.mxu0 0.0
  %702 = vmatprep.subr.mxu0 0.0
  %703 = vmatpush1.msra.mxu0 0.0
  %704 = vmatprep.subr.mxu0 0.0
  %705 = vmatpush1.msra.mxu0 0.0
  %706 = vmatprep.subr.mxu0 0.0
  %707 = vmatpush1.msra.mxu0 0.0
  %708 = vmatprep.subr.mxu0 0.0
  %709 = vmatpush1.msra.mxu0 0.0
  %710 = vmatprep.subr.mxu0 0.0
  %711 = vmatpush1.msra.mxu0 0.0
  %712 = vmatprep.subr.mxu0 0.0
  %713 = vmatpush1.msra.mxu0 0.0
  %714 = vmatprep.subr.mxu0 0.0
  %715 = vmatpush1.msra.mxu0 0.0
  %716 = vmatprep.subr.mxu0 0.0
  %717 = vmatpush1.msra.mxu0 0.0
  %718 = vmatprep.subr.mxu0 0.0
  %719 = vmatpush1.msra.mxu0 0.0
  %720 = vmatprep.subr.mxu0 0.0
  %721 = vmatpush1.msra.mxu0 0.0
  %722 = vmatprep.subr.mxu0 0.0
  %723 = vmatpush1.msra.mxu0 0.0
  %724 = vmatprep.subr.mxu0 0.0
  %725 = vmatpush1.msra.mxu0 0.0
  %726 = vmatprep.subr.mxu0 0.0
  %727 = vmatpush1.msra.mxu0 0.0
  %728 = vmatprep.subr.mxu0 0.0
  %729 = vmatpush1.msra.mxu0 0.0
  %730 = vmatprep.subr.mxu0 0.0
  %731 = vmatpush1.msra.mxu0 0.0
  %732 = vmatprep.subr.mxu0 0.0
  %733 = vmatpush1.msra.mxu0 0.0
  %734 = vmatprep.subr.mxu0 0.0
  %735 = vmatpush1.msra.mxu0 0.0
  %736 = vmatprep.subr.mxu0 0.0
  %737 = vmatpush1.msra.mxu0 0.0
  %738 = vmatprep.subr.mxu0 0.0
  %739 = vmatpush1.msra.mxu0 0.0
  %740 = vmatprep.subr.mxu0 0.0
  %741 = vmatpush1.msra.mxu0 0.0
  %742 = vmatprep.subr.mxu0 0.0
  %743 = vmatpush1.msra.mxu0 0.0
  %744 = vmatprep.subr.mxu0 0.0
  %745 = vmatpush1.msra.mxu0 0.0
  %746 = vmatprep.subr.mxu0 0.0
  %747 = vmatpush1.msra.mxu0 0.0
  %748 = vmatprep.subr.mxu0 0.0
  %749 = vmatpush1.msra.mxu0 0.0
  %750 = vmatprep.subr.mxu0 0.0
  %751 = vmatpush1.msra.mxu0 0.0
  %752 = vmatprep.subr.mxu0 0.0
  %753 = vmatpush1.msra.mxu0 0.0
  %754 = vmatprep.mubr.f32.mxu0 0.0
  %755 = vmatmul.mubr.f32.gmra.mrb[0].mxu0 %v184
  %v756 = vpop.f32.mrb[0].mxu0
  %v757 = vadd.f32 0.0, %v756
  %v758 = vpop.f32.mrb[0].mxu0
  %759 = vmatprep.mubr.f32.mxu0 0.0
  %760 = vmatmul.mubr.f32.gmra.mrb[0].mxu0 %v187
  %v761 = vpop.f32.mrb[0].mxu0
  %v762 = vadd.f32 0.0, %v761
  %v763 = vpop.f32.mrb[0].mxu0
  %764 = vmatprep.mubr.f32.mxu0 0.0
  %765 = vmatmul.mubr.f32.gmra.mrb[0].mxu0 %v190
  %v766 = vpop.f32.mrb[0].mxu0
  %v767 = vadd.f32 0.0, %v766
  %v768 = vpop.f32.mrb[0].mxu0
  %769 = vmatprep.mubr.f32.mxu0 0.0
  %770 = vmatmul.mubr.f32.gmra.mrb[0].mxu0 %v193
  %v771 = vpop.f32.mrb[0].mxu0
  %v772 = vadd.f32 0.0, %v771
  %v773 = vpop.f32.mrb[0].mxu0
  %774 = vmatprep.mubr.f32.mxu0 0.0
  %775 = vmatmul.mubr.f32.gmra.mrb[0].mxu0 %v196
  %v776 = vpop.f32.mrb[0].mxu0
  %v777 = vadd.f32 0.0, %v776
  %v778 = vpop.f32.mrb[0].mxu0
  %779 = vmatprep.mubr.f32.mxu0 0.0
  %780 = vmatmul.mubr.f32.gmra.mrb[0].mxu0 %v199
  %v781 = vpop.f32.mrb[0].mxu0
  %v782 = vadd.f32 0.0, %v781
  %v783 = vpop.f32.mrb[0].mxu0
  %784 = vmatprep.mubr.f32.mxu0 0.0
  %785 = vmatmul.mubr.f32.gmra.mrb[0].mxu0 %v202
  %v786 = vpop.f32.mrb[0].mxu0
  %v787 = vadd.f32 0.0, %v786
  %v788 = vpop.f32.mrb[0].mxu0
  %789 = vmatprep.mubr.f32.mxu0 0.0
  %790 = vmatmul.mubr.f32.gmra.mrb[0].mxu0 %v205
  %v791 = vpop.f32.mrb[0].mxu0
  %v792 = vadd.f32 0.0, %v791
  %v793 = vpop.f32.mrb[0].mxu0
  %794 = vmatprep.mubr.f32.mxu0 0.0
  %795 = vmatmul.mubr.f32.gmra.mrb[0].mxu0 %v208
  %v796 = vpop.f32.mrb[0].mxu0
  %v797 = vadd.f32 0.0, %v796
  %v798 = vpop.f32.mrb[0].mxu0
  %799 = vmatprep.mubr.f32.mxu0 0.0
  %800 = vmatmul.mubr.f32.gmra.mrb[0].mxu0 %v211
  %v801 = vpop.f32.mrb[0].mxu0
  %v802 = vadd.f32 0.0, %v801
  %v803 = vpop.f32.mrb[0].mxu0
  %804 = vmatprep.mubr.f32.mxu0 0.0
  %805 = vmatmul.mubr.f32.gmra.mrb[0].mxu0 %v214
  %v806 = vpop.f32.mrb[0].mxu0
  %v807 = vadd.f32 0.0, %v806
  %v808 = vpop.f32.mrb[0].mxu0
  %809 = vmatprep.mubr.f32.mxu0 0.0
  %810 = vmatmul.mubr.f32.gmra.mrb[0].mxu0 %v217
  %v811 = vpop.f32.mrb[0].mxu0
  %v812 = vadd.f32 0.0, %v811
  %v813 = vpop.f32.mrb[0].mxu0
  %814 = vmatprep.mubr.f32.mxu0 0.0
  %815 = vmatmul.mubr.f32.gmra.mrb[0].mxu0 %v220
  %v816 = vpop.f32.mrb[0].mxu0
  %v817 = vadd.f32 0.0, %v816
  %v818 = vpop.f32.mrb[0].mxu0
  %819 = vmatprep.mubr.f32.mxu0 0.0
  %820 = vmatmul.mubr.f32.gmra.mrb[0].mxu0 %v223
  %v821 = vpop.f32.mrb[0].mxu0
  %v822 = vadd.f32 0.0, %v821
  %v823 = vpop.f32.mrb[0].mxu0
  %824 = vmatprep.mubr.f32.mxu0 0.0
  %825 = vmatmul.mubr.f32.gmra.mrb[0].mxu0 %v226
  %v826 = vpop.f32.mrb[0].mxu0
  %v827 = vadd.f32 0.0, %v826
  %v828 = vpop.f32.mrb[0].mxu0
  %829 = vmatprep.mubr.f32.mxu0 0.0
  %830 = vmatmul.mubr.f32.gmra.mrb[0].mxu0 %v229
  %v831 = vpop.f32.mrb[0].mxu0
  %v832 = vadd.f32 0.0, %v831
  %v833 = vpop.f32.mrb[0].mxu0
  %834 = vmatprep.mubr.f32.mxu0 0.0
  %835 = vmatmul.mubr.f32.gmra.mrb[0].mxu0 %v232
  %v836 = vpop.f32.mrb[0].mxu0
  %v837 = vadd.f32 0.0, %v836
  %v838 = vpop.f32.mrb[0].mxu0
  %839 = vmatprep.mubr.f32.mxu0 0.0
  %840 = vmatmul.mubr.f32.gmra.mrb[0].mxu0 %v235
  %v841 = vpop.f32.mrb[0].mxu0
  %v842 = vadd.f32 0.0, %v841
  %v843 = vpop.f32.mrb[0].mxu0
  %844 = vmatprep.mubr.f32.mxu0 0.0
  %845 = vmatmul.mubr.f32.gmra.mrb[0].mxu0 %v238
  %v846 = vpop.f32.mrb[0].mxu0
  %v847 = vadd.f32 0.0, %v846
  %v848 = vpop.f32.mrb[0].mxu0
  %849 = vmatprep.mubr.f32.mxu0 0.0
  %850 = vmatmul.mubr.f32.gmra.mrb[0].mxu0 %v241
  %v851 = vpop.f32.mrb[0].mxu0
  %v852 = vadd.f32 0.0, %v851
  %v853 = vpop.f32.mrb[0].mxu0
  %854 = vmatprep.mubr.f32.mxu0 0.0
  %855 = vmatmul.mubr.f32.gmra.mrb[0].mxu0 %v244
  %v856 = vpop.f32.mrb[0].mxu0
  %v857 = vadd.f32 0.0, %v856
  %v858 = vpop.f32.mrb[0].mxu0
  %859 = vmatprep.mubr.f32.mxu0 0.0
  %860 = vmatmul.mubr.f32.gmra.mrb[0].mxu0 %v247
  %v861 = vpop.f32.mrb[0].mxu0
  %v862 = vadd.f32 0.0, %v861
  %v863 = vpop.f32.mrb[0].mxu0
  %864 = vmatprep.mubr.f32.mxu0 0.0
  %865 = vmatmul.mubr.f32.gmra.mrb[0].mxu0 %v250
  %v866 = vpop.f32.mrb[0].mxu0
  %v867 = vadd.f32 0.0, %v866
  %v868 = vpop.f32.mrb[0].mxu0
  %869 = vmatprep.mubr.f32.mxu0 0.0
  %870 = vmatmul.mubr.f32.gmra.mrb[0].mxu0 %v253
  %v871 = vpop.f32.mrb[0].mxu0
  %v872 = vadd.f32 0.0, %v871
  %v873 = vpop.f32.mrb[0].mxu0
  %874 = vmatprep.mubr.f32.mxu0 0.0
  %875 = vmatmul.mubr.f32.gmra.mrb[0].mxu0 %v256
  %v876 = vpop.f32.mrb[0].mxu0
  %v877 = vadd.f32 0.0, %v876
  %v878 = vpop.f32.mrb[0].mxu0
  %879 = vmatprep.mubr.f32.mxu0 0.0
  %880 = vmatmul.mubr.f32.gmra.mrb[0].mxu0 %v259
  %v881 = vpop.f32.mrb[0].mxu0
  %v882 = vadd.f32 0.0, %v881
  %v883 = vpop.f32.mrb[0].mxu0
  %884 = vmatprep.mubr.f32.mxu0 0.0
  %885 = vmatmul.mubr.f32.gmra.mrb[0].mxu0 %v262
  %v886 = vpop.f32.mrb[0].mxu0
  %v887 = vadd.f32 0.0, %v886
  %v888 = vpop.f32.mrb[0].mxu0
  %889 = vmatprep.mubr.f32.mxu0 0.0
  %890 = vmatmul.mubr.f32.gmra.mrb[0].mxu0 %v265
  %v891 = vpop.f32.mrb[0].mxu0
  %v892 = vadd.f32 0.0, %v891
  %v893 = vpop.f32.mrb[0].mxu0
  %894 = vmatprep.mubr.f32.mxu0 0.0
  %895 = vmatmul.mubr.f32.gmra.mrb[0].mxu0 %v268
  %v896 = vpop.f32.mrb[0].mxu0
  %v897 = vadd.f32 0.0, %v896
  %v898 = vpop.f32.mrb[0].mxu0
  %899 = vmatprep.mubr.f32.mxu0 0.0
  %900 = vmatmul.mubr.f32.gmra.mrb[0].mxu0 %v271
  %v901 = vpop.f32.mrb[0].mxu0
  %v902 = vadd.f32 0.0, %v901
  %v903 = vpop.f32.mrb[0].mxu0
  %904 = vmatprep.mubr.f32.mxu0 0.0
  %905 = vmatmul.mubr.f32.gmra.mrb[0].mxu0 %v274
  %v906 = vpop.f32.mrb[0].mxu0
  %v907 = vadd.f32 0.0, %v906
  %v908 = vpop.f32.mrb[0].mxu0
  %909 = vmatprep.mubr.f32.mxu0 0.0
  %910 = vmatmul.mubr.f32.gmra.mrb[0].mxu0 %v277
  %v911 = vpop.f32.mrb[0].mxu0
  %v912 = vadd.f32 0.0, %v911
  %v913 = vpop.f32.mrb[0].mxu0
  %914 = vmatprep.mubr.f32.mxu0 0.0
  %915 = vmatmul.mubr.f32.gmra.mrb[0].mxu0 %v280
  %v916 = vpop.f32.mrb[0].mxu0
  %v917 = vadd.f32 0.0, %v916
  %v918 = vpop.f32.mrb[0].mxu0
  %919 = vmatprep.mubr.f32.mxu0 0.0
  %920 = vmatmul.mubr.f32.gmra.mrb[0].mxu0 %v283
  %v921 = vpop.f32.mrb[0].mxu0
  %v922 = vadd.f32 0.0, %v921
  %v923 = vpop.f32.mrb[0].mxu0
  %924 = vmatprep.mubr.f32.mxu0 0.0
  %925 = vmatmul.mubr.f32.gmra.mrb[0].mxu0 %v286
  %v926 = vpop.f32.mrb[0].mxu0
  %v927 = vadd.f32 0.0, %v926
  %v928 = vpop.f32.mrb[0].mxu0
  %929 = vmatprep.mubr.f32.mxu0 0.0
  %930 = vmatmul.mubr.f32.gmra.mrb[0].mxu0 %v289
  %v931 = vpop.f32.mrb[0].mxu0
  %v932 = vadd.f32 0.0, %v931
  %v933 = vpop.f32.mrb[0].mxu0
  %934 = vmatprep.mubr.f32.mxu0 0.0
  %935 = vmatmul.mubr.f32.gmra.mrb[0].mxu0 %v292
  %v936 = vpop.f32.mrb[0].mxu0
  %v937 = vadd.f32 0.0, %v936
  %v938 = vpop.f32.mrb[0].mxu0
  %939 = vmatprep.mubr.f32.mxu0 0.0
  %940 = vmatmul.mubr.f32.gmra.mrb[0].mxu0 %v295
  %v941 = vpop.f32.mrb[0].mxu0
  %v942 = vadd.f32 0.0, %v941
  %v943 = vpop.f32.mrb[0].mxu0
  %944 = vmatprep.mubr.f32.mxu0 0.0
  %945 = vmatmul.mubr.f32.gmra.mrb[0].mxu0 %v298
  %v946 = vpop.f32.mrb[0].mxu0
  %v947 = vadd.f32 0.0, %v946
  %v948 = vpop.f32.mrb[0].mxu0
  %949 = vmatprep.mubr.f32.mxu0 0.0
  %950 = vmatmul.mubr.f32.gmra.mrb[0].mxu0 %v301
  %v951 = vpop.f32.mrb[0].mxu0
  %v952 = vadd.f32 0.0, %v951
  %v953 = vpop.f32.mrb[0].mxu0
  %954 = vmatprep.mubr.f32.mxu0 0.0
  %955 = vmatmul.mubr.f32.gmra.mrb[0].mxu0 %v304
  %v956 = vpop.f32.mrb[0].mxu0
  %v957 = vadd.f32 0.0, %v956
  %v958 = vpop.f32.mrb[0].mxu0
  %959 = vmatprep.mubr.f32.mxu0 0.0
  %960 = vmatmul.mubr.f32.gmra.mrb[0].mxu0 %v307
  %v961 = vpop.f32.mrb[0].mxu0
  %v962 = vadd.f32 0.0, %v961
  %v963 = vpop.f32.mrb[0].mxu0
  %964 = vmatprep.mubr.f32.mxu0 0.0
  %965 = vmatmul.mubr.f32.gmra.mrb[0].mxu0 %v310
  %v966 = vpop.f32.mrb[0].mxu0
  %v967 = vadd.f32 0.0, %v966
  %v968 = vpop.f32.mrb[0].mxu0
  %969 = vmatprep.mubr.f32.mxu0 0.0
  %970 = vmatmul.mubr.f32.gmra.mrb[0].mxu0 %v313
  %v971 = vpop.f32.mrb[0].mxu0
  %v972 = vadd.f32 0.0, %v971
  %v973 = vpop.f32.mrb[0].mxu0
  %974 = vmatprep.mubr.f32.mxu0 0.0
  %975 = vmatmul.mubr.f32.gmra.mrb[0].mxu0 %v316
  %v976 = vpop.f32.mrb[0].mxu0
  %v977 = vadd.f32 0.0, %v976
  %v978 = vpop.f32.mrb[0].mxu0
  %979 = vmatprep.mubr.f32.mxu0 0.0
  %980 = vmatmul.mubr.f32.gmra.mrb[0].mxu0 %v319
  %v981 = vpop.f32.mrb[0].mxu0
  %v982 = vadd.f32 0.0, %v981
  %v983 = vpop.f32.mrb[0].mxu0
  %984 = vmatprep.mubr.f32.mxu0 0.0
  %985 = vmatmul.mubr.f32.gmra.mrb[0].mxu0 %v322
  %v986 = vpop.f32.mrb[0].mxu0
  %v987 = vadd.f32 0.0, %v986
  %v988 = vpop.f32.mrb[0].mxu0
  %989 = vmatprep.mubr.f32.mxu0 0.0
  %990 = vmatmul.mubr.f32.gmra.mrb[0].mxu0 %v325
  %v991 = vpop.f32.mrb[0].mxu0
  %v992 = vadd.f32 0.0, %v991
  %v993 = vpop.f32.mrb[0].mxu0
  %994 = vmatprep.mubr.f32.mxu0 0.0
  %995 = vmatmul.mubr.f32.gmra.mrb[0].mxu0 %v328
  %v996 = vpop.f32.mrb[0].mxu0
  %v997 = vadd.f32 0.0, %v996
  %v998 = vpop.f32.mrb[0].mxu0
  %999 = vmatprep.mubr.f32.mxu0 0.0
  %1000 = vmatmul.mubr.f32.gmra.mrb[0].mxu0 %v331
  %v1001 = vpop.f32.mrb[0].mxu0
  %v1002 = vadd.f32 0.0, %v1001
  %v1003 = vpop.f32.mrb[0].mxu0
  %1004 = vmatprep.mubr.f32.mxu0 0.0
  %1005 = vmatmul.mubr.f32.gmra.mrb[0].mxu0 %v334
  %v1006 = vpop.f32.mrb[0].mxu0
  %v1007 = vadd.f32 0.0, %v1006
  %v1008 = vpop.f32.mrb[0].mxu0
  %1009 = vmatprep.mubr.f32.mxu0 0.0
  %1010 = vmatmul.mubr.f32.gmra.mrb[0].mxu0 %v337
  %v1011 = vpop.f32.mrb[0].mxu0
  %v1012 = vadd.f32 0.0, %v1011
  %v1013 = vpop.f32.mrb[0].mxu0
  %1014 = vmatprep.mubr.f32.mxu0 0.0
  %1015 = vmatmul.mubr.f32.gmra.mrb[0].mxu0 %v340
  %v1016 = vpop.f32.mrb[0].mxu0
  %v1017 = vadd.f32 0.0, %v1016
  %v1018 = vpop.f32.mrb[0].mxu0
  %1019 = vmatprep.mubr.f32.mxu0 0.0
  %1020 = vmatmul.mubr.f32.gmra.mrb[0].mxu0 %v343
  %v1021 = vpop.f32.mrb[0].mxu0
  %v1022 = vadd.f32 0.0, %v1021
  %v1023 = vpop.f32.mrb[0].mxu0
  %1024 = vmatprep.mubr.f32.mxu0 0.0
  %1025 = vmatmul.mubr.f32.gmra.mrb[0].mxu0 %v346
  %v1026 = vpop.f32.mrb[0].mxu0
  %v1027 = vadd.f32 0.0, %v1026
  %v1028 = vpop.f32.mrb[0].mxu0
  %1029 = vmatprep.mubr.f32.mxu0 0.0
  %1030 = vmatmul.mubr.f32.gmra.mrb[0].mxu0 %v349
  %v1031 = vpop.f32.mrb[0].mxu0
  %v1032 = vadd.f32 0.0, %v1031
  %v1033 = vpop.f32.mrb[0].mxu0
  %1034 = vmatprep.mubr.f32.mxu0 0.0
  %1035 = vmatmul.mubr.f32.gmra.mrb[0].mxu0 %v352
  %v1036 = vpop.f32.mrb[0].mxu0
  %v1037 = vadd.f32 0.0, %v1036
  %v1038 = vpop.f32.mrb[0].mxu0
  %1039 = vmatprep.mubr.f32.mxu0 0.0
  %1040 = vmatmul.mubr.f32.gmra.mrb[0].mxu0 %v355
  %v1041 = vpop.f32.mrb[0].mxu0
  %v1042 = vadd.f32 0.0, %v1041
  %v1043 = vpop.f32.mrb[0].mxu0
  %1044 = vmatprep.mubr.f32.mxu0 0.0
  %1045 = vmatmul.mubr.f32.gmra.mrb[0].mxu0 %v358
  %v1046 = vpop.f32.mrb[0].mxu0
  %v1047 = vadd.f32 0.0, %v1046
  %v1048 = vpop.f32.mrb[0].mxu0
  %1049 = vmatprep.mubr.f32.mxu0 0.0
  %1050 = vmatmul.mubr.f32.gmra.mrb[0].mxu0 %v361
  %v1051 = vpop.f32.mrb[0].mxu0
  %v1052 = vadd.f32 0.0, %v1051
  %v1053 = vpop.f32.mrb[0].mxu0
  %1054 = vmatprep.mubr.f32.mxu0 0.0
  %1055 = vmatmul.mubr.f32.gmra.mrb[0].mxu0 %v364
  %v1056 = vpop.f32.mrb[0].mxu0
  %v1057 = vadd.f32 0.0, %v1056
  %v1058 = vpop.f32.mrb[0].mxu0
  %1059 = vmatprep.mubr.f32.mxu0 0.0
  %1060 = vmatmul.mubr.f32.gmra.mrb[0].mxu0 %v367
  %v1061 = vpop.f32.mrb[0].mxu0
  %v1062 = vadd.f32 0.0, %v1061
  %v1063 = vpop.f32.mrb[0].mxu0
  %1064 = vmatprep.mubr.f32.mxu0 0.0
  %1065 = vmatmul.mubr.f32.gmra.mrb[0].mxu0 %v370
  %v1066 = vpop.f32.mrb[0].mxu0
  %v1067 = vadd.f32 0.0, %v1066
  %v1068 = vpop.f32.mrb[0].mxu0
  %1069 = vmatprep.mubr.f32.mxu0 0.0
  %1070 = vmatmul.mubr.f32.gmra.mrb[0].mxu0 %v373
  %v1071 = vpop.f32.mrb[0].mxu0
  %v1072 = vadd.f32 0.0, %v1071
  %v1073 = vpop.f32.mrb[0].mxu0
  %1074 = vmatprep.mubr.f32.mxu0 0.0
  %1075 = vmatmul.mubr.f32.gmra.mrb[0].mxu0 %v376
  %v1076 = vpop.f32.mrb[0].mxu0
  %v1077 = vadd.f32 0.0, %v1076
  %v1078 = vpop.f32.mrb[0].mxu0
  %1079 = vmatprep.mubr.f32.mxu0 0.0
  %1080 = vmatmul.mubr.f32.gmra.mrb[0].mxu0 %v379
  %v1081 = vpop.f32.mrb[0].mxu0
  %v1082 = vadd.f32 0.0, %v1081
  %v1083 = vpop.f32.mrb[0].mxu0
  %1084 = vmatprep.mubr.f32.mxu0 0.0
  %1085 = vmatmul.mubr.f32.gmra.mrb[0].mxu0 %v382
  %v1086 = vpop.f32.mrb[0].mxu0
  %v1087 = vadd.f32 0.0, %v1086
  %v1088 = vpop.f32.mrb[0].mxu0
  %1089 = vmatprep.mubr.f32.mxu0 0.0
  %1090 = vmatmul.mubr.f32.gmra.mrb[0].mxu0 %v385
  %v1091 = vpop.f32.mrb[0].mxu0
  %v1092 = vadd.f32 0.0, %v1091
  %v1093 = vpop.f32.mrb[0].mxu0
  %1094 = vmatprep.mubr.f32.mxu0 0.0
  %1095 = vmatmul.mubr.f32.gmra.mrb[0].mxu0 %v388
  %v1096 = vpop.f32.mrb[0].mxu0
  %v1097 = vadd.f32 0.0, %v1096
  %v1098 = vpop.f32.mrb[0].mxu0
  %1099 = vmatprep.mubr.f32.mxu0 0.0
  %1100 = vmatmul.mubr.f32.gmra.mrb[0].mxu0 %v391
  %v1101 = vpop.f32.mrb[0].mxu0
  %v1102 = vadd.f32 0.0, %v1101
  %v1103 = vpop.f32.mrb[0].mxu0
  %1104 = vmatprep.mubr.f32.mxu0 0.0
  %1105 = vmatmul.mubr.f32.gmra.mrb[0].mxu0 %v394
  %v1106 = vpop.f32.mrb[0].mxu0
  %v1107 = vadd.f32 0.0, %v1106
  %v1108 = vpop.f32.mrb[0].mxu0
  %1109 = vmatprep.mubr.f32.mxu0 0.0
  %1110 = vmatmul.mubr.f32.gmra.mrb[0].mxu0 %v397
  %v1111 = vpop.f32.mrb[0].mxu0
  %v1112 = vadd.f32 0.0, %v1111
  %v1113 = vpop.f32.mrb[0].mxu0
  %1114 = vmatprep.mubr.f32.mxu0 0.0
  %1115 = vmatmul.mubr.f32.gmra.mrb[0].mxu0 %v400
  %v1116 = vpop.f32.mrb[0].mxu0
  %v1117 = vadd.f32 0.0, %v1116
  %v1118 = vpop.f32.mrb[0].mxu0
  %1119 = vmatprep.mubr.f32.mxu0 0.0
  %1120 = vmatmul.mubr.f32.gmra.mrb[0].mxu0 %v403
  %v1121 = vpop.f32.mrb[0].mxu0
  %v1122 = vadd.f32 0.0, %v1121
  %v1123 = vpop.f32.mrb[0].mxu0
  %1124 = vmatprep.mubr.f32.mxu0 0.0
  %1125 = vmatmul.mubr.f32.gmra.mrb[0].mxu0 %v406
  %v1126 = vpop.f32.mrb[0].mxu0
  %v1127 = vadd.f32 0.0, %v1126
  %v1128 = vpop.f32.mrb[0].mxu0
  %1129 = vmatprep.mubr.f32.mxu0 0.0
  %1130 = vmatmul.mubr.f32.gmra.mrb[0].mxu0 %v409
  %v1131 = vpop.f32.mrb[0].mxu0
  %v1132 = vadd.f32 0.0, %v1131
  %v1133 = vpop.f32.mrb[0].mxu0
  %1134 = vmatprep.mubr.f32.mxu0 0.0
  %1135 = vmatmul.mubr.f32.gmra.mrb[0].mxu0 %v412
  %v1136 = vpop.f32.mrb[0].mxu0
  %v1137 = vadd.f32 0.0, %v1136
  %v1138 = vpop.f32.mrb[0].mxu0
  %1139 = vmatprep.mubr.f32.mxu0 0.0
  %1140 = vmatmul.mubr.f32.gmra.mrb[0].mxu0 %v415
  %v1141 = vpop.f32.mrb[0].mxu0
  %v1142 = vadd.f32 0.0, %v1141
  %v1143 = vpop.f32.mrb[0].mxu0
  %1144 = vmatprep.mubr.f32.mxu0 0.0
  %1145 = vmatmul.mubr.f32.gmra.mrb[0].mxu0 %v418
  %v1146 = vpop.f32.mrb[0].mxu0
  %v1147 = vadd.f32 0.0, %v1146
  %v1148 = vpop.f32.mrb[0].mxu0
  %1149 = vmatprep.mubr.f32.mxu0 0.0
  %1150 = vmatmul.mubr.f32.gmra.mrb[0].mxu0 %v421
  %v1151 = vpop.f32.mrb[0].mxu0
  %v1152 = vadd.f32 0.0, %v1151
  %v1153 = vpop.f32.mrb[0].mxu0
  %1154 = vmatprep.mubr.f32.mxu0 0.0
  %1155 = vmatmul.mubr.f32.gmra.mrb[0].mxu0 %v424
  %v1156 = vpop.f32.mrb[0].mxu0
  %v1157 = vadd.f32 0.0, %v1156
  %v1158 = vpop.f32.mrb[0].mxu0
  %1159 = vmatprep.mubr.f32.mxu0 0.0
  %1160 = vmatmul.mubr.f32.gmra.mrb[0].mxu0 %v427
  %v1161 = vpop.f32.mrb[0].mxu0
  %v1162 = vadd.f32 0.0, %v1161
  %v1163 = vpop.f32.mrb[0].mxu0
  %1164 = vmatprep.mubr.f32.mxu0 0.0
  %1165 = vmatmul.mubr.f32.gmra.mrb[0].mxu0 %v430
  %v1166 = vpop.f32.mrb[0].mxu0
  %v1167 = vadd.f32 0.0, %v1166
  %v1168 = vpop.f32.mrb[0].mxu0
  %1169 = vmatprep.mubr.f32.mxu0 0.0
  %1170 = vmatmul.mubr.f32.gmra.mrb[0].mxu0 %v433
  %v1171 = vpop.f32.mrb[0].mxu0
  %v1172 = vadd.f32 0.0, %v1171
  %v1173 = vpop.f32.mrb[0].mxu0
  %1174 = vmatprep.mubr.f32.mxu0 0.0
  %1175 = vmatmul.mubr.f32.gmra.mrb[0].mxu0 %v436
  %v1176 = vpop.f32.mrb[0].mxu0
  %v1177 = vadd.f32 0.0, %v1176
  %v1178 = vpop.f32.mrb[0].mxu0
  %1179 = vmatprep.mubr.f32.mxu0 0.0
  %1180 = vmatmul.mubr.f32.gmra.mrb[0].mxu0 %v439
  %v1181 = vpop.f32.mrb[0].mxu0
  %v1182 = vadd.f32 0.0, %v1181
  %v1183 = vpop.f32.mrb[0].mxu0
  %1184 = vmatprep.mubr.f32.mxu0 0.0
  %1185 = vmatmul.mubr.f32.gmra.mrb[0].mxu0 %v442
  %v1186 = vpop.f32.mrb[0].mxu0
  %v1187 = vadd.f32 0.0, %v1186
  %v1188 = vpop.f32.mrb[0].mxu0
  %1189 = vmatprep.mubr.f32.mxu0 0.0
  %1190 = vmatmul.mubr.f32.gmra.mrb[0].mxu0 %v445
  %v1191 = vpop.f32.mrb[0].mxu0
  %v1192 = vadd.f32 0.0, %v1191
  %v1193 = vpop.f32.mrb[0].mxu0
  %1194 = vmatprep.mubr.f32.mxu0 0.0
  %1195 = vmatmul.mubr.f32.gmra.mrb[0].mxu0 %v448
  %v1196 = vpop.f32.mrb[0].mxu0
  %v1197 = vadd.f32 0.0, %v1196
  %v1198 = vpop.f32.mrb[0].mxu0
  %1199 = vmatprep.mubr.f32.mxu0 0.0
  %1200 = vmatmul.mubr.f32.gmra.mrb[0].mxu0 %v451
  %v1201 = vpop.f32.mrb[0].mxu0
  %v1202 = vadd.f32 0.0, %v1201
  %v1203 = vpop.f32.mrb[0].mxu0
  %1204 = vmatprep.mubr.f32.mxu0 0.0
  %1205 = vmatmul.mubr.f32.gmra.mrb[0].mxu0 %v454
  %v1206 = vpop.f32.mrb[0].mxu0
  %v1207 = vadd.f32 0.0, %v1206
  %v1208 = vpop.f32.mrb[0].mxu0
  %1209 = vmatprep.mubr.f32.mxu0 0.0
  %1210 = vmatmul.mubr.f32.gmra.mrb[0].mxu0 %v457
  %v1211 = vpop.f32.mrb[0].mxu0
  %v1212 = vadd.f32 0.0, %v1211
  %v1213 = vpop.f32.mrb[0].mxu0
  %1214 = vmatprep.mubr.f32.mxu0 0.0
  %1215 = vmatmul.mubr.f32.gmra.mrb[0].mxu0 %v460
  %v1216 = vpop.f32.mrb[0].mxu0
  %v1217 = vadd.f32 0.0, %v1216
  %v1218 = vpop.f32.mrb[0].mxu0
  %1219 = vmatprep.mubr.f32.mxu0 0.0
  %1220 = vmatmul.mubr.f32.gmra.mrb[0].mxu0 %v463
  %v1221 = vpop.f32.mrb[0].mxu0
  %v1222 = vadd.f32 0.0, %v1221
  %v1223 = vpop.f32.mrb[0].mxu0
  %1224 = vmatprep.mubr.f32.mxu0 0.0
  %1225 = vmatmul.mubr.f32.gmra.mrb[0].mxu0 %v466
  %v1226 = vpop.f32.mrb[0].mxu0
  %v1227 = vadd.f32 0.0, %v1226
  %v1228 = vpop.f32.mrb[0].mxu0
  %1229 = vmatprep.mubr.f32.mxu0 0.0
  %1230 = vmatmul.mubr.f32.gmra.mrb[0].mxu0 %v469
  %v1231 = vpop.f32.mrb[0].mxu0
  %v1232 = vadd.f32 0.0, %v1231
  %v1233 = vpop.f32.mrb[0].mxu0
  %1234 = vmatprep.mubr.f32.mxu0 0.0
  %1235 = vmatmul.mubr.f32.gmra.mrb[0].mxu0 %v472
  %v1236 = vpop.f32.mrb[0].mxu0
  %v1237 = vadd.f32 0.0, %v1236
  %v1238 = vpop.f32.mrb[0].mxu0
  %1239 = vmatprep.mubr.f32.mxu0 0.0
  %1240 = vmatmul.mubr.f32.gmra.mrb[0].mxu0 %v475
  %v1241 = vpop.f32.mrb[0].mxu0
  %v1242 = vadd.f32 0.0, %v1241
  %v1243 = vpop.f32.mrb[0].mxu0
  %1244 = vmatprep.mubr.f32.mxu0 0.0
  %1245 = vmatmul.mubr.f32.gmra.mrb[0].mxu0 %v478
  %v1246 = vpop.f32.mrb[0].mxu0
  %v1247 = vadd.f32 0.0, %v1246
  %v1248 = vpop.f32.mrb[0].mxu0
  %1249 = vmatprep.mubr.f32.mxu0 0.0
  %1250 = vmatmul.mubr.f32.gmra.mrb[0].mxu0 %v481
  %v1251 = vpop.f32.mrb[0].mxu0
  %v1252 = vadd.f32 0.0, %v1251
  %v1253 = vpop.f32.mrb[0].mxu0
  %1254 = vmatprep.mubr.f32.mxu0 0.0
  %1255 = vmatmul.mubr.f32.gmra.mrb[0].mxu0 %v484
  %v1256 = vpop.f32.mrb[0].mxu0
  %v1257 = vadd.f32 0.0, %v1256
  %v1258 = vpop.f32.mrb[0].mxu0
  %1259 = vmatprep.mubr.f32.mxu0 0.0
  %1260 = vmatmul.mubr.f32.gmra.mrb[0].mxu0 %v487
  %v1261 = vpop.f32.mrb[0].mxu0
  %v1262 = vadd.f32 0.0, %v1261
  %v1263 = vpop.f32.mrb[0].mxu0
  %1264 = vmatprep.mubr.f32.mxu0 0.0
  %1265 = vmatmul.mubr.f32.gmra.mrb[0].mxu0 %v490
  %v1266 = vpop.f32.mrb[0].mxu0
  %v1267 = vadd.f32 0.0, %v1266
  %v1268 = vpop.f32.mrb[0].mxu0
  %1269 = vmatprep.mubr.f32.mxu0 0.0
  %1270 = vmatmul.mubr.f32.gmra.mrb[0].mxu0 %v493
  %v1271 = vpop.f32.mrb[0].mxu0
  %v1272 = vadd.f32 0.0, %v1271
  %v1273 = vpop.f32.mrb[0].mxu0
  %1274 = vmatprep.mubr.f32.mxu0 0.0
  %1275 = vmatmul.mubr.f32.gmra.mrb[0].mxu0 %v496
  %v1276 = vpop.f32.mrb[0].mxu0
  %v1277 = vadd.f32 0.0, %v1276
  %v1278 = vpop.f32.mrb[0].mxu0
  %1279 = vmatprep.mubr.f32.mxu0 0.0
  %1280 = vmatmul.mubr.f32.gmra.mrb[0].mxu0 %v499
  %v1281 = vpop.f32.mrb[0].mxu0
  %v1282 = vadd.f32 0.0, %v1281
  %v1283 = vpop.f32.mrb[0].mxu0
  %1284 = vmatprep.mubr.f32.mxu0 0.0
  %1285 = vmatmul.mubr.f32.gmra.mrb[0].mxu0 %v502
  %v1286 = vpop.f32.mrb[0].mxu0
  %v1287 = vadd.f32 0.0, %v1286
  %v1288 = vpop.f32.mrb[0].mxu0
  %1289 = vmatprep.mubr.f32.mxu0 0.0
  %1290 = vmatmul.mubr.f32.gmra.mrb[0].mxu0 %v505
  %v1291 = vpop.f32.mrb[0].mxu0
  %v1292 = vadd.f32 0.0, %v1291
  %v1293 = vpop.f32.mrb[0].mxu0
  %1294 = vmatprep.mubr.f32.mxu0 0.0
  %1295 = vmatmul.mubr.f32.gmra.mrb[0].mxu0 %v508
  %v1296 = vpop.f32.mrb[0].mxu0
  %v1297 = vadd.f32 0.0, %v1296
  %v1298 = vpop.f32.mrb[0].mxu0
  %1299 = vmatprep.mubr.f32.mxu0 0.0
  %1300 = vmatmul.mubr.f32.gmra.mrb[0].mxu0 %v511
  %v1301 = vpop.f32.mrb[0].mxu0
  %v1302 = vadd.f32 0.0, %v1301
  %v1303 = vpop.f32.mrb[0].mxu0
  %1304 = vmatprep.mubr.f32.mxu0 0.0
  %1305 = vmatmul.mubr.f32.gmra.mrb[0].mxu0 %v514
  %v1306 = vpop.f32.mrb[0].mxu0
  %v1307 = vadd.f32 0.0, %v1306
  %v1308 = vpop.f32.mrb[0].mxu0
  %1309 = vmatprep.mubr.f32.mxu0 0.0
  %1310 = vmatmul.mubr.f32.gmra.mrb[0].mxu0 %v517
  %v1311 = vpop.f32.mrb[0].mxu0
  %v1312 = vadd.f32 0.0, %v1311
  %v1313 = vpop.f32.mrb[0].mxu0
  %1314 = vmatprep.mubr.f32.mxu0 0.0
  %1315 = vmatmul.mubr.f32.gmra.mrb[0].mxu0 %v520
  %v1316 = vpop.f32.mrb[0].mxu0
  %v1317 = vadd.f32 0.0, %v1316
  %v1318 = vpop.f32.mrb[0].mxu0
  %1319 = vmatprep.mubr.f32.mxu0 0.0
  %1320 = vmatmul.mubr.f32.gmra.mrb[0].mxu0 %v523
  %v1321 = vpop.f32.mrb[0].mxu0
  %v1322 = vadd.f32 0.0, %v1321
  %v1323 = vpop.f32.mrb[0].mxu0
  %1324 = vmatprep.mubr.f32.mxu0 0.0
  %1325 = vmatmul.mubr.f32.gmra.mrb[0].mxu0 %v526
  %v1326 = vpop.f32.mrb[0].mxu0
  %v1327 = vadd.f32 0.0, %v1326
  %v1328 = vpop.f32.mrb[0].mxu0
  %1329 = vmatprep.mubr.f32.mxu0 0.0
  %1330 = vmatmul.mubr.f32.gmra.mrb[0].mxu0 %v529
  %v1331 = vpop.f32.mrb[0].mxu0
  %v1332 = vadd.f32 0.0, %v1331
  %v1333 = vpop.f32.mrb[0].mxu0
  %1334 = vmatprep.mubr.f32.mxu0 0.0
  %1335 = vmatmul.mubr.f32.gmra.mrb[0].mxu0 %v532
  %v1336 = vpop.f32.mrb[0].mxu0
  %v1337 = vadd.f32 0.0, %v1336
  %v1338 = vpop.f32.mrb[0].mxu0
  %1339 = vmatprep.mubr.f32.mxu0 0.0
  %1340 = vmatmul.mubr.f32.gmra.mrb[0].mxu0 %v535
  %v1341 = vpop.f32.mrb[0].mxu0
  %v1342 = vadd.f32 0.0, %v1341
  %v1343 = vpop.f32.mrb[0].mxu0
  %1344 = vmatprep.mubr.f32.mxu0 0.0
  %1345 = vmatmul.mubr.f32.gmra.mrb[0].mxu0 %v538
  %v1346 = vpop.f32.mrb[0].mxu0
  %v1347 = vadd.f32 0.0, %v1346
  %v1348 = vpop.f32.mrb[0].mxu0
  %1349 = vmatprep.mubr.f32.mxu0 0.0
  %1350 = vmatmul.mubr.f32.gmra.mrb[0].mxu0 %v541
  %v1351 = vpop.f32.mrb[0].mxu0
  %v1352 = vadd.f32 0.0, %v1351
  %v1353 = vpop.f32.mrb[0].mxu0
  %1354 = vmatprep.mubr.f32.mxu0 0.0
  %1355 = vmatmul.mubr.f32.gmra.mrb[0].mxu0 %v544
  %v1356 = vpop.f32.mrb[0].mxu0
  %v1357 = vadd.f32 0.0, %v1356
  %v1358 = vpop.f32.mrb[0].mxu0
  %1359 = vmatprep.mubr.f32.mxu0 0.0
  %1360 = vmatmul.mubr.f32.gmra.mrb[0].mxu0 %v547
  %v1361 = vpop.f32.mrb[0].mxu0
  %v1362 = vadd.f32 0.0, %v1361
  %v1363 = vpop.f32.mrb[0].mxu0
  %1364 = vmatprep.mubr.f32.mxu0 0.0
  %1365 = vmatmul.mubr.f32.gmra.mrb[0].mxu0 %v550
  %v1366 = vpop.f32.mrb[0].mxu0
  %v1367 = vadd.f32 0.0, %v1366
  %v1368 = vpop.f32.mrb[0].mxu0
  %1369 = vmatprep.mubr.f32.mxu0 0.0
  %1370 = vmatmul.mubr.f32.gmra.mrb[0].mxu0 %v553
  %v1371 = vpop.f32.mrb[0].mxu0
  %v1372 = vadd.f32 0.0, %v1371
  %v1373 = vpop.f32.mrb[0].mxu0
  %1374 = vmatprep.mubr.f32.mxu0 0.0
  %1375 = vmatmul.mubr.f32.gmra.mrb[0].mxu0 %v556
  %v1376 = vpop.f32.mrb[0].mxu0
  %v1377 = vadd.f32 0.0, %v1376
  %v1378 = vpop.f32.mrb[0].mxu0
  %1379 = vmatprep.mubr.f32.mxu0 0.0
  %1380 = vmatmul.mubr.f32.gmra.mrb[0].mxu0 %v559
  %v1381 = vpop.f32.mrb[0].mxu0
  %v1382 = vadd.f32 0.0, %v1381
  %v1383 = vpop.f32.mrb[0].mxu0
  %1384 = vmatprep.mubr.f32.mxu0 0.0
  %1385 = vmatmul.mubr.f32.gmra.mrb[0].mxu0 %v562
  %v1386 = vpop.f32.mrb[0].mxu0
  %v1387 = vadd.f32 0.0, %v1386
  %v1388 = vpop.f32.mrb[0].mxu0
  %1389 = vmatprep.mubr.f32.mxu0 0.0
  %1390 = vmatmul.mubr.f32.gmra.mrb[0].mxu0 %v565
  %v1391 = vpop.f32.mrb[0].mxu0
  %v1392 = vadd.f32 0.0, %v1391
  %v1393 = vpop.f32.mrb[0].mxu0
  %1394 = vmatprep.mubr.f32.mxu0 0.0
  %1395 = vmatmul.mubr.f32.gmra.mrb[0].mxu0 %v568
  %v1396 = vpop.f32.mrb[0].mxu0
  %v1397 = vadd.f32 0.0, %v1396
  %v1398 = vpop.f32.mrb[0].mxu0
  %1399 = vmatprep.mubr.f32.mxu0 0.0
  %1400 = vmatmul.mubr.f32.gmra.mrb[0].mxu0 %v571
  %v1401 = vpop.f32.mrb[0].mxu0
  %v1402 = vadd.f32 0.0, %v1401
  %v1403 = vpop.f32.mrb[0].mxu0
  %1404 = vmatprep.mubr.f32.mxu0 0.0
  %1405 = vmatmul.mubr.f32.gmra.mrb[0].mxu0 %v574
  %v1406 = vpop.f32.mrb[0].mxu0
  %v1407 = vadd.f32 0.0, %v1406
  %v1408 = vpop.f32.mrb[0].mxu0
  %1409 = vmatprep.mubr.f32.mxu0 0.0
  %1410 = vmatmul.mubr.f32.gmra.mrb[0].mxu0 %v577
  %v1411 = vpop.f32.mrb[0].mxu0
  %v1412 = vadd.f32 0.0, %v1411
  %v1413 = vpop.f32.mrb[0].mxu0
  %1414 = vmatprep.mubr.f32.mxu0 0.0
  %1415 = vmatmul.mubr.f32.gmra.mrb[0].mxu0 %v580
  %v1416 = vpop.f32.mrb[0].mxu0
  %v1417 = vadd.f32 0.0, %v1416
  %v1418 = vpop.f32.mrb[0].mxu0
  %1419 = vmatprep.mubr.f32.mxu0 0.0
  %1420 = vmatmul.mubr.f32.gmra.mrb[0].mxu0 %v583
  %v1421 = vpop.f32.mrb[0].mxu0
  %v1422 = vadd.f32 0.0, %v1421
  %v1423 = vpop.f32.mrb[0].mxu0
  %1424 = vmatprep.mubr.f32.mxu0 0.0
  %1425 = vmatmul.mubr.f32.gmra.mrb[0].mxu0 %v586
  %v1426 = vpop.f32.mrb[0].mxu0
  %v1427 = vadd.f32 0.0, %v1426
  %v1428 = vpop.f32.mrb[0].mxu0
  %1429 = vmatprep.mubr.f32.mxu0 0.0
  %1430 = vmatmul.mubr.f32.gmra.mrb[0].mxu0 %v589
  %v1431 = vpop.f32.mrb[0].mxu0
  %v1432 = vadd.f32 0.0, %v1431
  %v1433 = vpop.f32.mrb[0].mxu0
  %1434 = vmatprep.mubr.f32.mxu0 0.0
  %1435 = vmatmul.mubr.f32.gmra.mrb[0].mxu0 %v592
  %v1436 = vpop.f32.mrb[0].mxu0
  %v1437 = vadd.f32 0.0, %v1436
  %v1438 = vpop.f32.mrb[0].mxu0
  %1439 = vmatprep.mubr.f32.mxu0 0.0
  %1440 = vmatmul.mubr.f32.gmra.mrb[0].mxu0 %v595
  %v1441 = vpop.f32.mrb[0].mxu0
  %v1442 = vadd.f32 0.0, %v1441
  %v1443 = vpop.f32.mrb[0].mxu0
  %1444 = vmatprep.mubr.f32.mxu0 0.0
  %1445 = vmatmul.mubr.f32.gmra.mrb[0].mxu0 %v598
  %v1446 = vpop.f32.mrb[0].mxu0
  %v1447 = vadd.f32 0.0, %v1446
  %v1448 = vpop.f32.mrb[0].mxu0
  %1449 = vmatprep.mubr.f32.mxu0 0.0
  %1450 = vmatmul.mubr.f32.gmra.mrb[0].mxu0 %v601
  %v1451 = vpop.f32.mrb[0].mxu0
  %v1452 = vadd.f32 0.0, %v1451
  %v1453 = vpop.f32.mrb[0].mxu0
  %1454 = vmatprep.mubr.f32.mxu0 0.0
  %1455 = vmatmul.mubr.f32.gmra.mrb[0].mxu0 %v604
  %v1456 = vpop.f32.mrb[0].mxu0
  %v1457 = vadd.f32 0.0, %v1456
  %v1458 = vpop.f32.mrb[0].mxu0
  %1459 = vmatprep.mubr.f32.mxu0 0.0
  %1460 = vmatmul.mubr.f32.gmra.mrb[0].mxu0 %v607
  %v1461 = vpop.f32.mrb[0].mxu0
  %v1462 = vadd.f32 0.0, %v1461
  %v1463 = vpop.f32.mrb[0].mxu0
  %1464 = vmatprep.mubr.f32.mxu0 0.0
  %1465 = vmatmul.mubr.f32.gmra.mrb[0].mxu0 %v610
  %v1466 = vpop.f32.mrb[0].mxu0
  %v1467 = vadd.f32 0.0, %v1466
  %v1468 = vpop.f32.mrb[0].mxu0
  %1469 = vmatprep.mubr.f32.mxu0 0.0
  %1470 = vmatmul.mubr.f32.gmra.mrb[0].mxu0 %v613
  %v1471 = vpop.f32.mrb[0].mxu0
  %v1472 = vadd.f32 0.0, %v1471
  %v1473 = vpop.f32.mrb[0].mxu0
  %1474 = vmatprep.mubr.f32.mxu0 0.0
  %1475 = vmatmul.mubr.f32.gmra.mrb[0].mxu0 %v616
  %v1476 = vpop.f32.mrb[0].mxu0
  %v1477 = vadd.f32 0.0, %v1476
  %v1478 = vpop.f32.mrb[0].mxu0
  %1479 = vmatprep.mubr.f32.mxu0 0.0
  %1480 = vmatmul.mubr.f32.gmra.mrb[0].mxu0 %v619
  %v1481 = vpop.f32.mrb[0].mxu0
  %v1482 = vadd.f32 0.0, %v1481
  %v1483 = vpop.f32.mrb[0].mxu0
  %1484 = vmatprep.mubr.f32.mxu0 0.0
  %1485 = vmatmul.mubr.f32.gmra.mrb[0].mxu0 %v622
  %v1486 = vpop.f32.mrb[0].mxu0
  %v1487 = vadd.f32 0.0, %v1486
  %v1488 = vpop.f32.mrb[0].mxu0
  %1489 = vmatprep.mubr.f32.mxu0 0.0
  %1490 = vmatmul.mubr.f32.gmra.mrb[0].mxu0 %v625
  %v1491 = vpop.f32.mrb[0].mxu0
  %v1492 = vadd.f32 0.0, %v1491
  %v1493 = vpop.f32.mrb[0].mxu0
  %1494 = vmatprep.mubr.f32.mxu0 0.0
  %1495 = vmatmul.mubr.f32.gmra.mrb[0].mxu0 %v628
  %v1496 = vpop.f32.mrb[0].mxu0
  %v1497 = vadd.f32 0.0, %v1496
  %v1498 = vpop.f32.mrb[0].mxu0
  %1499 = vmatprep.mubr.f32.mxu0 0.0
  %1500 = vmatmul.mubr.f32.gmra.mrb[0].mxu0 %v631
  %v1501 = vpop.f32.mrb[0].mxu0
  %v1502 = vadd.f32 0.0, %v1501
  %v1503 = vpop.f32.mrb[0].mxu0
  %1504 = vmatprep.mubr.f32.mxu0 0.0
  %1505 = vmatmul.mubr.f32.gmra.mrb[0].mxu0 %v634
  %v1506 = vpop.f32.mrb[0].mxu0
  %v1507 = vadd.f32 0.0, %v1506
  %v1508 = vpop.f32.mrb[0].mxu0
  %1509 = vmatprep.mubr.f32.mxu0 0.0
  %1510 = vmatmul.mubr.f32.gmra.mrb[0].mxu0 %v637
  %v1511 = vpop.f32.mrb[0].mxu0
  %v1512 = vadd.f32 0.0, %v1511
  %v1513 = vpop.f32.mrb[0].mxu0
  %1514 = vmatprep.mubr.f32.mxu0 0.0
  %1515 = vmatmul.mubr.f32.gmra.mrb[0].mxu0 %v640
  %v1516 = vpop.f32.mrb[0].mxu0
  %v1517 = vadd.f32 0.0, %v1516
  %v1518 = vpop.f32.mrb[0].mxu0
  %1519 = vmatprep.mubr.f32.mxu0 0.0
  %1520 = vmatmul.mubr.f32.gmra.mrb[0].mxu0 %v643
  %v1521 = vpop.f32.mrb[0].mxu0
  %v1522 = vadd.f32 0.0, %v1521
  %v1523 = vpop.f32.mrb[0].mxu0
  %1524 = vmatprep.mubr.f32.mxu0 0.0
  %1525 = vmatmul.mubr.f32.gmra.mrb[0].mxu0 %v646
  %v1526 = vpop.f32.mrb[0].mxu0
  %v1527 = vadd.f32 0.0, %v1526
  %v1528 = vpop.f32.mrb[0].mxu0
  %1529 = vmatprep.mubr.f32.mxu0 0.0
  %1530 = vmatmul.mubr.f32.gmra.mrb[0].mxu0 %v649
  %v1531 = vpop.f32.mrb[0].mxu0
  %v1532 = vadd.f32 0.0, %v1531
  %v1533 = vpop.f32.mrb[0].mxu0
  %1534 = vmatprep.mubr.f32.mxu0 0.0
  %1535 = vmatmul.mubr.f32.gmra.mrb[0].mxu0 %v652
  %v1536 = vpop.f32.mrb[0].mxu0
  %v1537 = vadd.f32 0.0, %v1536
  %v1538 = vpop.f32.mrb[0].mxu0
  %1539 = vmatprep.mubr.f32.mxu0 0.0
  %1540 = vmatmul.mubr.f32.gmra.mrb[0].mxu0 %v655
  %v1541 = vpop.f32.mrb[0].mxu0
  %v1542 = vadd.f32 0.0, %v1541
  %v1543 = vpop.f32.mrb[0].mxu0
  %1544 = vmatprep.mubr.f32.mxu0 0.0
  %1545 = vmatmul.mubr.f32.gmra.mrb[0].mxu0 %v658
  %v1546 = vpop.f32.mrb[0].mxu0
  %v1547 = vadd.f32 0.0, %v1546
  %v1548 = vpop.f32.mrb[0].mxu0
  %1549 = vmatprep.mubr.f32.mxu0 0.0
  %1550 = vmatmul.mubr.f32.gmra.mrb[0].mxu0 %v661
  %v1551 = vpop.f32.mrb[0].mxu0
  %v1552 = vadd.f32 0.0, %v1551
  %v1553 = vpop.f32.mrb[0].mxu0
  %1554 = vmatprep.mubr.f32.mxu0 0.0
  %1555 = vmatmul.mubr.f32.gmra.mrb[0].mxu0 %v664
  %v1556 = vpop.f32.mrb[0].mxu0
  %v1557 = vadd.f32 0.0, %v1556
  %v1558 = vpop.f32.mrb[0].mxu0
  %1559 = vmatprep.mubr.f32.mxu0 0.0
  %1560 = vmatmul.mubr.f32.gmra.mrb[0].mxu0 %v667
  %v1561 = vpop.f32.mrb[0].mxu0
  %v1562 = vadd.f32 0.0, %v1561
  %v1563 = vpop.f32.mrb[0].mxu0
  %1564 = vmatprep.mubr.f32.mxu0 0.0
  %1565 = vmatmul.mubr.f32.gmra.mrb[0].mxu0 %v670
  %v1566 = vpop.f32.mrb[0].mxu0
  %v1567 = vadd.f32 0.0, %v1566
  %v1568 = vpop.f32.mrb[0].mxu0
  %1569 = vmatprep.mubr.f32.mxu0 0.0
  %1570 = vmatmul.mubr.f32.gmra.mrb[0].mxu0 %v673
  %v1571 = vpop.f32.mrb[0].mxu0
  %v1572 = vadd.f32 0.0, %v1571
  %v1573 = vpop.f32.mrb[0].mxu0
  %1574 = vmatprep.mubr.f32.mxu0 0.0
  %1575 = vmatmul.mubr.f32.gmra.mrb[0].mxu0 %v676
  %v1576 = vpop.f32.mrb[0].mxu0
  %v1577 = vadd.f32 0.0, %v1576
  %v1578 = vpop.f32.mrb[0].mxu0
  %1579 = vmatprep.mubr.f32.mxu0 0.0
  %1580 = vmatmul.mubr.f32.gmra.mrb[0].mxu0 %v679
  %v1581 = vpop.f32.mrb[0].mxu0
  %v1582 = vadd.f32 0.0, %v1581
  %v1583 = vpop.f32.mrb[0].mxu0
  %1584 = vmatprep.mubr.f32.mxu0 0.0
  %1585 = vmatmul.mubr.f32.gmra.mrb[0].mxu0 %v682
  %v1586 = vpop.f32.mrb[0].mxu0
  %v1587 = vadd.f32 0.0, %v1586
  %v1588 = vpop.f32.mrb[0].mxu0
  %1589 = vmatprep.mubr.f32.mxu0 0.0
  %1590 = vmatmul.mubr.f32.gmra.mrb[0].mxu0 %v685
  %v1591 = vpop.f32.mrb[0].mxu0
  %v1592 = vadd.f32 0.0, %v1591
  %v1593 = vpop.f32.mrb[0].mxu0
  %1594 = vmatprep.mubr.f32.mxu0 0.0
  %1595 = vmatmul.mubr.f32.gmra.mrb[0].mxu0 %v688
  %v1596 = vpop.f32.mrb[0].mxu0
  %v1597 = vadd.f32 0.0, %v1596
  %v1598 = vpop.f32.mrb[0].mxu0
  %1599 = vdwg.mxu0
  %vm1600 = vcmp.gt.f32.partialorder %v757, 0.0
  %vm1601 = vcmp.gt.f32.partialorder %v762, 0.0
  %vm1602 = vcmp.gt.f32.partialorder %v767, 0.0
  %vm1603 = vcmp.gt.f32.partialorder %v772, 0.0
  %vm1604 = vcmp.gt.f32.partialorder %v777, 0.0
  %vm1605 = vcmp.gt.f32.partialorder %v782, 0.0
  %vm1606 = vcmp.gt.f32.partialorder %v787, 0.0
  %vm1607 = vcmp.gt.f32.partialorder %v792, 0.0
  %vm1608 = vcmp.gt.f32.partialorder %v797, 0.0
  %vm1609 = vcmp.gt.f32.partialorder %v802, 0.0
  %vm1610 = vcmp.gt.f32.partialorder %v807, 0.0
  %vm1611 = vcmp.gt.f32.partialorder %v812, 0.0
  %vm1612 = vcmp.gt.f32.partialorder %v817, 0.0
  %vm1613 = vcmp.gt.f32.partialorder %v822, 0.0
  %vm1614 = vcmp.gt.f32.partialorder %v827, 0.0
  %vm1615 = vcmp.gt.f32.partialorder %v832, 0.0
  %vm1616 = vcmp.gt.f32.partialorder %v837, 0.0
  %vm1617 = vcmp.gt.f32.partialorder %v842, 0.0
  %vm1618 = vcmp.gt.f32.partialorder %v847, 0.0
  %vm1619 = vcmp.gt.f32.partialorder %v852, 0.0
  %vm1620 = vcmp.gt.f32.partialorder %v857, 0.0
  %vm1621 = vcmp.gt.f32.partialorder %v862, 0.0
  %vm1622 = vcmp.gt.f32.partialorder %v867, 0.0
  %vm1623 = vcmp.gt.f32.partialorder %v872, 0.0
  %vm1624 = vcmp.gt.f32.partialorder %v877, 0.0
  %vm1625 = vcmp.gt.f32.partialorder %v882, 0.0
  %vm1626 = vcmp.gt.f32.partialorder %v887, 0.0
  %vm1627 = vcmp.gt.f32.partialorder %v892, 0.0
  %vm1628 = vcmp.gt.f32.partialorder %v897, 0.0
  %vm1629 = vcmp.gt.f32.partialorder %v902, 0.0
  %vm1630 = vcmp.gt.f32.partialorder %v907, 0.0
  %vm1631 = vcmp.gt.f32.partialorder %v912, 0.0
  %vm1632 = vcmp.gt.f32.partialorder %v917, 0.0
  %vm1633 = vcmp.gt.f32.partialorder %v922, 0.0
  %vm1634 = vcmp.gt.f32.partialorder %v927, 0.0
  %vm1635 = vcmp.gt.f32.partialorder %v932, 0.0
  %vm1636 = vcmp.gt.f32.partialorder %v937, 0.0
  %vm1637 = vcmp.gt.f32.partialorder %v942, 0.0
  %vm1638 = vcmp.gt.f32.partialorder %v947, 0.0
  %vm1639 = vcmp.gt.f32.partialorder %v952, 0.0
  %vm1640 = vcmp.gt.f32.partialorder %v957, 0.0
  %vm1641 = vcmp.gt.f32.partialorder %v962, 0.0
  %vm1642 = vcmp.gt.f32.partialorder %v967, 0.0
  %vm1643 = vcmp.gt.f32.partialorder %v972, 0.0
  %vm1644 = vcmp.gt.f32.partialorder %v977, 0.0
  %vm1645 = vcmp.gt.f32.partialorder %v982, 0.0
  %vm1646 = vcmp.gt.f32.partialorder %v987, 0.0
  %vm1647 = vcmp.gt.f32.partialorder %v992, 0.0
  %vm1648 = vcmp.gt.f32.partialorder %v997, 0.0
  %vm1649 = vcmp.gt.f32.partialorder %v1002, 0.0
  %vm1650 = vcmp.gt.f32.partialorder %v1007, 0.0
  %vm1651 = vcmp.gt.f32.partialorder %v1012, 0.0
  %vm1652 = vcmp.gt.f32.partialorder %v1017, 0.0
  %vm1653 = vcmp.gt.f32.partialorder %v1022, 0.0
  %vm1654 = vcmp.gt.f32.partialorder %v1027, 0.0
  %vm1655 = vcmp.gt.f32.partialorder %v1032, 0.0
  %vm1656 = vcmp.gt.f32.partialorder %v1037, 0.0
  %vm1657 = vcmp.gt.f32.partialorder %v1042, 0.0
  %vm1658 = vcmp.gt.f32.partialorder %v1047, 0.0
  %vm1659 = vcmp.gt.f32.partialorder %v1052, 0.0
  %vm1660 = vcmp.gt.f32.partialorder %v1057, 0.0
  %vm1661 = vcmp.gt.f32.partialorder %v1062, 0.0
  %vm1662 = vcmp.gt.f32.partialorder %v1067, 0.0
  %vm1663 = vcmp.gt.f32.partialorder %v1072, 0.0
  %vm1664 = vcmp.gt.f32.partialorder %v1077, 0.0
  %vm1665 = vcmp.gt.f32.partialorder %v1082, 0.0
  %vm1666 = vcmp.gt.f32.partialorder %v1087, 0.0
  %vm1667 = vcmp.gt.f32.partialorder %v1092, 0.0
  %vm1668 = vcmp.gt.f32.partialorder %v1097, 0.0
  %vm1669 = vcmp.gt.f32.partialorder %v1102, 0.0
  %vm1670 = vcmp.gt.f32.partialorder %v1107, 0.0
  %vm1671 = vcmp.gt.f32.partialorder %v1112, 0.0
  %vm1672 = vcmp.gt.f32.partialorder %v1117, 0.0
  %vm1673 = vcmp.gt.f32.partialorder %v1122, 0.0
  %vm1674 = vcmp.gt.f32.partialorder %v1127, 0.0
  %vm1675 = vcmp.gt.f32.partialorder %v1132, 0.0
  %vm1676 = vcmp.gt.f32.partialorder %v1137, 0.0
  %vm1677 = vcmp.gt.f32.partialorder %v1142, 0.0
  %vm1678 = vcmp.gt.f32.partialorder %v1147, 0.0
  %vm1679 = vcmp.gt.f32.partialorder %v1152, 0.0
  %vm1680 = vcmp.gt.f32.partialorder %v1157, 0.0
  %vm1681 = vcmp.gt.f32.partialorder %v1162, 0.0
  %vm1682 = vcmp.gt.f32.partialorder %v1167, 0.0
  %vm1683 = vcmp.gt.f32.partialorder %v1172, 0.0
  %vm1684 = vcmp.gt.f32.partialorder %v1177, 0.0
  %vm1685 = vcmp.gt.f32.partialorder %v1182, 0.0
  %vm1686 = vcmp.gt.f32.partialorder %v1187, 0.0
  %vm1687 = vcmp.gt.f32.partialorder %v1192, 0.0
  %vm1688 = vcmp.gt.f32.partialorder %v1197, 0.0
  %vm1689 = vcmp.gt.f32.partialorder %v1202, 0.0
  %vm1690 = vcmp.gt.f32.partialorder %v1207, 0.0
  %vm1691 = vcmp.gt.f32.partialorder %v1212, 0.0
  %vm1692 = vcmp.gt.f32.partialorder %v1217, 0.0
  %vm1693 = vcmp.gt.f32.partialorder %v1222, 0.0
  %vm1694 = vcmp.gt.f32.partialorder %v1227, 0.0
  %vm1695 = vcmp.gt.f32.partialorder %v1232, 0.0
  %vm1696 = vcmp.gt.f32.partialorder %v1237, 0.0
  %vm1697 = vcmp.gt.f32.partialorder %v1242, 0.0
  %vm1698 = vcmp.gt.f32.partialorder %v1247, 0.0
  %vm1699 = vcmp.gt.f32.partialorder %v1252, 0.0
  %vm1700 = vcmp.gt.f32.partialorder %v1257, 0.0
  %vm1701 = vcmp.gt.f32.partialorder %v1262, 0.0
  %vm1702 = vcmp.gt.f32.partialorder %v1267, 0.0
  %vm1703 = vcmp.gt.f32.partialorder %v1272, 0.0
  %vm1704 = vcmp.gt.f32.partialorder %v1277, 0.0
  %vm1705 = vcmp.gt.f32.partialorder %v1282, 0.0
  %vm1706 = vcmp.gt.f32.partialorder %v1287, 0.0
  %vm1707 = vcmp.gt.f32.partialorder %v1292, 0.0
  %vm1708 = vcmp.gt.f32.partialorder %v1297, 0.0
  %vm1709 = vcmp.gt.f32.partialorder %v1302, 0.0
  %vm1710 = vcmp.gt.f32.partialorder %v1307, 0.0
  %vm1711 = vcmp.gt.f32.partialorder %v1312, 0.0
  %vm1712 = vcmp.gt.f32.partialorder %v1317, 0.0
  %vm1713 = vcmp.gt.f32.partialorder %v1322, 0.0
  %vm1714 = vcmp.gt.f32.partialorder %v1327, 0.0
  %vm1715 = vcmp.gt.f32.partialorder %v1332, 0.0
  %vm1716 = vcmp.gt.f32.partialorder %v1337, 0.0
  %vm1717 = vcmp.gt.f32.partialorder %v1342, 0.0
  %vm1718 = vcmp.gt.f32.partialorder %v1347, 0.0
  %vm1719 = vcmp.gt.f32.partialorder %v1352, 0.0
  %vm1720 = vcmp.gt.f32.partialorder %v1357, 0.0
  %vm1721 = vcmp.gt.f32.partialorder %v1362, 0.0
  %vm1722 = vcmp.gt.f32.partialorder %v1367, 0.0
  %vm1723 = vcmp.gt.f32.partialorder %v1372, 0.0
  %vm1724 = vcmp.gt.f32.partialorder %v1377, 0.0
  %vm1725 = vcmp.gt.f32.partialorder %v1382, 0.0
  %vm1726 = vcmp.gt.f32.partialorder %v1387, 0.0
  %vm1727 = vcmp.gt.f32.partialorder %v1392, 0.0
  %vm1728 = vcmp.gt.f32.partialorder %v1397, 0.0
  %vm1729 = vcmp.gt.f32.partialorder %v1402, 0.0
  %vm1730 = vcmp.gt.f32.partialorder %v1407, 0.0
  %vm1731 = vcmp.gt.f32.partialorder %v1412, 0.0
  %vm1732 = vcmp.gt.f32.partialorder %v1417, 0.0
  %vm1733 = vcmp.gt.f32.partialorder %v1422, 0.0
  %vm1734 = vcmp.gt.f32.partialorder %v1427, 0.0
  %vm1735 = vcmp.gt.f32.partialorder %v1432, 0.0
  %vm1736 = vcmp.gt.f32.partialorder %v1437, 0.0
  %vm1737 = vcmp.gt.f32.partialorder %v1442, 0.0
  %vm1738 = vcmp.gt.f32.partialorder %v1447, 0.0
  %vm1739 = vcmp.gt.f32.partialorder %v1452, 0.0
  %vm1740 = vcmp.gt.f32.partialorder %v1457, 0.0
  %vm1741 = vcmp.gt.f32.partialorder %v1462, 0.0
  %vm1742 = vcmp.gt.f32.partialorder %v1467, 0.0
  %vm1743 = vcmp.gt.f32.partialorder %v1472, 0.0
  %vm1744 = vcmp.gt.f32.partialorder %v1477, 0.0
  %vm1745 = vcmp.gt.f32.partialorder %v1482, 0.0
  %vm1746 = vcmp.gt.f32.partialorder %v1487, 0.0
  %vm1747 = vcmp.gt.f32.partialorder %v1492, 0.0
  %vm1748 = vcmp.gt.f32.partialorder %v1497, 0.0
  %vm1749 = vcmp.gt.f32.partialorder %v1502, 0.0
  %vm1750 = vcmp.gt.f32.partialorder %v1507, 0.0
  %vm1751 = vcmp.gt.f32.partialorder %v1512, 0.0
  %vm1752 = vcmp.gt.f32.partialorder %v1517, 0.0
  %vm1753 = vcmp.gt.f32.partialorder %v1522, 0.0
  %vm1754 = vcmp.gt.f32.partialorder %v1527, 0.0
  %vm1755 = vcmp.gt.f32.partialorder %v1532, 0.0
  %vm1756 = vcmp.gt.f32.partialorder %v1537, 0.0
  %vm1757 = vcmp.gt.f32.partialorder %v1542, 0.0
  %vm1758 = vcmp.gt.f32.partialorder %v1547, 0.0
  %vm1759 = vcmp.gt.f32.partialorder %v1552, 0.0
  %vm1760 = vcmp.gt.f32.partialorder %v1557, 0.0
  %vm1761 = vcmp.gt.f32.partialorder %v1562, 0.0
  %vm1762 = vcmp.gt.f32.partialorder %v1567, 0.0
  %vm1763 = vcmp.gt.f32.partialorder %v1572, 0.0
  %vm1764 = vcmp.gt.f32.partialorder %v1577, 0.0
  %vm1765 = vcmp.gt.f32.partialorder %v1582, 0.0
  %vm1766 = vcmp.gt.f32.partialorder %v1587, 0.0
  %vm1767 = vcmp.gt.f32.partialorder %v1592, 0.0
  %vm1768 = vcmp.gt.f32.partialorder %v1597, 0.0
  %v1769 = vmul.f32 %v757, 0.2
  %v1770 = vmul.f32 %v762, 0.2
  %v1771 = vmul.f32 %v767, 0.2
  %v1772 = vmul.f32 %v772, 0.2
  %v1773 = vmul.f32 %v777, 0.2
  %v1774 = vmul.f32 %v782, 0.2
  %v1775 = vmul.f32 %v787, 0.2
  %v1776 = vmul.f32 %v792, 0.2
  %v1777 = vmul.f32 %v797, 0.2
  %v1778 = vmul.f32 %v802, 0.2
  %v1779 = vmul.f32 %v807, 0.2
  %v1780 = vmul.f32 %v812, 0.2
  %v1781 = vmul.f32 %v817, 0.2
  %v1782 = vmul.f32 %v822, 0.2
  %v1783 = vmul.f32 %v827, 0.2
  %v1784 = vmul.f32 %v832, 0.2
  %v1785 = vmul.f32 %v837, 0.2
  %v1786 = vmul.f32 %v842, 0.2
  %v1787 = vmul.f32 %v847, 0.2
  %v1788 = vmul.f32 %v852, 0.2
  %v1789 = vmul.f32 %v857, 0.2
  %v1790 = vmul.f32 %v862, 0.2
  %v1791 = vmul.f32 %v867, 0.2
  %v1792 = vmul.f32 %v872, 0.2
  %v1793 = vmul.f32 %v877, 0.2
  %v1794 = vmul.f32 %v882, 0.2
  %v1795 = vmul.f32 %v887, 0.2
  %v1796 = vmul.f32 %v892, 0.2
  %v1797 = vmul.f32 %v897, 0.2
  %v1798 = vmul.f32 %v902, 0.2
  %v1799 = vmul.f32 %v907, 0.2
  %v1800 = vmul.f32 %v912, 0.2
  %v1801 = vmul.f32 %v917, 0.2
  %v1802 = vmul.f32 %v922, 0.2
  %v1803 = vmul.f32 %v927, 0.2
  %v1804 = vmul.f32 %v932, 0.2
  %v1805 = vmul.f32 %v937, 0.2
  %v1806 = vmul.f32 %v942, 0.2
  %v1807 = vmul.f32 %v947, 0.2
  %v1808 = vmul.f32 %v952, 0.2
  %v1809 = vmul.f32 %v957, 0.2
  %v1810 = vmul.f32 %v962, 0.2
  %v1811 = vmul.f32 %v967, 0.2
  %v1812 = vmul.f32 %v972, 0.2
  %v1813 = vmul.f32 %v977, 0.2
  %v1814 = vmul.f32 %v982, 0.2
  %v1815 = vmul.f32 %v987, 0.2
  %v1816 = vmul.f32 %v992, 0.2
  %v1817 = vmul.f32 %v997, 0.2
  %v1818 = vmul.f32 %v1002, 0.2
  %v1819 = vmul.f32 %v1007, 0.2
  %v1820 = vmul.f32 %v1012, 0.2
  %v1821 = vmul.f32 %v1017, 0.2
  %v1822 = vmul.f32 %v1022, 0.2
  %v1823 = vmul.f32 %v1027, 0.2
  %v1824 = vmul.f32 %v1032, 0.2
  %v1825 = vmul.f32 %v1037, 0.2
  %v1826 = vmul.f32 %v1042, 0.2
  %v1827 = vmul.f32 %v1047, 0.2
  %v1828 = vmul.f32 %v1052, 0.2
  %v1829 = vmul.f32 %v1057, 0.2
  %v1830 = vmul.f32 %v1062, 0.2
  %v1831 = vmul.f32 %v1067, 0.2
  %v1832 = vmul.f32 %v1072, 0.2
  %v1833 = vmul.f32 %v1077, 0.2
  %v1834 = vmul.f32 %v1082, 0.2
  %v1835 = vmul.f32 %v1087, 0.2
  %v1836 = vmul.f32 %v1092, 0.2
  %v1837 = vmul.f32 %v1097, 0.2
  %v1838 = vmul.f32 %v1102, 0.2
  %v1839 = vmul.f32 %v1107, 0.2
  %v1840 = vmul.f32 %v1112, 0.2
  %v1841 = vmul.f32 %v1117, 0.2
  %v1842 = vmul.f32 %v1122, 0.2
  %v1843 = vmul.f32 %v1127, 0.2
  %v1844 = vmul.f32 %v1132, 0.2
  %v1845 = vmul.f32 %v1137, 0.2
  %v1846 = vmul.f32 %v1142, 0.2
  %v1847 = vmul.f32 %v1147, 0.2
  %v1848 = vmul.f32 %v1152, 0.2
  %v1849 = vmul.f32 %v1157, 0.2
  %v1850 = vmul.f32 %v1162, 0.2
  %v1851 = vmul.f32 %v1167, 0.2
  %v1852 = vmul.f32 %v1172, 0.2
  %v1853 = vmul.f32 %v1177, 0.2
  %v1854 = vmul.f32 %v1182, 0.2
  %v1855 = vmul.f32 %v1187, 0.2
  %v1856 = vmul.f32 %v1192, 0.2
  %v1857 = vmul.f32 %v1197, 0.2
  %v1858 = vmul.f32 %v1202, 0.2
  %v1859 = vmul.f32 %v1207, 0.2
  %v1860 = vmul.f32 %v1212, 0.2
  %v1861 = vmul.f32 %v1217, 0.2
  %v1862 = vmul.f32 %v1222, 0.2
  %v1863 = vmul.f32 %v1227, 0.2
  %v1864 = vmul.f32 %v1232, 0.2
  %v1865 = vmul.f32 %v1237, 0.2
  %v1866 = vmul.f32 %v1242, 0.2
  %v1867 = vmul.f32 %v1247, 0.2
  %v1868 = vmul.f32 %v1252, 0.2
  %v1869 = vmul.f32 %v1257, 0.2
  %v1870 = vmul.f32 %v1262, 0.2
  %v1871 = vmul.f32 %v1267, 0.2
  %v1872 = vmul.f32 %v1272, 0.2
  %v1873 = vmul.f32 %v1277, 0.2
  %v1874 = vmul.f32 %v1282, 0.2
  %v1875 = vmul.f32 %v1287, 0.2
  %v1876 = vmul.f32 %v1292, 0.2
  %v1877 = vmul.f32 %v1297, 0.2
  %v1878 = vmul.f32 %v1302, 0.2
  %v1879 = vmul.f32 %v1307, 0.2
  %v1880 = vmul.f32 %v1312, 0.2
  %v1881 = vmul.f32 %v1317, 0.2
  %v1882 = vmul.f32 %v1322, 0.2
  %v1883 = vmul.f32 %v1327, 0.2
  %v1884 = vmul.f32 %v1332, 0.2
  %v1885 = vmul.f32 %v1337, 0.2
  %v1886 = vmul.f32 %v1342, 0.2
  %v1887 = vmul.f32 %v1347, 0.2
  %v1888 = vmul.f32 %v1352, 0.2
  %v1889 = vmul.f32 %v1357, 0.2
  %v1890 = vmul.f32 %v1362, 0.2
  %v1891 = vmul.f32 %v1367, 0.2
  %v1892 = vmul.f32 %v1372, 0.2
  %v1893 = vmul.f32 %v1377, 0.2
  %v1894 = vmul.f32 %v1382, 0.2
  %v1895 = vmul.f32 %v1387, 0.2
  %v1896 = vmul.f32 %v1392, 0.2
  %v1897 = vmul.f32 %v1397, 0.2
  %v1898 = vmul.f32 %v1402, 0.2
  %v1899 = vmul.f32 %v1407, 0.2
  %v1900 = vmul.f32 %v1412, 0.2
  %v1901 = vmul.f32 %v1417, 0.2
  %v1902 = vmul.f32 %v1422, 0.2
  %v1903 = vmul.f32 %v1427, 0.2
  %v1904 = vmul.f32 %v1432, 0.2
  %v1905 = vmul.f32 %v1437, 0.2
  %v1906 = vmul.f32 %v1442, 0.2
  %v1907 = vmul.f32 %v1447, 0.2
  %v1908 = vmul.f32 %v1452, 0.2
  %v1909 = vmul.f32 %v1457, 0.2
  %v1910 = vmul.f32 %v1462, 0.2
  %v1911 = vmul.f32 %v1467, 0.2
  %v1912 = vmul.f32 %v1472, 0.2
  %v1913 = vmul.f32 %v1477, 0.2
  %v1914 = vmul.f32 %v1482, 0.2
  %v1915 = vmul.f32 %v1487, 0.2
  %v1916 = vmul.f32 %v1492, 0.2
  %v1917 = vmul.f32 %v1497, 0.2
  %v1918 = vmul.f32 %v1502, 0.2
  %v1919 = vmul.f32 %v1507, 0.2
  %v1920 = vmul.f32 %v1512, 0.2
  %v1921 = vmul.f32 %v1517, 0.2
  %v1922 = vmul.f32 %v1522, 0.2
  %v1923 = vmul.f32 %v1527, 0.2
  %v1924 = vmul.f32 %v1532, 0.2
  %v1925 = vmul.f32 %v1537, 0.2
  %v1926 = vmul.f32 %v1542, 0.2
  %v1927 = vmul.f32 %v1547, 0.2
  %v1928 = vmul.f32 %v1552, 0.2
  %v1929 = vmul.f32 %v1557, 0.2
  %v1930 = vmul.f32 %v1562, 0.2
  %v1931 = vmul.f32 %v1567, 0.2
  %v1932 = vmul.f32 %v1572, 0.2
  %v1933 = vmul.f32 %v1577, 0.2
  %v1934 = vmul.f32 %v1582, 0.2
  %v1935 = vmul.f32 %v1587, 0.2
  %v1936 = vmul.f32 %v1592, 0.2
  %v1937 = vmul.f32 %v1597, 0.2
  %v1938 = vsel %vm1600, %v757, %v1769
  %v1939 = vsel %vm1601, %v762, %v1770
  %v1940 = vsel %vm1602, %v767, %v1771
  %v1941 = vsel %vm1603, %v772, %v1772
  %v1942 = vsel %vm1604, %v777, %v1773
  %v1943 = vsel %vm1605, %v782, %v1774
  %v1944 = vsel %vm1606, %v787, %v1775
  %v1945 = vsel %vm1607, %v792, %v1776
  %v1946 = vsel %vm1608, %v797, %v1777
  %v1947 = vsel %vm1609, %v802, %v1778
  %v1948 = vsel %vm1610, %v807, %v1779
  %v1949 = vsel %vm1611, %v812, %v1780
  %v1950 = vsel %vm1612, %v817, %v1781
  %v1951 = vsel %vm1613, %v822, %v1782
  %v1952 = vsel %vm1614, %v827, %v1783
  %v1953 = vsel %vm1615, %v832, %v1784
  %v1954 = vsel %vm1616, %v837, %v1785
  %v1955 = vsel %vm1617, %v842, %v1786
  %v1956 = vsel %vm1618, %v847, %v1787
  %v1957 = vsel %vm1619, %v852, %v1788
  %v1958 = vsel %vm1620, %v857, %v1789
  %v1959 = vsel %vm1621, %v862, %v1790
  %v1960 = vsel %vm1622, %v867, %v1791
  %v1961 = vsel %vm1623, %v872, %v1792
  %v1962 = vsel %vm1624, %v877, %v1793
  %v1963 = vsel %vm1625, %v882, %v1794
  %v1964 = vsel %vm1626, %v887, %v1795
  %v1965 = vsel %vm1627, %v892, %v1796
  %v1966 = vsel %vm1628, %v897, %v1797
  %v1967 = vsel %vm1629, %v902, %v1798
  %v1968 = vsel %vm1630, %v907, %v1799
  %v1969 = vsel %vm1631, %v912, %v1800
  %v1970 = vsel %vm1632, %v917, %v1801
  %v1971 = vsel %vm1633, %v922, %v1802
  %v1972 = vsel %vm1634, %v927, %v1803
  %v1973 = vsel %vm1635, %v932, %v1804
  %v1974 = vsel %vm1636, %v937, %v1805
  %v1975 = vsel %vm1637, %v942, %v1806
  %v1976 = vsel %vm1638, %v947, %v1807
  %v1977 = vsel %vm1639, %v952, %v1808
  %v1978 = vsel %vm1640, %v957, %v1809
  %v1979 = vsel %vm1641, %v962, %v1810
  %v1980 = vsel %vm1642, %v967, %v1811
  %v1981 = vsel %vm1643, %v972, %v1812
  %v1982 = vsel %vm1644, %v977, %v1813
  %v1983 = vsel %vm1645, %v982, %v1814
  %v1984 = vsel %vm1646, %v987, %v1815
  %v1985 = vsel %vm1647, %v992, %v1816
  %v1986 = vsel %vm1648, %v997, %v1817
  %v1987 = vsel %vm1649, %v1002, %v1818
  %v1988 = vsel %vm1650, %v1007, %v1819
  %v1989 = vsel %vm1651, %v1012, %v1820
  %v1990 = vsel %vm1652, %v1017, %v1821
  %v1991 = vsel %vm1653, %v1022, %v1822
  %v1992 = vsel %vm1654, %v1027, %v1823
  %v1993 = vsel %vm1655, %v1032, %v1824
  %v1994 = vsel %vm1656, %v1037, %v1825
  %v1995 = vsel %vm1657, %v1042, %v1826
  %v1996 = vsel %vm1658, %v1047, %v1827
  %v1997 = vsel %vm1659, %v1052, %v1828
  %v1998 = vsel %vm1660, %v1057, %v1829
  %v1999 = vsel %vm1661, %v1062, %v1830
  %v2000 = vsel %vm1662, %v1067, %v1831
  %v2001 = vsel %vm1663, %v1072, %v1832
  %v2002 = vsel %vm1664, %v1077, %v1833
  %v2003 = vsel %vm1665, %v1082, %v1834
  %v2004 = vsel %vm1666, %v1087, %v1835
  %v2005 = vsel %vm1667, %v1092, %v1836
  %v2006 = vsel %vm1668, %v1097, %v1837
  %v2007 = vsel %vm1669, %v1102, %v1838
  %v2008 = vsel %vm1670, %v1107, %v1839
  %v2009 = vsel %vm1671, %v1112, %v1840
  %v2010 = vsel %vm1672, %v1117, %v1841
  %v2011 = vsel %vm1673, %v1122, %v1842
  %v2012 = vsel %vm1674, %v1127, %v1843
  %v2013 = vsel %vm1675, %v1132, %v1844
  %v2014 = vsel %vm1676, %v1137, %v1845
  %v2015 = vsel %vm1677, %v1142, %v1846
  %v2016 = vsel %vm1678, %v1147, %v1847
  %v2017 = vsel %vm1679, %v1152, %v1848
  %v2018 = vsel %vm1680, %v1157, %v1849
  %v2019 = vsel %vm1681, %v1162, %v1850
  %v2020 = vsel %vm1682, %v1167, %v1851
  %v2021 = vsel %vm1683, %v1172, %v1852
  %v2022 = vsel %vm1684, %v1177, %v1853
  %v2023 = vsel %vm1685, %v1182, %v1854
  %v2024 = vsel %vm1686, %v1187, %v1855
  %v2025 = vsel %vm1687, %v1192, %v1856
  %v2026 = vsel %vm1688, %v1197, %v1857
  %v2027 = vsel %vm1689, %v1202, %v1858
  %v2028 = vsel %vm1690, %v1207, %v1859
  %v2029 = vsel %vm1691, %v1212, %v1860
  %v2030 = vsel %vm1692, %v1217, %v1861
  %v2031 = vsel %vm1693, %v1222, %v1862
  %v2032 = vsel %vm1694, %v1227, %v1863
  %v2033 = vsel %vm1695, %v1232, %v1864
  %v2034 = vsel %vm1696, %v1237, %v1865
  %v2035 = vsel %vm1697, %v1242, %v1866
  %v2036 = vsel %vm1698, %v1247, %v1867
  %v2037 = vsel %vm1699, %v1252, %v1868
  %v2038 = vsel %vm1700, %v1257, %v1869
  %v2039 = vsel %vm1701, %v1262, %v1870
  %v2040 = vsel %vm1702, %v1267, %v1871
  %v2041 = vsel %vm1703, %v1272, %v1872
  %v2042 = vsel %vm1704, %v1277, %v1873
  %v2043 = vsel %vm1705, %v1282, %v1874
  %v2044 = vsel %vm1706, %v1287, %v1875
  %v2045 = vsel %vm1707, %v1292, %v1876
  %v2046 = vsel %vm1708, %v1297, %v1877
  %v2047 = vsel %vm1709, %v1302, %v1878
  %v2048 = vsel %vm1710, %v1307, %v1879
  %v2049 = vsel %vm1711, %v1312, %v1880
  %v2050 = vsel %vm1712, %v1317, %v1881
  %v2051 = vsel %vm1713, %v1322, %v1882
  %v2052 = vsel %vm1714, %v1327, %v1883
  %v2053 = vsel %vm1715, %v1332, %v1884
  %v2054 = vsel %vm1716, %v1337, %v1885
  %v2055 = vsel %vm1717, %v1342, %v1886
  %v2056 = vsel %vm1718, %v1347, %v1887
  %v2057 = vsel %vm1719, %v1352, %v1888
  %v2058 = vsel %vm1720, %v1357, %v1889
  %v2059 = vsel %vm1721, %v1362, %v1890
  %v2060 = vsel %vm1722, %v1367, %v1891
  %v2061 = vsel %vm1723, %v1372, %v1892
  %v2062 = vsel %vm1724, %v1377, %v1893
  %v2063 = vsel %vm1725, %v1382, %v1894
  %v2064 = vsel %vm1726, %v1387, %v1895
  %v2065 = vsel %vm1727, %v1392, %v1896
  %v2066 = vsel %vm1728, %v1397, %v1897
  %v2067 = vsel %vm1729, %v1402, %v1898
  %v2068 = vsel %vm1730, %v1407, %v1899
  %v2069 = vsel %vm1731, %v1412, %v1900
  %v2070 = vsel %vm1732, %v1417, %v1901
  %v2071 = vsel %vm1733, %v1422, %v1902
  %v2072 = vsel %vm1734, %v1427, %v1903
  %v2073 = vsel %vm1735, %v1432, %v1904
  %v2074 = vsel %vm1736, %v1437, %v1905
  %v2075 = vsel %vm1737, %v1442, %v1906
  %v2076 = vsel %vm1738, %v1447, %v1907
  %v2077 = vsel %vm1739, %v1452, %v1908
  %v2078 = vsel %vm1740, %v1457, %v1909
  %v2079 = vsel %vm1741, %v1462, %v1910
  %v2080 = vsel %vm1742, %v1467, %v1911
  %v2081 = vsel %vm1743, %v1472, %v1912
  %v2082 = vsel %vm1744, %v1477, %v1913
  %v2083 = vsel %vm1745, %v1482, %v1914
  %v2084 = vsel %vm1746, %v1487, %v1915
  %v2085 = vsel %vm1747, %v1492, %v1916
  %v2086 = vsel %vm1748, %v1497, %v1917
  %v2087 = vsel %vm1749, %v1502, %v1918
  %v2088 = vsel %vm1750, %v1507, %v1919
  %v2089 = vsel %vm1751, %v1512, %v1920
  %v2090 = vsel %vm1752, %v1517, %v1921
  %v2091 = vsel %vm1753, %v1522, %v1922
  %v2092 = vsel %vm1754, %v1527, %v1923
  %v2093 = vsel %vm1755, %v1532, %v1924
  %v2094 = vsel %vm1756, %v1537, %v1925
  %v2095 = vsel %vm1757, %v1542, %v1926
  %v2096 = vsel %vm1758, %v1547, %v1927
  %v2097 = vsel %vm1759, %v1552, %v1928
  %v2098 = vsel %vm1760, %v1557, %v1929
  %v2099 = vsel %vm1761, %v1562, %v1930
  %v2100 = vsel %vm1762, %v1567, %v1931
  %v2101 = vsel %vm1763, %v1572, %v1932
  %v2102 = vsel %vm1764, %v1577, %v1933
  %v2103 = vsel %vm1765, %v1582, %v1934
  %v2104 = vsel %vm1766, %v1587, %v1935
  %v2105 = vsel %vm1767, %v1592, %v1936
  %v2106 = vsel %vm1768, %v1597, %v1937
  %vm2107 = vcmask 261120
  %2108 = vst.msk [vmem:[%s2] sm:$0xff] %vm2107, %v1938
  %2109 = vst.msk [vmem:[%s2 + $0x8] sm:$0xff] %vm2107, %v1939
  %2110 = vst.msk [vmem:[%s2 + $0x10] sm:$0xff] %vm2107, %v1940
  %2111 = vst.msk [vmem:[%s2 + $0x18] sm:$0xff] %vm2107, %v1941
  %2112 = vst.msk [vmem:[%s2 + $0x20] sm:$0xff] %vm2107, %v1942
  %2113 = vst.msk [vmem:[%s2 + $0x28] sm:$0xff] %vm2107, %v1943
  %2114 = vst.msk [vmem:[%s2 + $0x30] sm:$0xff] %vm2107, %v1944
  %2115 = vst.msk [vmem:[%s2 + $0x38] sm:$0xff] %vm2107, %v1945
  %2116 = vst.msk [vmem:[%s2 + $0x40] sm:$0xff] %vm2107, %v1946
  %2117 = vst.msk [vmem:[%s2 + $0x48] sm:$0xff] %vm2107, %v1947
  %2118 = vst.msk [vmem:[%s2 + $0x50] sm:$0xff] %vm2107, %v1948
  %2119 = vst.msk [vmem:[%s2 + $0x58] sm:$0xff] %vm2107, %v1949
  %2120 = vst.msk [vmem:[%s2 + $0x60] sm:$0xff] %vm2107, %v1950
  %2121 = vst.msk [vmem:[%s2 + $0x68] sm:$0xff] %vm2107, %v1951
  %2122 = vst.msk [vmem:[%s2 + $0x70] sm:$0xff] %vm2107, %v1952
  %2123 = vst.msk [vmem:[%s2 + $0x78] sm:$0xff] %vm2107, %v1953
  %2124 = vst.msk [vmem:[%s2 + $0x80] sm:$0xff] %vm2107, %v1954
  %2125 = vst.msk [vmem:[%s2 + $0x88] sm:$0xff] %vm2107, %v1955
  %2126 = vst.msk [vmem:[%s2 + $0x90] sm:$0xff] %vm2107, %v1956
  %2127 = vst.msk [vmem:[%s2 + $0x98] sm:$0xff] %vm2107, %v1957
  %2128 = vst.msk [vmem:[%s2 + $0xa0] sm:$0xff] %vm2107, %v1958
  %2129 = vst.msk [vmem:[%s2 + $0xa8] sm:$0xff] %vm2107, %v1959
  %2130 = vst.msk [vmem:[%s2 + $0xb0] sm:$0xff] %vm2107, %v1960
  %2131 = vst.msk [vmem:[%s2 + $0xb8] sm:$0xff] %vm2107, %v1961
  %2132 = vst.msk [vmem:[%s2 + $0xc0] sm:$0xff] %vm2107, %v1962
  %2133 = vst.msk [vmem:[%s2 + $0xc8] sm:$0xff] %vm2107, %v1963
  %2134 = vst.msk [vmem:[%s2 + $0xd0] sm:$0xff] %vm2107, %v1964
  %2135 = vst.msk [vmem:[%s2 + $0xd8] sm:$0xff] %vm2107, %v1965
  %2136 = vst.msk [vmem:[%s2 + $0xe0] sm:$0xff] %vm2107, %v1966
  %2137 = vst.msk [vmem:[%s2 + $0xe8] sm:$0xff] %vm2107, %v1967
  %2138 = vst.msk [vmem:[%s2 + $0xf0] sm:$0xff] %vm2107, %v1968
  %2139 = vst.msk [vmem:[%s2 + $0xf8] sm:$0xff] %vm2107, %v1969
  %2140 = vst.msk [vmem:[%s2 + $0x100] sm:$0xff] %vm2107, %v1970
  %2141 = vst.msk [vmem:[%s2 + $0x108] sm:$0xff] %vm2107, %v1971
  %2142 = vst.msk [vmem:[%s2 + $0x110] sm:$0xff] %vm2107, %v1972
  %2143 = vst.msk [vmem:[%s2 + $0x118] sm:$0xff] %vm2107, %v1973
  %2144 = vst.msk [vmem:[%s2 + $0x120] sm:$0xff] %vm2107, %v1974
  %2145 = vst.msk [vmem:[%s2 + $0x128] sm:$0xff] %vm2107, %v1975
  %2146 = vst.msk [vmem:[%s2 + $0x130] sm:$0xff] %vm2107, %v1976
  %2147 = vst.msk [vmem:[%s2 + $0x138] sm:$0xff] %vm2107, %v1977
  %2148 = vst.msk [vmem:[%s2 + $0x140] sm:$0xff] %vm2107, %v1978
  %2149 = vst.msk [vmem:[%s2 + $0x148] sm:$0xff] %vm2107, %v1979
  %2150 = vst.msk [vmem:[%s2 + $0x150] sm:$0xff] %vm2107, %v1980
  %2151 = vst.msk [vmem:[%s2 + $0x158] sm:$0xff] %vm2107, %v1981
  %2152 = vst.msk [vmem:[%s2 + $0x160] sm:$0xff] %vm2107, %v1982
  %2153 = vst.msk [vmem:[%s2 + $0x168] sm:$0xff] %vm2107, %v1983
  %2154 = vst.msk [vmem:[%s2 + $0x170] sm:$0xff] %vm2107, %v1984
  %2155 = vst.msk [vmem:[%s2 + $0x178] sm:$0xff] %vm2107, %v1985
  %2156 = vst.msk [vmem:[%s2 + $0x180] sm:$0xff] %vm2107, %v1986
  %2157 = vst.msk [vmem:[%s2 + $0x188] sm:$0xff] %vm2107, %v1987
  %2158 = vst.msk [vmem:[%s2 + $0x190] sm:$0xff] %vm2107, %v1988
  %2159 = vst.msk [vmem:[%s2 + $0x198] sm:$0xff] %vm2107, %v1989
  %2160 = vst.msk [vmem:[%s2 + $0x1a0] sm:$0xff] %vm2107, %v1990
  %2161 = vst.msk [vmem:[%s2 + $0x1a8] sm:$0xff] %vm2107, %v1991
  %2162 = vst.msk [vmem:[%s2 + $0x1b0] sm:$0xff] %vm2107, %v1992
  %2163 = vst.msk [vmem:[%s2 + $0x1b8] sm:$0xff] %vm2107, %v1993
  %2164 = vst.msk [vmem:[%s2 + $0x1c0] sm:$0xff] %vm2107, %v1994
  %2165 = vst.msk [vmem:[%s2 + $0x1c8] sm:$0xff] %vm2107, %v1995
  %2166 = vst.msk [vmem:[%s2 + $0x1d0] sm:$0xff] %vm2107, %v1996
  %2167 = vst.msk [vmem:[%s2 + $0x1d8] sm:$0xff] %vm2107, %v1997
  %2168 = vst.msk [vmem:[%s2 + $0x1e0] sm:$0xff] %vm2107, %v1998
  %2169 = vst.msk [vmem:[%s2 + $0x1e8] sm:$0xff] %vm2107, %v1999
  %2170 = vst.msk [vmem:[%s2 + $0x1f0] sm:$0xff] %vm2107, %v2000
  %2171 = vst.msk [vmem:[%s2 + $0x1f8] sm:$0xff] %vm2107, %v2001
  %2172 = vst.msk [vmem:[%s2 + $0x200] sm:$0xff] %vm2107, %v2002
  %2173 = vst.msk [vmem:[%s2 + $0x208] sm:$0xff] %vm2107, %v2003
  %2174 = vst.msk [vmem:[%s2 + $0x210] sm:$0xff] %vm2107, %v2004
  %2175 = vst.msk [vmem:[%s2 + $0x218] sm:$0xff] %vm2107, %v2005
  %2176 = vst.msk [vmem:[%s2 + $0x220] sm:$0xff] %vm2107, %v2006
  %2177 = vst.msk [vmem:[%s2 + $0x228] sm:$0xff] %vm2107, %v2007
  %2178 = vst.msk [vmem:[%s2 + $0x230] sm:$0xff] %vm2107, %v2008
  %2179 = vst.msk [vmem:[%s2 + $0x238] sm:$0xff] %vm2107, %v2009
  %2180 = vst.msk [vmem:[%s2 + $0x240] sm:$0xff] %vm2107, %v2010
  %2181 = vst.msk [vmem:[%s2 + $0x248] sm:$0xff] %vm2107, %v2011
  %2182 = vst.msk [vmem:[%s2 + $0x250] sm:$0xff] %vm2107, %v2012
  %2183 = vst.msk [vmem:[%s2 + $0x258] sm:$0xff] %vm2107, %v2013
  %2184 = vst.msk [vmem:[%s2 + $0x260] sm:$0xff] %vm2107, %v2014
  %2185 = vst.msk [vmem:[%s2 + $0x268] sm:$0xff] %vm2107, %v2015
  %2186 = vst.msk [vmem:[%s2 + $0x270] sm:$0xff] %vm2107, %v2016
  %2187 = vst.msk [vmem:[%s2 + $0x278] sm:$0xff] %vm2107, %v2017
  %2188 = vst.msk [vmem:[%s2 + $0x280] sm:$0xff] %vm2107, %v2018
  %2189 = vst.msk [vmem:[%s2 + $0x288] sm:$0xff] %vm2107, %v2019
  %2190 = vst.msk [vmem:[%s2 + $0x290] sm:$0xff] %vm2107, %v2020
  %2191 = vst.msk [vmem:[%s2 + $0x298] sm:$0xff] %vm2107, %v2021
  %2192 = vst.msk [vmem:[%s2 + $0x2a0] sm:$0xff] %vm2107, %v2022
  %2193 = vst.msk [vmem:[%s2 + $0x2a8] sm:$0xff] %vm2107, %v2023
  %2194 = vst.msk [vmem:[%s2 + $0x2b0] sm:$0xff] %vm2107, %v2024
  %2195 = vst.msk [vmem:[%s2 + $0x2b8] sm:$0xff] %vm2107, %v2025
  %2196 = vst.msk [vmem:[%s2 + $0x2c0] sm:$0xff] %vm2107, %v2026
  %2197 = vst.msk [vmem:[%s2 + $0x2c8] sm:$0xff] %vm2107, %v2027
  %2198 = vst.msk [vmem:[%s2 + $0x2d0] sm:$0xff] %vm2107, %v2028
  %2199 = vst.msk [vmem:[%s2 + $0x2d8] sm:$0xff] %vm2107, %v2029
  %2200 = vst.msk [vmem:[%s2 + $0x2e0] sm:$0xff] %vm2107, %v2030
  %2201 = vst.msk [vmem:[%s2 + $0x2e8] sm:$0xff] %vm2107, %v2031
  %2202 = vst.msk [vmem:[%s2 + $0x2f0] sm:$0xff] %vm2107, %v2032
  %2203 = vst.msk [vmem:[%s2 + $0x2f8] sm:$0xff] %vm2107, %v2033
  %2204 = vst.msk [vmem:[%s2 + $0x300] sm:$0xff] %vm2107, %v2034
  %2205 = vst.msk [vmem:[%s2 + $0x308] sm:$0xff] %vm2107, %v2035
  %2206 = vst.msk [vmem:[%s2 + $0x310] sm:$0xff] %vm2107, %v2036
  %2207 = vst.msk [vmem:[%s2 + $0x318] sm:$0xff] %vm2107, %v2037
  %2208 = vst.msk [vmem:[%s2 + $0x320] sm:$0xff] %vm2107, %v2038
  %2209 = vst.msk [vmem:[%s2 + $0x328] sm:$0xff] %vm2107, %v2039
  %2210 = vst.msk [vmem:[%s2 + $0x330] sm:$0xff] %vm2107, %v2040
  %2211 = vst.msk [vmem:[%s2 + $0x338] sm:$0xff] %vm2107, %v2041
  %2212 = vst.msk [vmem:[%s2 + $0x340] sm:$0xff] %vm2107, %v2042
  %2213 = vst.msk [vmem:[%s2 + $0x348] sm:$0xff] %vm2107, %v2043
  %2214 = vst.msk [vmem:[%s2 + $0x350] sm:$0xff] %vm2107, %v2044
  %2215 = vst.msk [vmem:[%s2 + $0x358] sm:$0xff] %vm2107, %v2045
  %2216 = vst.msk [vmem:[%s2 + $0x360] sm:$0xff] %vm2107, %v2046
  %2217 = vst.msk [vmem:[%s2 + $0x368] sm:$0xff] %vm2107, %v2047
  %2218 = vst.msk [vmem:[%s2 + $0x370] sm:$0xff] %vm2107, %v2048
  %2219 = vst.msk [vmem:[%s2 + $0x378] sm:$0xff] %vm2107, %v2049
  %2220 = vst.msk [vmem:[%s2 + $0x380] sm:$0xff] %vm2107, %v2050
  %2221 = vst.msk [vmem:[%s2 + $0x388] sm:$0xff] %vm2107, %v2051
  %2222 = vst.msk [vmem:[%s2 + $0x390] sm:$0xff] %vm2107, %v2052
  %2223 = vst.msk [vmem:[%s2 + $0x398] sm:$0xff] %vm2107, %v2053
  %2224 = vst.msk [vmem:[%s2 + $0x3a0] sm:$0xff] %vm2107, %v2054
  %2225 = vst.msk [vmem:[%s2 + $0x3a8] sm:$0xff] %vm2107, %v2055
  %2226 = vst.msk [vmem:[%s2 + $0x3b0] sm:$0xff] %vm2107, %v2056
  %2227 = vst.msk [vmem:[%s2 + $0x3b8] sm:$0xff] %vm2107, %v2057
  %2228 = vst.msk [vmem:[%s2 + $0x3c0] sm:$0xff] %vm2107, %v2058
  %2229 = vst.msk [vmem:[%s2 + $0x3c8] sm:$0xff] %vm2107, %v2059
  %2230 = vst.msk [vmem:[%s2 + $0x3d0] sm:$0xff] %vm2107, %v2060
  %2231 = vst.msk [vmem:[%s2 + $0x3d8] sm:$0xff] %vm2107, %v2061
  %2232 = vst.msk [vmem:[%s2 + $0x3e0] sm:$0xff] %vm2107, %v2062
  %2233 = vst.msk [vmem:[%s2 + $0x3e8] sm:$0xff] %vm2107, %v2063
  %2234 = vst.msk [vmem:[%s2 + $0x3f0] sm:$0xff] %vm2107, %v2064
  %2235 = vst.msk [vmem:[%s2 + $0x3f8] sm:$0xff] %vm2107, %v2065
  %2236 = vst.msk [vmem:[%s2 + $0x400] sm:$0xff] %vm2107, %v2066
  %2237 = vst.msk [vmem:[%s2 + $0x408] sm:$0xff] %vm2107, %v2067
  %2238 = vst.msk [vmem:[%s2 + $0x410] sm:$0xff] %vm2107, %v2068
  %2239 = vst.msk [vmem:[%s2 + $0x418] sm:$0xff] %vm2107, %v2069
  %2240 = vst.msk [vmem:[%s2 + $0x420] sm:$0xff] %vm2107, %v2070
  %2241 = vst.msk [vmem:[%s2 + $0x428] sm:$0xff] %vm2107, %v2071
  %2242 = vst.msk [vmem:[%s2 + $0x430] sm:$0xff] %vm2107, %v2072
  %2243 = vst.msk [vmem:[%s2 + $0x438] sm:$0xff] %vm2107, %v2073
  %2244 = vst.msk [vmem:[%s2 + $0x440] sm:$0xff] %vm2107, %v2074
  %2245 = vst.msk [vmem:[%s2 + $0x448] sm:$0xff] %vm2107, %v2075
  %2246 = vst.msk [vmem:[%s2 + $0x450] sm:$0xff] %vm2107, %v2076
  %2247 = vst.msk [vmem:[%s2 + $0x458] sm:$0xff] %vm2107, %v2077
  %2248 = vst.msk [vmem:[%s2 + $0x460] sm:$0xff] %vm2107, %v2078
  %2249 = vst.msk [vmem:[%s2 + $0x468] sm:$0xff] %vm2107, %v2079
  %2250 = vst.msk [vmem:[%s2 + $0x470] sm:$0xff] %vm2107, %v2080
  %2251 = vst.msk [vmem:[%s2 + $0x478] sm:$0xff] %vm2107, %v2081
  %2252 = vst.msk [vmem:[%s2 + $0x480] sm:$0xff] %vm2107, %v2082
  %2253 = vst.msk [vmem:[%s2 + $0x488] sm:$0xff] %vm2107, %v2083
  %2254 = vst.msk [vmem:[%s2 + $0x490] sm:$0xff] %vm2107, %v2084
  %2255 = vst.msk [vmem:[%s2 + $0x498] sm:$0xff] %vm2107, %v2085
  %2256 = vst.msk [vmem:[%s2 + $0x4a0] sm:$0xff] %vm2107, %v2086
  %2257 = vst.msk [vmem:[%s2 + $0x4a8] sm:$0xff] %vm2107, %v2087
  %2258 = vst.msk [vmem:[%s2 + $0x4b0] sm:$0xff] %vm2107, %v2088
  %2259 = vst.msk [vmem:[%s2 + $0x4b8] sm:$0xff] %vm2107, %v2089
  %2260 = vst.msk [vmem:[%s2 + $0x4c0] sm:$0xff] %vm2107, %v2090
  %2261 = vst.msk [vmem:[%s2 + $0x4c8] sm:$0xff] %vm2107, %v2091
  %2262 = vst.msk [vmem:[%s2 + $0x4d0] sm:$0xff] %vm2107, %v2092
  %2263 = vst.msk [vmem:[%s2 + $0x4d8] sm:$0xff] %vm2107, %v2093
  %2264 = vst.msk [vmem:[%s2 + $0x4e0] sm:$0xff] %vm2107, %v2094
  %2265 = vst.msk [vmem:[%s2 + $0x4e8] sm:$0xff] %vm2107, %v2095
  %2266 = vst.msk [vmem:[%s2 + $0x4f0] sm:$0xff] %vm2107, %v2096
  %2267 = vst.msk [vmem:[%s2 + $0x4f8] sm:$0xff] %vm2107, %v2097
  %2268 = vst.msk [vmem:[%s2 + $0x500] sm:$0xff] %vm2107, %v2098
  %2269 = vst.msk [vmem:[%s2 + $0x508] sm:$0xff] %vm2107, %v2099
  %2270 = vst.msk [vmem:[%s2 + $0x510] sm:$0xff] %vm2107, %v2100
  %2271 = vst.msk [vmem:[%s2 + $0x518] sm:$0xff] %vm2107, %v2101
  %2272 = vst.msk [vmem:[%s2 + $0x520] sm:$0xff] %vm2107, %v2102
  %2273 = vst.msk [vmem:[%s2 + $0x528] sm:$0xff] %vm2107, %v2103
  %2274 = vst.msk [vmem:[%s2 + $0x530] sm:$0xff] %vm2107, %v2104
  %2275 = vst.msk [vmem:[%s2 + $0x538] sm:$0xff] %vm2107, %v2105
  %2276 = vst.msk [vmem:[%s2 + $0x540] sm:$0xff] %vm2107, %v2106
  // Predicated region
  $region10: #{discriminator1_forward.3} parent=0 // pred_check
    _
  $region11: #{discriminator1_forward.3} parent=0 // pred_check_branch
    %2278 = sbr.rel (0) target = $region13
  $region12: #{discriminator1_forward.3} parent=0 // pred_region
    _
  $region13: #{discriminator1_forward.3} parent=0 // pred_fallthru
    _
  // Predicated region
  $region14: #{discriminator1_forward.3} parent=0 // pred_check
    _
  $region15: #{discriminator1_forward.3} parent=0 // pred_check_branch
    %2280 = sbr.rel (0) target = $region17
  $region16: #{discriminator1_forward.3} parent=0 // pred_region
    _
  $region17: #{discriminator1_forward.3} parent=0 // pred_fallthru
    _

// kernel: discriminator1_forward.5
$region0: #{discriminator1_forward.5}
  #allocation0 [shape = 'u32[]', space=smem, size = 0x4, offset = 0x4, fixed_abs, tag = 'smem constant byte address 0x4 - core index']
  #allocation1 [shape = 'u32[144,128]{1,0:T(1,128)}', space=vmem, size = 0x12000, scoped, tag = 'internal scratch']
  %s0 = inlined_call_operand.vmem [shape: f32[8,25,64], index: 0, kind: input, shape index: {}]
  %s1 = inlined_call_operand.vmem [shape: f32[1,64], index: 1, kind: input, shape index: {}]
  %s2 = inlined_call_operand.vmem [shape: f32[1,64], index: 2, kind: input, shape index: {}]
  %s3 = inlined_call_operand.vmem [shape: f32[25,64], index: 3, kind: input, shape index: {}]
  %s4 = inlined_call_operand.vmem [shape: f32[8,1], index: 4, kind: output, shape index: {}]
  %s5 = sld [smem:[#allocation0]]
  $region26: #{discriminator1_forward.5} parent=0
    _
  %s7 = ssub.s32 1, %s5
  %s8 = scalar_select 0, %s7, %s5
  // Predicated region
  $region2: #{discriminator1_forward.5} parent=0 // pred_check
    _
  $region3: #{discriminator1_forward.5} parent=0 // pred_check_branch
    %10 = sbr.rel (0) target = $region5
  $region4: #{discriminator1_forward.5} parent=0 // pred_region
    _
  $region5: #{discriminator1_forward.5} parent=0 // pred_fallthru
    _
  // Predicated region
  $region6: #{discriminator1_forward.5} parent=0 // pred_check
    _
  $region7: #{discriminator1_forward.5} parent=0 // pred_check_branch
    %12 = sbr.rel (0) target = $region9
  $region8: #{discriminator1_forward.5} parent=0 // pred_region
    _
  $region9: #{discriminator1_forward.5} parent=0 // pred_fallthru
    _
  // Predicated region
  $region10: #{discriminator1_forward.5} parent=0 // pred_check
    _
  $region11: #{discriminator1_forward.5} parent=0 // pred_check_branch
    %14 = sbr.rel (0) target = $region13
  $region12: #{discriminator1_forward.5} parent=0 // pred_region
    _
  $region13: #{discriminator1_forward.5} parent=0 // pred_fallthru
    _
  // Predicated region
  $region14: #{discriminator1_forward.5} parent=0 // pred_check
    _
  $region15: #{discriminator1_forward.5} parent=0 // pred_check_branch
    %16 = sbr.rel (0) target = $region17
  $region16: #{discriminator1_forward.5} parent=0 // pred_region
    _
  $region17: #{discriminator1_forward.5} parent=0 // pred_fallthru
    _
  %v17 = vld [vmem:[%s0] sm:$0xff]
  %v18 = vld [vmem:[%s0 + $0x8] sm:$0xff]
  %v19 = vld [vmem:[%s0 + $0x10] sm:$0xff]
  %v20 = vld [vmem:[%s0 + $0x18] sm:$0x1]
  %v21 = vld [vmem:[%s0 + $0x20] sm:$0xff]
  %v22 = vld [vmem:[%s0 + $0x28] sm:$0xff]
  %v23 = vld [vmem:[%s0 + $0x30] sm:$0xff]
  %v24 = vld [vmem:[%s0 + $0x38] sm:$0x1]
  %v25 = vld [vmem:[%s0 + $0x40] sm:$0xff]
  %v26 = vld [vmem:[%s0 + $0x48] sm:$0xff]
  %v27 = vld [vmem:[%s0 + $0x50] sm:$0xff]
  %v28 = vld [vmem:[%s0 + $0x58] sm:$0x1]
  %v29 = vld [vmem:[%s0 + $0x60] sm:$0xff]
  %v30 = vld [vmem:[%s0 + $0x68] sm:$0xff]
  %v31 = vld [vmem:[%s0 + $0x70] sm:$0xff]
  %v32 = vld [vmem:[%s0 + $0x78] sm:$0x1]
  %v33 = vld [vmem:[%s0 + $0x80] sm:$0xff]
  %v34 = vld [vmem:[%s0 + $0x88] sm:$0xff]
  %v35 = vld [vmem:[%s0 + $0x90] sm:$0xff]
  %v36 = vld [vmem:[%s0 + $0x98] sm:$0x1]
  %v37 = vld [vmem:[%s0 + $0xa0] sm:$0xff]
  %v38 = vld [vmem:[%s0 + $0xa8] sm:$0xff]
  %v39 = vld [vmem:[%s0 + $0xb0] sm:$0xff]
  %v40 = vld [vmem:[%s0 + $0xb8] sm:$0x1]
  %v41 = vld [vmem:[%s0 + $0xc0] sm:$0xff]
  %v42 = vld [vmem:[%s0 + $0xc8] sm:$0xff]
  %v43 = vld [vmem:[%s0 + $0xd0] sm:$0xff]
  %v44 = vld [vmem:[%s0 + $0xd8] sm:$0x1]
  %v45 = vld [vmem:[%s0 + $0xe0] sm:$0xff]
  %v46 = vld [vmem:[%s0 + $0xe8] sm:$0xff]
  %v47 = vld [vmem:[%s0 + $0xf0] sm:$0xff]
  %v48 = vld [vmem:[%s0 + $0xf8] sm:$0x1]
  %v49 = vld [vmem:[%s1] sm:$0x1]
  %v51 = vlaneseq
  %v52 = vshrl.u32 %v51, 7
  %v53 = vsub.s32 0, %v52
  %v54 = vrot.slane %v49, %v53
  %v56 = vsub.f32 %v17, %v54
  %v57 = vsub.f32 %v18, %v54
  %v58 = vsub.f32 %v19, %v54
  %v59 = vsub.f32 %v20, %v54
  %v60 = vsub.f32 %v21, %v54
  %v61 = vsub.f32 %v22, %v54
  %v62 = vsub.f32 %v23, %v54
  %v63 = vsub.f32 %v24, %v54
  %v64 = vsub.f32 %v25, %v54
  %v65 = vsub.f32 %v26, %v54
  %v66 = vsub.f32 %v27, %v54
  %v67 = vsub.f32 %v28, %v54
  %v68 = vsub.f32 %v29, %v54
  %v69 = vsub.f32 %v30, %v54
  %v70 = vsub.f32 %v31, %v54
  %v71 = vsub.f32 %v32, %v54
  %v72 = vsub.f32 %v33, %v54
  %v73 = vsub.f32 %v34, %v54
  %v74 = vsub.f32 %v35, %v54
  %v75 = vsub.f32 %v36, %v54
  %v76 = vsub.f32 %v37, %v54
  %v77 = vsub.f32 %v38, %v54
  %v78 = vsub.f32 %v39, %v54
  %v79 = vsub.f32 %v40, %v54
  %v80 = vsub.f32 %v41, %v54
  %v81 = vsub.f32 %v42, %v54
  %v82 = vsub.f32 %v43, %v54
  %v83 = vsub.f32 %v44, %v54
  %v84 = vsub.f32 %v45, %v54
  %v85 = vsub.f32 %v46, %v54
  %v86 = vsub.f32 %v47, %v54
  %v87 = vsub.f32 %v48, %v54
  %v88 = vld [vmem:[%s2] sm:$0x1]
  %v90 = vlaneseq
  %v91 = vshrl.u32 %v90, 7
  %v92 = vsub.s32 0, %v91
  %v93 = vrot.slane %v88, %v92
  %v95 = vmul.f32 %v56, %v93
  %v96 = vmul.f32 %v57, %v93
  %v97 = vmul.f32 %v58, %v93
  %v98 = vmul.f32 %v59, %v93
  %v99 = vmul.f32 %v60, %v93
  %v100 = vmul.f32 %v61, %v93
  %v101 = vmul.f32 %v62, %v93
  %v102 = vmul.f32 %v63, %v93
  %v103 = vmul.f32 %v64, %v93
  %v104 = vmul.f32 %v65, %v93
  %v105 = vmul.f32 %v66, %v93
  %v106 = vmul.f32 %v67, %v93
  %v107 = vmul.f32 %v68, %v93
  %v108 = vmul.f32 %v69, %v93
  %v109 = vmul.f32 %v70, %v93
  %v110 = vmul.f32 %v71, %v93
  %v111 = vmul.f32 %v72, %v93
  %v112 = vmul.f32 %v73, %v93
  %v113 = vmul.f32 %v74, %v93
  %v114 = vmul.f32 %v75, %v93
  %v115 = vmul.f32 %v76, %v93
  %v116 = vmul.f32 %v77, %v93
  %v117 = vmul.f32 %v78, %v93
  %v118 = vmul.f32 %v79, %v93
  %v119 = vmul.f32 %v80, %v93
  %v120 = vmul.f32 %v81, %v93
  %v121 = vmul.f32 %v82, %v93
  %v122 = vmul.f32 %v83, %v93
  %v123 = vmul.f32 %v84, %v93
  %v124 = vmul.f32 %v85, %v93
  %v125 = vmul.f32 %v86, %v93
  %v126 = vmul.f32 %v87, %v93
  %vm127 = vcmp.gt.f32.partialorder %v95, 0.0
  %vm128 = vcmp.gt.f32.partialorder %v96, 0.0
  %vm129 = vcmp.gt.f32.partialorder %v97, 0.0
  %vm130 = vcmp.gt.f32.partialorder %v98, 0.0
  %vm131 = vcmp.gt.f32.partialorder %v99, 0.0
  %vm132 = vcmp.gt.f32.partialorder %v100, 0.0
  %vm133 = vcmp.gt.f32.partialorder %v101, 0.0
  %vm134 = vcmp.gt.f32.partialorder %v102, 0.0
  %vm135 = vcmp.gt.f32.partialorder %v103, 0.0
  %vm136 = vcmp.gt.f32.partialorder %v104, 0.0
  %vm137 = vcmp.gt.f32.partialorder %v105, 0.0
  %vm138 = vcmp.gt.f32.partialorder %v106, 0.0
  %vm139 = vcmp.gt.f32.partialorder %v107, 0.0
  %vm140 = vcmp.gt.f32.partialorder %v108, 0.0
  %vm141 = vcmp.gt.f32.partialorder %v109, 0.0
  %vm142 = vcmp.gt.f32.partialorder %v110, 0.0
  %vm143 = vcmp.gt.f32.partialorder %v111, 0.0
  %vm144 = vcmp.gt.f32.partialorder %v112, 0.0
  %vm145 = vcmp.gt.f32.partialorder %v113, 0.0
  %vm146 = vcmp.gt.f32.partialorder %v114, 0.0
  %vm147 = vcmp.gt.f32.partialorder %v115, 0.0
  %vm148 = vcmp.gt.f32.partialorder %v116, 0.0
  %vm149 = vcmp.gt.f32.partialorder %v117, 0.0
  %vm150 = vcmp.gt.f32.partialorder %v118, 0.0
  %vm151 = vcmp.gt.f32.partialorder %v119, 0.0
  %vm152 = vcmp.gt.f32.partialorder %v120, 0.0
  %vm153 = vcmp.gt.f32.partialorder %v121, 0.0
  %vm154 = vcmp.gt.f32.partialorder %v122, 0.0
  %vm155 = vcmp.gt.f32.partialorder %v123, 0.0
  %vm156 = vcmp.gt.f32.partialorder %v124, 0.0
  %vm157 = vcmp.gt.f32.partialorder %v125, 0.0
  %vm158 = vcmp.gt.f32.partialorder %v126, 0.0
  %v159 = vmul.f32 %v95, 0.2
  %v160 = vmul.f32 %v96, 0.2
  %v161 = vmul.f32 %v97, 0.2
  %v162 = vmul.f32 %v98, 0.2
  %v163 = vmul.f32 %v99, 0.2
  %v164 = vmul.f32 %v100, 0.2
  %v165 = vmul.f32 %v101, 0.2
  %v166 = vmul.f32 %v102, 0.2
  %v167 = vmul.f32 %v103, 0.2
  %v168 = vmul.f32 %v104, 0.2
  %v169 = vmul.f32 %v105, 0.2
  %v170 = vmul.f32 %v106, 0.2
  %v171 = vmul.f32 %v107, 0.2
  %v172 = vmul.f32 %v108, 0.2
  %v173 = vmul.f32 %v109, 0.2
  %v174 = vmul.f32 %v110, 0.2
  %v175 = vmul.f32 %v111, 0.2
  %v176 = vmul.f32 %v112, 0.2
  %v177 = vmul.f32 %v113, 0.2
  %v178 = vmul.f32 %v114, 0.2
  %v179 = vmul.f32 %v115, 0.2
  %v180 = vmul.f32 %v116, 0.2
  %v181 = vmul.f32 %v117, 0.2
  %v182 = vmul.f32 %v118, 0.2
  %v183 = vmul.f32 %v119, 0.2
  %v184 = vmul.f32 %v120, 0.2
  %v185 = vmul.f32 %v121, 0.2
  %v186 = vmul.f32 %v122, 0.2
  %v187 = vmul.f32 %v123, 0.2
  %v188 = vmul.f32 %v124, 0.2
  %v189 = vmul.f32 %v125, 0.2
  %v190 = vmul.f32 %v126, 0.2
  %v191 = vsel %vm127, %v95, %v159
  %v192 = vsel %vm128, %v96, %v160
  %v193 = vsel %vm129, %v97, %v161
  %v194 = vsel %vm130, %v98, %v162
  %v195 = vsel %vm131, %v99, %v163
  %v196 = vsel %vm132, %v100, %v164
  %v197 = vsel %vm133, %v101, %v165
  %v198 = vsel %vm134, %v102, %v166
  %v199 = vsel %vm135, %v103, %v167
  %v200 = vsel %vm136, %v104, %v168
  %v201 = vsel %vm137, %v105, %v169
  %v202 = vsel %vm138, %v106, %v170
  %v203 = vsel %vm139, %v107, %v171
  %v204 = vsel %vm140, %v108, %v172
  %v205 = vsel %vm141, %v109, %v173
  %v206 = vsel %vm142, %v110, %v174
  %v207 = vsel %vm143, %v111, %v175
  %v208 = vsel %vm144, %v112, %v176
  %v209 = vsel %vm145, %v113, %v177
  %v210 = vsel %vm146, %v114, %v178
  %v211 = vsel %vm147, %v115, %v179
  %v212 = vsel %vm148, %v116, %v180
  %v213 = vsel %vm149, %v117, %v181
  %v214 = vsel %vm150, %v118, %v182
  %v215 = vsel %vm151, %v119, %v183
  %v216 = vsel %vm152, %v120, %v184
  %v217 = vsel %vm153, %v121, %v185
  %v218 = vsel %vm154, %v122, %v186
  %v219 = vsel %vm155, %v123, %v187
  %v220 = vsel %vm156, %v124, %v188
  %v221 = vsel %vm157, %v125, %v189
  %v222 = vsel %vm158, %v126, %v190
  %v223 = vld [vmem:[%s3] sm:$0xff]
  %v224 = vld [vmem:[%s3 + $0x8] sm:$0xff]
  %v225 = vld [vmem:[%s3 + $0x10] sm:$0xff]
  %v226 = vld [vmem:[%s3 + $0x18] sm:$0x1]
  %v227 = vmul.f32 %v191, %v223
  %v228 = vmul.f32 %v192, %v224
  %v229 = vmul.f32 %v193, %v225
  %v230 = vmul.f32 %v194, %v226
  %v231 = vmul.f32 %v195, %v223
  %v232 = vmul.f32 %v196, %v224
  %v233 = vmul.f32 %v197, %v225
  %v234 = vmul.f32 %v198, %v226
  %v235 = vmul.f32 %v199, %v223
  %v236 = vmul.f32 %v200, %v224
  %v237 = vmul.f32 %v201, %v225
  %v238 = vmul.f32 %v202, %v226
  %v239 = vmul.f32 %v203, %v223
  %v240 = vmul.f32 %v204, %v224
  %v241 = vmul.f32 %v205, %v225
  %v242 = vmul.f32 %v206, %v226
  %v243 = vmul.f32 %v207, %v223
  %v244 = vmul.f32 %v208, %v224
  %v245 = vmul.f32 %v209, %v225
  %v246 = vmul.f32 %v210, %v226
  %v247 = vmul.f32 %v211, %v223
  %v248 = vmul.f32 %v212, %v224
  %v249 = vmul.f32 %v213, %v225
  %v250 = vmul.f32 %v214, %v226
  %v251 = vmul.f32 %v215, %v223
  %v252 = vmul.f32 %v216, %v224
  %v253 = vmul.f32 %v217, %v225
  %v254 = vmul.f32 %v218, %v226
  %v255 = vmul.f32 %v219, %v223
  %v256 = vmul.f32 %v220, %v224
  %v257 = vmul.f32 %v221, %v225
  %v258 = vmul.f32 %v222, %v226
  %vm259 = vcmask 523264
  %v260 = vsel %vm259, %v227, 0.0
  %261 = vadd.xlane.f32.xlu0 %v260
  %v262 = vpop.xlane.xlu0 %261
  %v263 = vsel %vm259, %v228, 0.0
  %264 = vadd.xlane.f32.xlu0 %v263
  %v265 = vpop.xlane.xlu0 %264
  %v266 = vsel %vm259, %v229, 0.0
  %267 = vadd.xlane.f32.xlu0 %v266
  %v268 = vpop.xlane.xlu0 %267
  %vm269 = vcmask 516096
  %v270 = vsel %vm269, %v230, 0.0
  %271 = vadd.xlane.f32.xlu0 %v270
  %v272 = vpop.xlane.xlu0 %271
  %v273 = vsel %vm259, %v231, 0.0
  %274 = vadd.xlane.f32.xlu0 %v273
  %v275 = vpop.xlane.xlu0 %274
  %v276 = vsel %vm259, %v232, 0.0
  %277 = vadd.xlane.f32.xlu0 %v276
  %v278 = vpop.xlane.xlu0 %277
  %v279 = vsel %vm259, %v233, 0.0
  %280 = vadd.xlane.f32.xlu0 %v279
  %v281 = vpop.xlane.xlu0 %280
  %v282 = vsel %vm269, %v234, 0.0
  %283 = vadd.xlane.f32.xlu0 %v282
  %v284 = vpop.xlane.xlu0 %283
  %v285 = vsel %vm259, %v235, 0.0
  %286 = vadd.xlane.f32.xlu0 %v285
  %v287 = vpop.xlane.xlu0 %286
  %v288 = vsel %vm259, %v236, 0.0
  %289 = vadd.xlane.f32.xlu0 %v288
  %v290 = vpop.xlane.xlu0 %289
  %v291 = vsel %vm259, %v237, 0.0
  %292 = vadd.xlane.f32.xlu0 %v291
  %v293 = vpop.xlane.xlu0 %292
  %v294 = vsel %vm269, %v238, 0.0
  %295 = vadd.xlane.f32.xlu0 %v294
  %v296 = vpop.xlane.xlu0 %295
  %v297 = vsel %vm259, %v239, 0.0
  %298 = vadd.xlane.f32.xlu0 %v297
  %v299 = vpop.xlane.xlu0 %298
  %v300 = vsel %vm259, %v240, 0.0
  %301 = vadd.xlane.f32.xlu0 %v300
  %v302 = vpop.xlane.xlu0 %301
  %v303 = vsel %vm259, %v241, 0.0
  %304 = vadd.xlane.f32.xlu0 %v303
  %v305 = vpop.xlane.xlu0 %304
  %v306 = vsel %vm269, %v242, 0.0
  %307 = vadd.xlane.f32.xlu0 %v306
  %v308 = vpop.xlane.xlu0 %307
  %v309 = vsel %vm259, %v243, 0.0
  %310 = vadd.xlane.f32.xlu0 %v309
  %v311 = vpop.xlane.xlu0 %310
  %v312 = vsel %vm259, %v244, 0.0
  %313 = vadd.xlane.f32.xlu0 %v312
  %v314 = vpop.xlane.xlu0 %313
  %v315 = vsel %vm259, %v245, 0.0
  %316 = vadd.xlane.f32.xlu0 %v315
  %v317 = vpop.xlane.xlu0 %316
  %v318 = vsel %vm269, %v246, 0.0
  %319 = vadd.xlane.f32.xlu0 %v318
  %v320 = vpop.xlane.xlu0 %319
  %v321 = vsel %vm259, %v247, 0.0
  %322 = vadd.xlane.f32.xlu0 %v321
  %v323 = vpop.xlane.xlu0 %322
  %v324 = vsel %vm259, %v248, 0.0
  %325 = vadd.xlane.f32.xlu0 %v324
  %v326 = vpop.xlane.xlu0 %325
  %v327 = vsel %vm259, %v249, 0.0
  %328 = vadd.xlane.f32.xlu0 %v327
  %v329 = vpop.xlane.xlu0 %328
  %v330 = vsel %vm269, %v250, 0.0
  %331 = vadd.xlane.f32.xlu0 %v330
  %v332 = vpop.xlane.xlu0 %331
  %v333 = vsel %vm259, %v251, 0.0
  %334 = vadd.xlane.f32.xlu0 %v333
  %v335 = vpop.xlane.xlu0 %334
  %v336 = vsel %vm259, %v252, 0.0
  %337 = vadd.xlane.f32.xlu0 %v336
  %v338 = vpop.xlane.xlu0 %337
  %v339 = vsel %vm259, %v253, 0.0
  %340 = vadd.xlane.f32.xlu0 %v339
  %v341 = vpop.xlane.xlu0 %340
  %v342 = vsel %vm269, %v254, 0.0
  %343 = vadd.xlane.f32.xlu0 %v342
  %v344 = vpop.xlane.xlu0 %343
  %v345 = vsel %vm259, %v255, 0.0
  %346 = vadd.xlane.f32.xlu0 %v345
  %v347 = vpop.xlane.xlu0 %346
  %v348 = vsel %vm259, %v256, 0.0
  %349 = vadd.xlane.f32.xlu0 %v348
  %v350 = vpop.xlane.xlu0 %349
  %v351 = vsel %vm259, %v257, 0.0
  %352 = vadd.xlane.f32.xlu0 %v351
  %v353 = vpop.xlane.xlu0 %352
  %v354 = vsel %vm269, %v258, 0.0
  %355 = vadd.xlane.f32.xlu0 %v354
  %v356 = vpop.xlane.xlu0 %355
  %v389 = vlaneseq
  %v390 = vand.u32 %v389, 127
  %v391 = vlaneseq
  %v392 = vshrl.u32 %v391, 7
  %v393 = vsub.s32 %v390, %v392
  %v394 = vrot.slane %v262, %v393
  %v395 = vadd.s32 %v390, 4294967288
  %v396 = vlaneseq
  %v397 = vshrl.u32 %v396, 7
  %v398 = vsub.s32 %v395, %v397
  %v399 = vrot.slane %v265, %v398
  %vm400 = vcmask 130112
  %v401 = vsel %vm400, %v399, %v394
  %v402 = vadd.s32 %v390, 4294967280
  %v403 = vlaneseq
  %v404 = vshrl.u32 %v403, 7
  %v405 = vsub.s32 %v402, %v404
  %v406 = vrot.slane %v268, %v405
  %vm407 = vcmask 195712
  %v408 = vsel %vm407, %v406, %v401
  %v409 = vadd.s32 %v390, 4294967272
  %v410 = vlaneseq
  %v411 = vshrl.u32 %v410, 7
  %v412 = vsub.s32 %v409, %v411
  %v413 = vrot.slane %v272, %v412
  %vm414 = vcmask 261312
  %v415 = vsel %vm414, %v413, %v408
  %v416 = vlaneseq
  %v417 = vshrl.u32 %v416, 7
  %v418 = vsub.s32 %v390, %v417
  %v419 = vrot.slane %v275, %v418
  %v420 = vlaneseq
  %v421 = vshrl.u32 %v420, 7
  %v422 = vsub.s32 %v395, %v421
  %v423 = vrot.slane %v278, %v422
  %v424 = vsel %vm400, %v423, %v419
  %v425 = vlaneseq
  %v426 = vshrl.u32 %v425, 7
  %v427 = vsub.s32 %v402, %v426
  %v428 = vrot.slane %v281, %v427
  %v429 = vsel %vm407, %v428, %v424
  %v430 = vlaneseq
  %v431 = vshrl.u32 %v430, 7
  %v432 = vsub.s32 %v409, %v431
  %v433 = vrot.slane %v284, %v432
  %v434 = vsel %vm414, %v433, %v429
  %v435 = vlaneseq
  %v436 = vshrl.u32 %v435, 7
  %v437 = vsub.s32 %v390, %v436
  %v438 = vrot.slane %v287, %v437
  %v439 = vlaneseq
  %v440 = vshrl.u32 %v439, 7
  %v441 = vsub.s32 %v395, %v440
  %v442 = vrot.slane %v290, %v441
  %v443 = vsel %vm400, %v442, %v438
  %v444 = vlaneseq
  %v445 = vshrl.u32 %v444, 7
  %v446 = vsub.s32 %v402, %v445
  %v447 = vrot.slane %v293, %v446
  %v448 = vsel %vm407, %v447, %v443
  %v449 = vlaneseq
  %v450 = vshrl.u32 %v449, 7
  %v451 = vsub.s32 %v409, %v450
  %v452 = vrot.slane %v296, %v451
  %v453 = vsel %vm414, %v452, %v448
  %v454 = vlaneseq
  %v455 = vshrl.u32 %v454, 7
  %v456 = vsub.s32 %v390, %v455
  %v457 = vrot.slane %v299, %v456
  %v458 = vlaneseq
  %v459 = vshrl.u32 %v458, 7
  %v460 = vsub.s32 %v395, %v459
  %v461 = vrot.slane %v302, %v460
  %v462 = vsel %vm400, %v461, %v457
  %v463 = vlaneseq
  %v464 = vshrl.u32 %v463, 7
  %v465 = vsub.s32 %v402, %v464
  %v466 = vrot.slane %v305, %v465
  %v467 = vsel %vm407, %v466, %v462
  %v468 = vlaneseq
  %v469 = vshrl.u32 %v468, 7
  %v470 = vsub.s32 %v409, %v469
  %v471 = vrot.slane %v308, %v470
  %v472 = vsel %vm414, %v471, %v467
  %v473 = vlaneseq
  %v474 = vshrl.u32 %v473, 7
  %v475 = vsub.s32 %v390, %v474
  %v476 = vrot.slane %v311, %v475
  %v477 = vlaneseq
  %v478 = vshrl.u32 %v477, 7
  %v479 = vsub.s32 %v395, %v478
  %v480 = vrot.slane %v314, %v479
  %v481 = vsel %vm400, %v480, %v476
  %v482 = vlaneseq
  %v483 = vshrl.u32 %v482, 7
  %v484 = vsub.s32 %v402, %v483
  %v485 = vrot.slane %v317, %v484
  %v486 = vsel %vm407, %v485, %v481
  %v487 = vlaneseq
  %v488 = vshrl.u32 %v487, 7
  %v489 = vsub.s32 %v409, %v488
  %v490 = vrot.slane %v320, %v489
  %v491 = vsel %vm414, %v490, %v486
  %v492 = vlaneseq
  %v493 = vshrl.u32 %v492, 7
  %v494 = vsub.s32 %v390, %v493
  %v495 = vrot.slane %v323, %v494
  %v496 = vlaneseq
  %v497 = vshrl.u32 %v496, 7
  %v498 = vsub.s32 %v395, %v497
  %v499 = vrot.slane %v326, %v498
  %v500 = vsel %vm400, %v499, %v495
  %v501 = vlaneseq
  %v502 = vshrl.u32 %v501, 7
  %v503 = vsub.s32 %v402, %v502
  %v504 = vrot.slane %v329, %v503
  %v505 = vsel %vm407, %v504, %v500
  %v506 = vlaneseq
  %v507 = vshrl.u32 %v506, 7
  %v508 = vsub.s32 %v409, %v507
  %v509 = vrot.slane %v332, %v508
  %v510 = vsel %vm414, %v509, %v505
  %v511 = vlaneseq
  %v512 = vshrl.u32 %v511, 7
  %v513 = vsub.s32 %v390, %v512
  %v514 = vrot.slane %v335, %v513
  %v515 = vlaneseq
  %v516 = vshrl.u32 %v515, 7
  %v517 = vsub.s32 %v395, %v516
  %v518 = vrot.slane %v338, %v517
  %v519 = vsel %vm400, %v518, %v514
  %v520 = vlaneseq
  %v521 = vshrl.u32 %v520, 7
  %v522 = vsub.s32 %v402, %v521
  %v523 = vrot.slane %v341, %v522
  %v524 = vsel %vm407, %v523, %v519
  %v525 = vlaneseq
  %v526 = vshrl.u32 %v525, 7
  %v527 = vsub.s32 %v409, %v526
  %v528 = vrot.slane %v344, %v527
  %v529 = vsel %vm414, %v528, %v524
  %v530 = vlaneseq
  %v531 = vshrl.u32 %v530, 7
  %v532 = vsub.s32 %v390, %v531
  %v533 = vrot.slane %v347, %v532
  %v534 = vlaneseq
  %v535 = vshrl.u32 %v534, 7
  %v536 = vsub.s32 %v395, %v535
  %v537 = vrot.slane %v350, %v536
  %v538 = vsel %vm400, %v537, %v533
  %v539 = vlaneseq
  %v540 = vshrl.u32 %v539, 7
  %v541 = vsub.s32 %v402, %v540
  %v542 = vrot.slane %v353, %v541
  %v543 = vsel %vm407, %v542, %v538
  %v544 = vlaneseq
  %v545 = vshrl.u32 %v544, 7
  %v546 = vsub.s32 %v409, %v545
  %v547 = vrot.slane %v356, %v546
  %v548 = vsel %vm414, %v547, %v543
  %vm549 = vcmask 1041409
  %v550 = vsel %vm549, %v434, %v415
  %vm551 = vcmask 1042434
  %v552 = vsel %vm551, %v453, %v550
  %vm553 = vcmask 1043459
  %v554 = vsel %vm553, %v472, %v552
  %vm555 = vcmask 1044484
  %v556 = vsel %vm555, %v491, %v554
  %vm557 = vcmask 1045509
  %v558 = vsel %vm557, %v510, %v556
  %vm559 = vcmask 1046534
  %v560 = vsel %vm559, %v529, %v558
  %vm561 = vcmask 1047559
  %v562 = vsel %vm561, %v548, %v560
  %vm564 = vcmask 203776
  %v565 = vsel %vm564, %v562, 0.0
  %566 = vadd.xlane.f32.xlu0 %v565
  %v567 = vpop.xlane.xlu0 %566
  %v568 = vxor.u32 %v567, 2147483648
  %v569 = vmul.f32 %v568, 1.442695
  %v570 = vpow.pop %v569
  %v571 = vadd.f32 %v570, 1.0
  %v572 = vrcp.pop %v571
  %v573 = vmul.f32 1.0, %v572
  %vm574 = vcmask 7168
  %575 = vst.msk [vmem:[%s4] sm:$0xff] %vm574, %v573
  // Predicated region
  $region18: #{discriminator1_forward.5} parent=0 // pred_check
    _
  $region19: #{discriminator1_forward.5} parent=0 // pred_check_branch
    %577 = sbr.rel (0) target = $region21
  $region20: #{discriminator1_forward.5} parent=0 // pred_region
    _
  $region21: #{discriminator1_forward.5} parent=0 // pred_fallthru
    _
  // Predicated region
  $region22: #{discriminator1_forward.5} parent=0 // pred_check
    _
  $region23: #{discriminator1_forward.5} parent=0 // pred_check_branch
    %579 = sbr.rel (0) target = $region25
  $region24: #{discriminator1_forward.5} parent=0 // pred_region
    _
  $region25: #{discriminator1_forward.5} parent=0 // pred_fallthru
    _

// kernel: discriminator1_forward.4
$region0: #{discriminator1_forward.4}
  #allocation0 [shape = 'u32[]', space=smem, size = 0x4, offset = 0x4, fixed_abs, tag = 'smem constant byte address 0x4 - core index']
  #allocation1 [shape = 'u32[144,128]{1,0:T(1,128)}', space=vmem, size = 0x12000, scoped, tag = 'internal scratch']
  %s0 = inlined_call_operand.vmem [shape: f32[200,800], index: 0, kind: input, shape index: {}]
  %s1 = inlined_call_operand.vmem [shape: f32[800,64], index: 1, kind: input, shape index: {}]
  %s2 = inlined_call_operand.vmem [shape: f32[200,64], index: 2, kind: output, shape index: {0}]
  %s3 = inlined_call_operand.vmem [shape: f32[1,1,64], index: 3, kind: output, shape index: {1}]
  %s4 = inlined_call_operand.vmem [shape: f32[1,1,64], index: 4, kind: output, shape index: {2}]
  %5 = xla_tuple %s2, %s3, %s4
  %s6 = sld [smem:[#allocation0]]
  $region34: #{discriminator1_forward.4} parent=0
    _
  %s8 = ssub.s32 1, %s6
  %s9 = scalar_select 0, %s8, %s6
  // Predicated region
  $region2: #{discriminator1_forward.4} parent=0 // pred_check
    _
  $region3: #{discriminator1_forward.4} parent=0 // pred_check_branch
    %11 = sbr.rel (0) target = $region5
  $region4: #{discriminator1_forward.4} parent=0 // pred_region
    _
  $region5: #{discriminator1_forward.4} parent=0 // pred_fallthru
    _
  // Predicated region
  $region6: #{discriminator1_forward.4} parent=0 // pred_check
    _
  $region7: #{discriminator1_forward.4} parent=0 // pred_check_branch
    %13 = sbr.rel (0) target = $region9
  $region8: #{discriminator1_forward.4} parent=0 // pred_region
    _
  $region9: #{discriminator1_forward.4} parent=0 // pred_fallthru
    _
  %v14 = vld [vmem:[%s0] sm:$0xff]
  %v15 = vld [vmem:[%s0 + $0x8] sm:$0xff]
  %v16 = vld [vmem:[%s0 + $0x10] sm:$0xff]
  %v17 = vld [vmem:[%s0 + $0x18] sm:$0xff]
  %v18 = vld [vmem:[%s0 + $0x20] sm:$0xff]
  %v19 = vld [vmem:[%s0 + $0x28] sm:$0xff]
  %v20 = vld [vmem:[%s0 + $0x30] sm:$0xff]
  %v21 = vld [vmem:[%s0 + $0x38] sm:$0xff]
  %v22 = vld [vmem:[%s0 + $0x40] sm:$0xff]
  %v23 = vld [vmem:[%s0 + $0x48] sm:$0xff]
  %v24 = vld [vmem:[%s0 + $0x50] sm:$0xff]
  %v25 = vld [vmem:[%s0 + $0x58] sm:$0xff]
  %v26 = vld [vmem:[%s0 + $0x60] sm:$0xff]
  %v27 = vld [vmem:[%s0 + $0x68] sm:$0xff]
  %v28 = vld [vmem:[%s0 + $0x70] sm:$0xff]
  %v29 = vld [vmem:[%s0 + $0x78] sm:$0xff]
  %v30 = vld [vmem:[%s0 + $0x80] sm:$0xff]
  %v31 = vld [vmem:[%s0 + $0x88] sm:$0xff]
  %v32 = vld [vmem:[%s0 + $0x90] sm:$0xff]
  %v33 = vld [vmem:[%s0 + $0x98] sm:$0xff]
  %v34 = vld [vmem:[%s0 + $0xa0] sm:$0xff]
  %v35 = vld [vmem:[%s0 + $0xa8] sm:$0xff]
  %v36 = vld [vmem:[%s0 + $0xb0] sm:$0xff]
  %v37 = vld [vmem:[%s0 + $0xb8] sm:$0xff]
  %v38 = vld [vmem:[%s0 + $0xc0] sm:$0xff]
  %v39 = vld [vmem:[%s0 + $0xc8] sm:$0xff]
  %v40 = vld [vmem:[%s0 + $0xd0] sm:$0xff]
  %v41 = vld [vmem:[%s0 + $0xd8] sm:$0xff]
  %v42 = vld [vmem:[%s0 + $0xe0] sm:$0xff]
  %v43 = vld [vmem:[%s0 + $0xe8] sm:$0xff]
  %v44 = vld [vmem:[%s0 + $0xf0] sm:$0xff]
  %v45 = vld [vmem:[%s0 + $0xf8] sm:$0xff]
  %v46 = vld [vmem:[%s0 + $0x100] sm:$0xff]
  %v47 = vld [vmem:[%s0 + $0x108] sm:$0xff]
  %v48 = vld [vmem:[%s0 + $0x110] sm:$0xff]
  %v49 = vld [vmem:[%s0 + $0x118] sm:$0xff]
  %v50 = vld [vmem:[%s0 + $0x120] sm:$0xff]
  %v51 = vld [vmem:[%s0 + $0x128] sm:$0xff]
  %v52 = vld [vmem:[%s0 + $0x130] sm:$0xff]
  %v53 = vld [vmem:[%s0 + $0x138] sm:$0xff]
  %v54 = vld [vmem:[%s0 + $0x140] sm:$0xff]
  %v55 = vld [vmem:[%s0 + $0x148] sm:$0xff]
  %v56 = vld [vmem:[%s0 + $0x150] sm:$0xff]
  %v57 = vld [vmem:[%s0 + $0x158] sm:$0xff]
  %v58 = vld [vmem:[%s0 + $0x160] sm:$0xff]
  %v59 = vld [vmem:[%s0 + $0x168] sm:$0xff]
  %v60 = vld [vmem:[%s0 + $0x170] sm:$0xff]
  %v61 = vld [vmem:[%s0 + $0x178] sm:$0xff]
  %v62 = vld [vmem:[%s0 + $0x180] sm:$0xff]
  %v63 = vld [vmem:[%s0 + $0x188] sm:$0xff]
  %v64 = vld [vmem:[%s0 + $0x190] sm:$0xff]
  %v65 = vld [vmem:[%s0 + $0x198] sm:$0xff]
  %v66 = vld [vmem:[%s0 + $0x1a0] sm:$0xff]
  %v67 = vld [vmem:[%s0 + $0x1a8] sm:$0xff]
  %v68 = vld [vmem:[%s0 + $0x1b0] sm:$0xff]
  %v69 = vld [vmem:[%s0 + $0x1b8] sm:$0xff]
  %v70 = vld [vmem:[%s0 + $0x1c0] sm:$0xff]
  %v71 = vld [vmem:[%s0 + $0x1c8] sm:$0xff]
  %v72 = vld [vmem:[%s0 + $0x1d0] sm:$0xff]
  %v73 = vld [vmem:[%s0 + $0x1d8] sm:$0xff]
  %v74 = vld [vmem:[%s0 + $0x1e0] sm:$0xff]
  %v75 = vld [vmem:[%s0 + $0x1e8] sm:$0xff]
  %v76 = vld [vmem:[%s0 + $0x1f0] sm:$0xff]
  %v77 = vld [vmem:[%s0 + $0x1f8] sm:$0xff]
  %v78 = vld [vmem:[%s0 + $0x200] sm:$0xff]
  %v79 = vld [vmem:[%s0 + $0x208] sm:$0xff]
  %v80 = vld [vmem:[%s0 + $0x210] sm:$0xff]
  %v81 = vld [vmem:[%s0 + $0x218] sm:$0xff]
  %v82 = vld [vmem:[%s0 + $0x220] sm:$0xff]
  %v83 = vld [vmem:[%s0 + $0x228] sm:$0xff]
  %v84 = vld [vmem:[%s0 + $0x230] sm:$0xff]
  %v85 = vld [vmem:[%s0 + $0x238] sm:$0xff]
  %v86 = vld [vmem:[%s0 + $0x240] sm:$0xff]
  %v87 = vld [vmem:[%s0 + $0x248] sm:$0xff]
  %v88 = vld [vmem:[%s0 + $0x250] sm:$0xff]
  %v89 = vld [vmem:[%s0 + $0x258] sm:$0xff]
  %v90 = vld [vmem:[%s0 + $0x260] sm:$0xff]
  %v91 = vld [vmem:[%s0 + $0x268] sm:$0xff]
  %v92 = vld [vmem:[%s0 + $0x270] sm:$0xff]
  %v93 = vld [vmem:[%s0 + $0x278] sm:$0xff]
  %v94 = vld [vmem:[%s0 + $0x280] sm:$0xff]
  %v95 = vld [vmem:[%s0 + $0x288] sm:$0xff]
  %v96 = vld [vmem:[%s0 + $0x290] sm:$0xff]
  %v97 = vld [vmem:[%s0 + $0x298] sm:$0xff]
  %v98 = vld [vmem:[%s0 + $0x2a0] sm:$0xff]
  %v99 = vld [vmem:[%s0 + $0x2a8] sm:$0xff]
  %v100 = vld [vmem:[%s0 + $0x2b0] sm:$0xff]
  %v101 = vld [vmem:[%s0 + $0x2b8] sm:$0xff]
  %v102 = vld [vmem:[%s0 + $0x2c0] sm:$0xff]
  %v103 = vld [vmem:[%s0 + $0x2c8] sm:$0xff]
  %v104 = vld [vmem:[%s0 + $0x2d0] sm:$0xff]
  %v105 = vld [vmem:[%s0 + $0x2d8] sm:$0xff]
  %v106 = vld [vmem:[%s0 + $0x2e0] sm:$0xff]
  %v107 = vld [vmem:[%s0 + $0x2e8] sm:$0xff]
  %v108 = vld [vmem:[%s0 + $0x2f0] sm:$0xff]
  %v109 = vld [vmem:[%s0 + $0x2f8] sm:$0xff]
  %v110 = vld [vmem:[%s0 + $0x300] sm:$0xff]
  %v111 = vld [vmem:[%s0 + $0x308] sm:$0xff]
  %v112 = vld [vmem:[%s0 + $0x310] sm:$0xff]
  %v113 = vld [vmem:[%s0 + $0x318] sm:$0xff]
  %v114 = vld [vmem:[%s0 + $0x320] sm:$0xff]
  %v115 = vld [vmem:[%s0 + $0x328] sm:$0xff]
  %v116 = vld [vmem:[%s0 + $0x330] sm:$0xff]
  %v117 = vld [vmem:[%s0 + $0x338] sm:$0xff]
  %v118 = vld [vmem:[%s0 + $0x340] sm:$0xff]
  %v119 = vld [vmem:[%s0 + $0x348] sm:$0xff]
  %v120 = vld [vmem:[%s0 + $0x350] sm:$0xff]
  %v121 = vld [vmem:[%s0 + $0x358] sm:$0xff]
  %v122 = vld [vmem:[%s0 + $0x360] sm:$0xff]
  %v123 = vld [vmem:[%s0 + $0x368] sm:$0xff]
  %v124 = vld [vmem:[%s0 + $0x370] sm:$0xff]
  %v125 = vld [vmem:[%s0 + $0x378] sm:$0xff]
  %v126 = vld [vmem:[%s0 + $0x380] sm:$0xff]
  %v127 = vld [vmem:[%s0 + $0x388] sm:$0xff]
  %v128 = vld [vmem:[%s0 + $0x390] sm:$0xff]
  %v129 = vld [vmem:[%s0 + $0x398] sm:$0xff]
  %v130 = vld [vmem:[%s0 + $0x3a0] sm:$0xff]
  %v131 = vld [vmem:[%s0 + $0x3a8] sm:$0xff]
  %v132 = vld [vmem:[%s0 + $0x3b0] sm:$0xff]
  %v133 = vld [vmem:[%s0 + $0x3b8] sm:$0xff]
  %v134 = vld [vmem:[%s0 + $0x3c0] sm:$0xff]
  %v135 = vld [vmem:[%s0 + $0x3c8] sm:$0xff]
  %v136 = vld [vmem:[%s0 + $0x3d0] sm:$0xff]
  %v137 = vld [vmem:[%s0 + $0x3d8] sm:$0xff]
  %v138 = vld [vmem:[%s0 + $0x3e0] sm:$0xff]
  %v139 = vld [vmem:[%s0 + $0x3e8] sm:$0xff]
  %v140 = vld [vmem:[%s0 + $0x3f0] sm:$0xff]
  %v141 = vld [vmem:[%s0 + $0x3f8] sm:$0xff]
  %v142 = vld [vmem:[%s0 + $0x400] sm:$0xff]
  %v143 = vld [vmem:[%s0 + $0x408] sm:$0xff]
  %v144 = vld [vmem:[%s0 + $0x410] sm:$0xff]
  %v145 = vld [vmem:[%s0 + $0x418] sm:$0xff]
  %v146 = vld [vmem:[%s0 + $0x420] sm:$0xff]
  %v147 = vld [vmem:[%s0 + $0x428] sm:$0xff]
  %v148 = vld [vmem:[%s0 + $0x430] sm:$0xff]
  %v149 = vld [vmem:[%s0 + $0x438] sm:$0xff]
  %v150 = vld [vmem:[%s0 + $0x440] sm:$0xff]
  %v151 = vld [vmem:[%s0 + $0x448] sm:$0xff]
  %v152 = vld [vmem:[%s0 + $0x450] sm:$0xff]
  %v153 = vld [vmem:[%s0 + $0x458] sm:$0xff]
  %v154 = vld [vmem:[%s0 + $0x460] sm:$0xff]
  %v155 = vld [vmem:[%s0 + $0x468] sm:$0xff]
  %v156 = vld [vmem:[%s0 + $0x470] sm:$0xff]
  %v157 = vld [vmem:[%s0 + $0x478] sm:$0xff]
  %v158 = vld [vmem:[%s0 + $0x480] sm:$0xff]
  %v159 = vld [vmem:[%s0 + $0x488] sm:$0xff]
  %v160 = vld [vmem:[%s0 + $0x490] sm:$0xff]
  %v161 = vld [vmem:[%s0 + $0x498] sm:$0xff]
  %v162 = vld [vmem:[%s0 + $0x4a0] sm:$0xff]
  %v163 = vld [vmem:[%s0 + $0x4a8] sm:$0xff]
  %v164 = vld [vmem:[%s0 + $0x4b0] sm:$0xff]
  %v165 = vld [vmem:[%s0 + $0x4b8] sm:$0xff]
  %v166 = vld [vmem:[%s0 + $0x4c0] sm:$0xff]
  %v167 = vld [vmem:[%s0 + $0x4c8] sm:$0xff]
  %v168 = vld [vmem:[%s0 + $0x4d0] sm:$0xff]
  %v169 = vld [vmem:[%s0 + $0x4d8] sm:$0xff]
  %v170 = vld [vmem:[%s0 + $0x4e0] sm:$0xff]
  %v171 = vld [vmem:[%s0 + $0x4e8] sm:$0xff]
  %v172 = vld [vmem:[%s0 + $0x4f0] sm:$0xff]
  %v173 = vld [vmem:[%s0 + $0x4f8] sm:$0xff]
  %v174 = vld [vmem:[%s0 + $0x500] sm:$0xff]
  %v175 = vld [vmem:[%s0 + $0x508] sm:$0xff]
  %v176 = vld [vmem:[%s0 + $0x510] sm:$0xff]
  %v177 = vld [vmem:[%s0 + $0x518] sm:$0xff]
  %v178 = vld [vmem:[%s0 + $0x520] sm:$0xff]
  %v179 = vld [vmem:[%s0 + $0x528] sm:$0xff]
  %v180 = vld [vmem:[%s0 + $0x530] sm:$0xff]
  %v181 = vld [vmem:[%s0 + $0x538] sm:$0xff]
  %v182 = vld [vmem:[%s0 + $0x540] sm:$0xff]
  %v183 = vld [vmem:[%s0 + $0x548] sm:$0xff]
  %v184 = vld [vmem:[%s0 + $0x550] sm:$0xff]
  %v185 = vld [vmem:[%s0 + $0x558] sm:$0xff]
  %v186 = vld [vmem:[%s0 + $0x560] sm:$0xff]
  %v187 = vld [vmem:[%s0 + $0x568] sm:$0xff]
  %v188 = vld [vmem:[%s0 + $0x570] sm:$0xff]
  %v189 = vld [vmem:[%s1] sm:$0xff]
  %v190 = vld [vmem:[%s1 + $0x8] sm:$0xff]
  %v191 = vld [vmem:[%s1 + $0x10] sm:$0xff]
  %v192 = vld [vmem:[%s1 + $0x18] sm:$0xff]
  %v193 = vld [vmem:[%s1 + $0x20] sm:$0xff]
  %v194 = vld [vmem:[%s1 + $0x28] sm:$0xff]
  %v195 = vld [vmem:[%s1 + $0x30] sm:$0xff]
  %v196 = vld [vmem:[%s1 + $0x38] sm:$0xff]
  %v197 = vld [vmem:[%s1 + $0x40] sm:$0xff]
  %v198 = vld [vmem:[%s1 + $0x48] sm:$0xff]
  %v199 = vld [vmem:[%s1 + $0x50] sm:$0xff]
  %v200 = vld [vmem:[%s1 + $0x58] sm:$0xff]
  %v201 = vld [vmem:[%s1 + $0x60] sm:$0xff]
  %v202 = vld [vmem:[%s1 + $0x68] sm:$0xff]
  %v203 = vld [vmem:[%s1 + $0x70] sm:$0xff]
  %v204 = vld [vmem:[%s1 + $0x78] sm:$0xff]
  %v205 = vld [vmem:[%s1 + $0x80] sm:$0xff]
  %v206 = vld [vmem:[%s1 + $0x88] sm:$0xff]
  %v207 = vld [vmem:[%s1 + $0x90] sm:$0xff]
  %v208 = vld [vmem:[%s1 + $0x98] sm:$0xff]
  %v209 = vld [vmem:[%s1 + $0xa0] sm:$0xff]
  %v210 = vld [vmem:[%s1 + $0xa8] sm:$0xff]
  %v211 = vld [vmem:[%s1 + $0xb0] sm:$0xff]
  %v212 = vld [vmem:[%s1 + $0xb8] sm:$0xff]
  %v213 = vld [vmem:[%s1 + $0xc0] sm:$0xff]
  %v214 = vld [vmem:[%s1 + $0xc8] sm:$0xff]
  %v215 = vld [vmem:[%s1 + $0xd0] sm:$0xff]
  %v216 = vld [vmem:[%s1 + $0xd8] sm:$0xff]
  %v217 = vld [vmem:[%s1 + $0xe0] sm:$0xff]
  %v218 = vld [vmem:[%s1 + $0xe8] sm:$0xff]
  %v219 = vld [vmem:[%s1 + $0xf0] sm:$0xff]
  %v220 = vld [vmem:[%s1 + $0xf8] sm:$0xff]
  %v221 = vld [vmem:[%s1 + $0x100] sm:$0xff]
  %v222 = vld [vmem:[%s1 + $0x108] sm:$0xff]
  %v223 = vld [vmem:[%s1 + $0x110] sm:$0xff]
  %v224 = vld [vmem:[%s1 + $0x118] sm:$0xff]
  %v225 = vld [vmem:[%s1 + $0x120] sm:$0xff]
  %v226 = vld [vmem:[%s1 + $0x128] sm:$0xff]
  %v227 = vld [vmem:[%s1 + $0x130] sm:$0xff]
  %v228 = vld [vmem:[%s1 + $0x138] sm:$0xff]
  %v229 = vld [vmem:[%s1 + $0x140] sm:$0xff]
  %v230 = vld [vmem:[%s1 + $0x148] sm:$0xff]
  %v231 = vld [vmem:[%s1 + $0x150] sm:$0xff]
  %v232 = vld [vmem:[%s1 + $0x158] sm:$0xff]
  %v233 = vld [vmem:[%s1 + $0x160] sm:$0xff]
  %v234 = vld [vmem:[%s1 + $0x168] sm:$0xff]
  %v235 = vld [vmem:[%s1 + $0x170] sm:$0xff]
  %v236 = vld [vmem:[%s1 + $0x178] sm:$0xff]
  %v237 = vld [vmem:[%s1 + $0x180] sm:$0xff]
  %v238 = vld [vmem:[%s1 + $0x188] sm:$0xff]
  %v239 = vld [vmem:[%s1 + $0x190] sm:$0xff]
  %v240 = vld [vmem:[%s1 + $0x198] sm:$0xff]
  %v241 = vld [vmem:[%s1 + $0x1a0] sm:$0xff]
  %v242 = vld [vmem:[%s1 + $0x1a8] sm:$0xff]
  %v243 = vld [vmem:[%s1 + $0x1b0] sm:$0xff]
  %v244 = vld [vmem:[%s1 + $0x1b8] sm:$0xff]
  %v245 = vld [vmem:[%s1 + $0x1c0] sm:$0xff]
  %v246 = vld [vmem:[%s1 + $0x1c8] sm:$0xff]
  %v247 = vld [vmem:[%s1 + $0x1d0] sm:$0xff]
  %v248 = vld [vmem:[%s1 + $0x1d8] sm:$0xff]
  %v249 = vld [vmem:[%s1 + $0x1e0] sm:$0xff]
  %v250 = vld [vmem:[%s1 + $0x1e8] sm:$0xff]
  %v251 = vld [vmem:[%s1 + $0x1f0] sm:$0xff]
  %v252 = vld [vmem:[%s1 + $0x1f8] sm:$0xff]
  %v253 = vld [vmem:[%s1 + $0x200] sm:$0xff]
  %v254 = vld [vmem:[%s1 + $0x208] sm:$0xff]
  %v255 = vld [vmem:[%s1 + $0x210] sm:$0xff]
  %v256 = vld [vmem:[%s1 + $0x218] sm:$0xff]
  %v257 = vld [vmem:[%s1 + $0x220] sm:$0xff]
  %v258 = vld [vmem:[%s1 + $0x228] sm:$0xff]
  %v259 = vld [vmem:[%s1 + $0x230] sm:$0xff]
  %v260 = vld [vmem:[%s1 + $0x238] sm:$0xff]
  %v261 = vld [vmem:[%s1 + $0x240] sm:$0xff]
  %v262 = vld [vmem:[%s1 + $0x248] sm:$0xff]
  %v263 = vld [vmem:[%s1 + $0x250] sm:$0xff]
  %v264 = vld [vmem:[%s1 + $0x258] sm:$0xff]
  %v265 = vld [vmem:[%s1 + $0x260] sm:$0xff]
  %v266 = vld [vmem:[%s1 + $0x268] sm:$0xff]
  %v267 = vld [vmem:[%s1 + $0x270] sm:$0xff]
  %v268 = vld [vmem:[%s1 + $0x278] sm:$0xff]
  %v269 = vld [vmem:[%s1 + $0x280] sm:$0xff]
  %v270 = vld [vmem:[%s1 + $0x288] sm:$0xff]
  %v271 = vld [vmem:[%s1 + $0x290] sm:$0xff]
  %v272 = vld [vmem:[%s1 + $0x298] sm:$0xff]
  %v273 = vld [vmem:[%s1 + $0x2a0] sm:$0xff]
  %v274 = vld [vmem:[%s1 + $0x2a8] sm:$0xff]
  %v275 = vld [vmem:[%s1 + $0x2b0] sm:$0xff]
  %v276 = vld [vmem:[%s1 + $0x2b8] sm:$0xff]
  %v277 = vld [vmem:[%s1 + $0x2c0] sm:$0xff]
  %v278 = vld [vmem:[%s1 + $0x2c8] sm:$0xff]
  %v279 = vld [vmem:[%s1 + $0x2d0] sm:$0xff]
  %v280 = vld [vmem:[%s1 + $0x2d8] sm:$0xff]
  %v281 = vld [vmem:[%s1 + $0x2e0] sm:$0xff]
  %v282 = vld [vmem:[%s1 + $0x2e8] sm:$0xff]
  %v283 = vld [vmem:[%s1 + $0x2f0] sm:$0xff]
  %v284 = vld [vmem:[%s1 + $0x2f8] sm:$0xff]
  %v285 = vld [vmem:[%s1 + $0x300] sm:$0xff]
  %v286 = vld [vmem:[%s1 + $0x308] sm:$0xff]
  %v287 = vld [vmem:[%s1 + $0x310] sm:$0xff]
  %v288 = vld [vmem:[%s1 + $0x318] sm:$0xff]
  %vm289 = vcmask 261120
  %v291 = vsel %vm289, %v20, 0
  %v294 = vsel %vm289, %v27, 0
  %v297 = vsel %vm289, %v34, 0
  %v300 = vsel %vm289, %v41, 0
  %v303 = vsel %vm289, %v48, 0
  %v306 = vsel %vm289, %v55, 0
  %v309 = vsel %vm289, %v62, 0
  %v312 = vsel %vm289, %v69, 0
  %v315 = vsel %vm289, %v76, 0
  %v318 = vsel %vm289, %v83, 0
  %v321 = vsel %vm289, %v90, 0
  %v324 = vsel %vm289, %v97, 0
  %v327 = vsel %vm289, %v104, 0
  %v330 = vsel %vm289, %v111, 0
  %v333 = vsel %vm289, %v118, 0
  %v336 = vsel %vm289, %v125, 0
  %v339 = vsel %vm289, %v132, 0
  %v342 = vsel %vm289, %v139, 0
  %v345 = vsel %vm289, %v146, 0
  %v348 = vsel %vm289, %v153, 0
  %v351 = vsel %vm289, %v160, 0
  %v354 = vsel %vm289, %v167, 0
  %v357 = vsel %vm289, %v174, 0
  %v360 = vsel %vm289, %v181, 0
  %v363 = vsel %vm289, %v188, 0
  %365 = vmatprep.subr.mxu0 0.0
  %366 = vmatpush1.msra.mxu0 %v189
  %367 = vmatprep.subr.mxu0 0.0
  %368 = vmatpush1.msra.mxu0 %v190
  %369 = vmatprep.subr.mxu0 0.0
  %370 = vmatpush1.msra.mxu0 %v191
  %371 = vmatprep.subr.mxu0 0.0
  %372 = vmatpush1.msra.mxu0 %v192
  %373 = vmatprep.subr.mxu0 0.0
  %374 = vmatpush1.msra.mxu0 %v193
  %375 = vmatprep.subr.mxu0 0.0
  %376 = vmatpush1.msra.mxu0 %v194
  %377 = vmatprep.subr.mxu0 0.0
  %378 = vmatpush1.msra.mxu0 %v195
  %379 = vmatprep.subr.mxu0 0.0
  %380 = vmatpush1.msra.mxu0 %v196
  %381 = vmatprep.subr.mxu0 0.0
  %382 = vmatpush1.msra.mxu0 %v197
  %383 = vmatprep.subr.mxu0 0.0
  %384 = vmatpush1.msra.mxu0 %v198
  %385 = vmatprep.subr.mxu0 0.0
  %386 = vmatpush1.msra.mxu0 %v199
  %387 = vmatprep.subr.mxu0 0.0
  %388 = vmatpush1.msra.mxu0 %v200
  %389 = vmatprep.subr.mxu0 0.0
  %390 = vmatpush1.msra.mxu0 %v201
  %391 = vmatprep.subr.mxu0 0.0
  %392 = vmatpush1.msra.mxu0 %v202
  %393 = vmatprep.subr.mxu0 0.0
  %394 = vmatpush1.msra.mxu0 %v203
  %395 = vmatprep.subr.mxu0 0.0
  %396 = vmatpush1.msra.mxu0 %v204
  %397 = vmatprep.subr.mxu0 0.0
  %398 = vmatpush1.msra.mxu0 %v205
  %399 = vmatprep.subr.mxu0 0.0
  %400 = vmatpush1.msra.mxu0 %v206
  %401 = vmatprep.subr.mxu0 0.0
  %402 = vmatpush1.msra.mxu0 %v207
  %403 = vmatprep.subr.mxu0 0.0
  %404 = vmatpush1.msra.mxu0 %v208
  %405 = vmatprep.subr.mxu0 0.0
  %406 = vmatpush1.msra.mxu0 %v209
  %407 = vmatprep.subr.mxu0 0.0
  %408 = vmatpush1.msra.mxu0 %v210
  %409 = vmatprep.subr.mxu0 0.0
  %410 = vmatpush1.msra.mxu0 %v211
  %411 = vmatprep.subr.mxu0 0.0
  %412 = vmatpush1.msra.mxu0 %v212
  %413 = vmatprep.subr.mxu0 0.0
  %414 = vmatpush1.msra.mxu0 %v213
  %415 = vmatprep.subr.mxu0 0.0
  %416 = vmatpush1.msra.mxu0 %v214
  %417 = vmatprep.subr.mxu0 0.0
  %418 = vmatpush1.msra.mxu0 %v215
  %419 = vmatprep.subr.mxu0 0.0
  %420 = vmatpush1.msra.mxu0 %v216
  %421 = vmatprep.subr.mxu0 0.0
  %422 = vmatpush1.msra.mxu0 %v217
  %423 = vmatprep.subr.mxu0 0.0
  %424 = vmatpush1.msra.mxu0 %v218
  %425 = vmatprep.subr.mxu0 0.0
  %426 = vmatpush1.msra.mxu0 %v219
  %427 = vmatprep.subr.mxu0 0.0
  %428 = vmatpush1.msra.mxu0 %v220
  %429 = vmatprep.mubr.f32.mxu0 %v15
  %430 = vmatmul.mubr.f32.gmra.mrb[0].mxu0 %v14
  %v431 = vpop.f32.mrb[0].mxu0
  %v432 = vadd.f32 0.0, %v431
  %v433 = vpop.f32.mrb[0].mxu0
  %434 = vmatprep.mubr.f32.mxu0 %v22
  %435 = vmatmul.mubr.f32.gmra.mrb[0].mxu0 %v21
  %v436 = vpop.f32.mrb[0].mxu0
  %v437 = vadd.f32 0.0, %v436
  %v438 = vpop.f32.mrb[0].mxu0
  %439 = vmatprep.mubr.f32.mxu0 %v29
  %440 = vmatmul.mubr.f32.gmra.mrb[0].mxu0 %v28
  %v441 = vpop.f32.mrb[0].mxu0
  %v442 = vadd.f32 0.0, %v441
  %v443 = vpop.f32.mrb[0].mxu0
  %444 = vmatprep.mubr.f32.mxu0 %v36
  %445 = vmatmul.mubr.f32.gmra.mrb[0].mxu0 %v35
  %v446 = vpop.f32.mrb[0].mxu0
  %v447 = vadd.f32 0.0, %v446
  %v448 = vpop.f32.mrb[0].mxu0
  %449 = vmatprep.mubr.f32.mxu0 %v43
  %450 = vmatmul.mubr.f32.gmra.mrb[0].mxu0 %v42
  %v451 = vpop.f32.mrb[0].mxu0
  %v452 = vadd.f32 0.0, %v451
  %v453 = vpop.f32.mrb[0].mxu0
  %454 = vmatprep.mubr.f32.mxu0 %v50
  %455 = vmatmul.mubr.f32.gmra.mrb[0].mxu0 %v49
  %v456 = vpop.f32.mrb[0].mxu0
  %v457 = vadd.f32 0.0, %v456
  %v458 = vpop.f32.mrb[0].mxu0
  %459 = vmatprep.mubr.f32.mxu0 %v57
  %460 = vmatmul.mubr.f32.gmra.mrb[0].mxu0 %v56
  %v461 = vpop.f32.mrb[0].mxu0
  %v462 = vadd.f32 0.0, %v461
  %v463 = vpop.f32.mrb[0].mxu0
  %464 = vmatprep.mubr.f32.mxu0 %v64
  %465 = vmatmul.mubr.f32.gmra.mrb[0].mxu0 %v63
  %v466 = vpop.f32.mrb[0].mxu0
  %v467 = vadd.f32 0.0, %v466
  %v468 = vpop.f32.mrb[0].mxu0
  %469 = vmatprep.mubr.f32.mxu0 %v71
  %470 = vmatmul.mubr.f32.gmra.mrb[0].mxu0 %v70
  %v471 = vpop.f32.mrb[0].mxu0
  %v472 = vadd.f32 0.0, %v471
  %v473 = vpop.f32.mrb[0].mxu0
  %474 = vmatprep.mubr.f32.mxu0 %v78
  %475 = vmatmul.mubr.f32.gmra.mrb[0].mxu0 %v77
  %v476 = vpop.f32.mrb[0].mxu0
  %v477 = vadd.f32 0.0, %v476
  %v478 = vpop.f32.mrb[0].mxu0
  %479 = vmatprep.mubr.f32.mxu0 %v85
  %480 = vmatmul.mubr.f32.gmra.mrb[0].mxu0 %v84
  %v481 = vpop.f32.mrb[0].mxu0
  %v482 = vadd.f32 0.0, %v481
  %v483 = vpop.f32.mrb[0].mxu0
  %484 = vmatprep.mubr.f32.mxu0 %v92
  %485 = vmatmul.mubr.f32.gmra.mrb[0].mxu0 %v91
  %v486 = vpop.f32.mrb[0].mxu0
  %v487 = vadd.f32 0.0, %v486
  %v488 = vpop.f32.mrb[0].mxu0
  %489 = vmatprep.mubr.f32.mxu0 %v99
  %490 = vmatmul.mubr.f32.gmra.mrb[0].mxu0 %v98
  %v491 = vpop.f32.mrb[0].mxu0
  %v492 = vadd.f32 0.0, %v491
  %v493 = vpop.f32.mrb[0].mxu0
  %494 = vmatprep.mubr.f32.mxu0 %v106
  %495 = vmatmul.mubr.f32.gmra.mrb[0].mxu0 %v105
  %v496 = vpop.f32.mrb[0].mxu0
  %v497 = vadd.f32 0.0, %v496
  %v498 = vpop.f32.mrb[0].mxu0
  %499 = vmatprep.mubr.f32.mxu0 %v113
  %500 = vmatmul.mubr.f32.gmra.mrb[0].mxu0 %v112
  %v501 = vpop.f32.mrb[0].mxu0
  %v502 = vadd.f32 0.0, %v501
  %v503 = vpop.f32.mrb[0].mxu0
  %504 = vmatprep.mubr.f32.mxu0 %v120
  %505 = vmatmul.mubr.f32.gmra.mrb[0].mxu0 %v119
  %v506 = vpop.f32.mrb[0].mxu0
  %v507 = vadd.f32 0.0, %v506
  %v508 = vpop.f32.mrb[0].mxu0
  %509 = vmatprep.mubr.f32.mxu0 %v127
  %510 = vmatmul.mubr.f32.gmra.mrb[0].mxu0 %v126
  %v511 = vpop.f32.mrb[0].mxu0
  %v512 = vadd.f32 0.0, %v511
  %v513 = vpop.f32.mrb[0].mxu0
  %514 = vmatprep.mubr.f32.mxu0 %v134
  %515 = vmatmul.mubr.f32.gmra.mrb[0].mxu0 %v133
  %v516 = vpop.f32.mrb[0].mxu0
  %v517 = vadd.f32 0.0, %v516
  %v518 = vpop.f32.mrb[0].mxu0
  %519 = vmatprep.mubr.f32.mxu0 %v141
  %520 = vmatmul.mubr.f32.gmra.mrb[0].mxu0 %v140
  %v521 = vpop.f32.mrb[0].mxu0
  %v522 = vadd.f32 0.0, %v521
  %v523 = vpop.f32.mrb[0].mxu0
  %524 = vmatprep.mubr.f32.mxu0 %v148
  %525 = vmatmul.mubr.f32.gmra.mrb[0].mxu0 %v147
  %v526 = vpop.f32.mrb[0].mxu0
  %v527 = vadd.f32 0.0, %v526
  %v528 = vpop.f32.mrb[0].mxu0
  %529 = vmatprep.mubr.f32.mxu0 %v155
  %530 = vmatmul.mubr.f32.gmra.mrb[0].mxu0 %v154
  %v531 = vpop.f32.mrb[0].mxu0
  %v532 = vadd.f32 0.0, %v531
  %v533 = vpop.f32.mrb[0].mxu0
  %534 = vmatprep.mubr.f32.mxu0 %v162
  %535 = vmatmul.mubr.f32.gmra.mrb[0].mxu0 %v161
  %v536 = vpop.f32.mrb[0].mxu0
  %v537 = vadd.f32 0.0, %v536
  %v538 = vpop.f32.mrb[0].mxu0
  %539 = vmatprep.mubr.f32.mxu0 %v169
  %540 = vmatmul.mubr.f32.gmra.mrb[0].mxu0 %v168
  %v541 = vpop.f32.mrb[0].mxu0
  %v542 = vadd.f32 0.0, %v541
  %v543 = vpop.f32.mrb[0].mxu0
  %544 = vmatprep.mubr.f32.mxu0 %v176
  %545 = vmatmul.mubr.f32.gmra.mrb[0].mxu0 %v175
  %v546 = vpop.f32.mrb[0].mxu0
  %v547 = vadd.f32 0.0, %v546
  %v548 = vpop.f32.mrb[0].mxu0
  %549 = vmatprep.mubr.f32.mxu0 %v183
  %550 = vmatmul.mubr.f32.gmra.mrb[0].mxu0 %v182
  %v551 = vpop.f32.mrb[0].mxu0
  %v552 = vadd.f32 0.0, %v551
  %v553 = vpop.f32.mrb[0].mxu0
  %554 = vdwg.mxu0
  %555 = vmatprep.subr.mxu0 0.0
  %556 = vmatpush1.msra.mxu0 %v221
  %557 = vmatprep.subr.mxu0 0.0
  %558 = vmatpush1.msra.mxu0 %v222
  %559 = vmatprep.subr.mxu0 0.0
  %560 = vmatpush1.msra.mxu0 %v223
  %561 = vmatprep.subr.mxu0 0.0
  %562 = vmatpush1.msra.mxu0 %v224
  %563 = vmatprep.subr.mxu0 0.0
  %564 = vmatpush1.msra.mxu0 %v225
  %565 = vmatprep.subr.mxu0 0.0
  %566 = vmatpush1.msra.mxu0 %v226
  %567 = vmatprep.subr.mxu0 0.0
  %568 = vmatpush1.msra.mxu0 %v227
  %569 = vmatprep.subr.mxu0 0.0
  %570 = vmatpush1.msra.mxu0 %v228
  %571 = vmatprep.subr.mxu0 0.0
  %572 = vmatpush1.msra.mxu0 %v229
  %573 = vmatprep.subr.mxu0 0.0
  %574 = vmatpush1.msra.mxu0 %v230
  %575 = vmatprep.subr.mxu0 0.0
  %576 = vmatpush1.msra.mxu0 %v231
  %577 = vmatprep.subr.mxu0 0.0
  %578 = vmatpush1.msra.mxu0 %v232
  %579 = vmatprep.subr.mxu0 0.0
  %580 = vmatpush1.msra.mxu0 %v233
  %581 = vmatprep.subr.mxu0 0.0
  %582 = vmatpush1.msra.mxu0 %v234
  %583 = vmatprep.subr.mxu0 0.0
  %584 = vmatpush1.msra.mxu0 %v235
  %585 = vmatprep.subr.mxu0 0.0
  %586 = vmatpush1.msra.mxu0 %v236
  %587 = vmatprep.subr.mxu0 0.0
  %588 = vmatpush1.msra.mxu0 %v237
  %589 = vmatprep.subr.mxu0 0.0
  %590 = vmatpush1.msra.mxu0 %v238
  %591 = vmatprep.subr.mxu0 0.0
  %592 = vmatpush1.msra.mxu0 %v239
  %593 = vmatprep.subr.mxu0 0.0
  %594 = vmatpush1.msra.mxu0 %v240
  %595 = vmatprep.subr.mxu0 0.0
  %596 = vmatpush1.msra.mxu0 %v241
  %597 = vmatprep.subr.mxu0 0.0
  %598 = vmatpush1.msra.mxu0 %v242
  %599 = vmatprep.subr.mxu0 0.0
  %600 = vmatpush1.msra.mxu0 %v243
  %601 = vmatprep.subr.mxu0 0.0
  %602 = vmatpush1.msra.mxu0 %v244
  %603 = vmatprep.subr.mxu0 0.0
  %604 = vmatpush1.msra.mxu0 %v245
  %605 = vmatprep.subr.mxu0 0.0
  %606 = vmatpush1.msra.mxu0 %v246
  %607 = vmatprep.subr.mxu0 0.0
  %608 = vmatpush1.msra.mxu0 %v247
  %609 = vmatprep.subr.mxu0 0.0
  %610 = vmatpush1.msra.mxu0 %v248
  %611 = vmatprep.subr.mxu0 0.0
  %612 = vmatpush1.msra.mxu0 %v249
  %613 = vmatprep.subr.mxu0 0.0
  %614 = vmatpush1.msra.mxu0 %v250
  %615 = vmatprep.subr.mxu0 0.0
  %616 = vmatpush1.msra.mxu0 %v251
  %617 = vmatprep.subr.mxu0 0.0
  %618 = vmatpush1.msra.mxu0 %v252
  %619 = vmatprep.mubr.f32.mxu0 %v17
  %620 = vmatmul.mubr.f32.gmra.mrb[0].mxu0 %v16
  %v621 = vpop.f32.mrb[0].mxu0
  %v622 = vadd.f32 %v432, %v621
  %v623 = vpop.f32.mrb[0].mxu0
  %624 = vmatprep.mubr.f32.mxu0 %v24
  %625 = vmatmul.mubr.f32.gmra.mrb[0].mxu0 %v23
  %v626 = vpop.f32.mrb[0].mxu0
  %v627 = vadd.f32 %v437, %v626
  %v628 = vpop.f32.mrb[0].mxu0
  %629 = vmatprep.mubr.f32.mxu0 %v31
  %630 = vmatmul.mubr.f32.gmra.mrb[0].mxu0 %v30
  %v631 = vpop.f32.mrb[0].mxu0
  %v632 = vadd.f32 %v442, %v631
  %v633 = vpop.f32.mrb[0].mxu0
  %634 = vmatprep.mubr.f32.mxu0 %v38
  %635 = vmatmul.mubr.f32.gmra.mrb[0].mxu0 %v37
  %v636 = vpop.f32.mrb[0].mxu0
  %v637 = vadd.f32 %v447, %v636
  %v638 = vpop.f32.mrb[0].mxu0
  %639 = vmatprep.mubr.f32.mxu0 %v45
  %640 = vmatmul.mubr.f32.gmra.mrb[0].mxu0 %v44
  %v641 = vpop.f32.mrb[0].mxu0
  %v642 = vadd.f32 %v452, %v641
  %v643 = vpop.f32.mrb[0].mxu0
  %644 = vmatprep.mubr.f32.mxu0 %v52
  %645 = vmatmul.mubr.f32.gmra.mrb[0].mxu0 %v51
  %v646 = vpop.f32.mrb[0].mxu0
  %v647 = vadd.f32 %v457, %v646
  %v648 = vpop.f32.mrb[0].mxu0
  %649 = vmatprep.mubr.f32.mxu0 %v59
  %650 = vmatmul.mubr.f32.gmra.mrb[0].mxu0 %v58
  %v651 = vpop.f32.mrb[0].mxu0
  %v652 = vadd.f32 %v462, %v651
  %v653 = vpop.f32.mrb[0].mxu0
  %654 = vmatprep.mubr.f32.mxu0 %v66
  %655 = vmatmul.mubr.f32.gmra.mrb[0].mxu0 %v65
  %v656 = vpop.f32.mrb[0].mxu0
  %v657 = vadd.f32 %v467, %v656
  %v658 = vpop.f32.mrb[0].mxu0
  %659 = vmatprep.mubr.f32.mxu0 %v73
  %660 = vmatmul.mubr.f32.gmra.mrb[0].mxu0 %v72
  %v661 = vpop.f32.mrb[0].mxu0
  %v662 = vadd.f32 %v472, %v661
  %v663 = vpop.f32.mrb[0].mxu0
  %664 = vmatprep.mubr.f32.mxu0 %v80
  %665 = vmatmul.mubr.f32.gmra.mrb[0].mxu0 %v79
  %v666 = vpop.f32.mrb[0].mxu0
  %v667 = vadd.f32 %v477, %v666
  %v668 = vpop.f32.mrb[0].mxu0
  %669 = vmatprep.mubr.f32.mxu0 %v87
  %670 = vmatmul.mubr.f32.gmra.mrb[0].mxu0 %v86
  %v671 = vpop.f32.mrb[0].mxu0
  %v672 = vadd.f32 %v482, %v671
  %v673 = vpop.f32.mrb[0].mxu0
  %674 = vmatprep.mubr.f32.mxu0 %v94
  %675 = vmatmul.mubr.f32.gmra.mrb[0].mxu0 %v93
  %v676 = vpop.f32.mrb[0].mxu0
  %v677 = vadd.f32 %v487, %v676
  %v678 = vpop.f32.mrb[0].mxu0
  %679 = vmatprep.mubr.f32.mxu0 %v101
  %680 = vmatmul.mubr.f32.gmra.mrb[0].mxu0 %v100
  %v681 = vpop.f32.mrb[0].mxu0
  %v682 = vadd.f32 %v492, %v681
  %v683 = vpop.f32.mrb[0].mxu0
  %684 = vmatprep.mubr.f32.mxu0 %v108
  %685 = vmatmul.mubr.f32.gmra.mrb[0].mxu0 %v107
  %v686 = vpop.f32.mrb[0].mxu0
  %v687 = vadd.f32 %v497, %v686
  %v688 = vpop.f32.mrb[0].mxu0
  %689 = vmatprep.mubr.f32.mxu0 %v115
  %690 = vmatmul.mubr.f32.gmra.mrb[0].mxu0 %v114
  %v691 = vpop.f32.mrb[0].mxu0
  %v692 = vadd.f32 %v502, %v691
  %v693 = vpop.f32.mrb[0].mxu0
  %694 = vmatprep.mubr.f32.mxu0 %v122
  %695 = vmatmul.mubr.f32.gmra.mrb[0].mxu0 %v121
  %v696 = vpop.f32.mrb[0].mxu0
  %v697 = vadd.f32 %v507, %v696
  %v698 = vpop.f32.mrb[0].mxu0
  %699 = vmatprep.mubr.f32.mxu0 %v129
  %700 = vmatmul.mubr.f32.gmra.mrb[0].mxu0 %v128
  %v701 = vpop.f32.mrb[0].mxu0
  %v702 = vadd.f32 %v512, %v701
  %v703 = vpop.f32.mrb[0].mxu0
  %704 = vmatprep.mubr.f32.mxu0 %v136
  %705 = vmatmul.mubr.f32.gmra.mrb[0].mxu0 %v135
  %v706 = vpop.f32.mrb[0].mxu0
  %v707 = vadd.f32 %v517, %v706
  %v708 = vpop.f32.mrb[0].mxu0
  %709 = vmatprep.mubr.f32.mxu0 %v143
  %710 = vmatmul.mubr.f32.gmra.mrb[0].mxu0 %v142
  %v711 = vpop.f32.mrb[0].mxu0
  %v712 = vadd.f32 %v522, %v711
  %v713 = vpop.f32.mrb[0].mxu0
  %714 = vmatprep.mubr.f32.mxu0 %v150
  %715 = vmatmul.mubr.f32.gmra.mrb[0].mxu0 %v149
  %v716 = vpop.f32.mrb[0].mxu0
  %v717 = vadd.f32 %v527, %v716
  %v718 = vpop.f32.mrb[0].mxu0
  %719 = vmatprep.mubr.f32.mxu0 %v157
  %720 = vmatmul.mubr.f32.gmra.mrb[0].mxu0 %v156
  %v721 = vpop.f32.mrb[0].mxu0
  %v722 = vadd.f32 %v532, %v721
  %v723 = vpop.f32.mrb[0].mxu0
  %724 = vmatprep.mubr.f32.mxu0 %v164
  %725 = vmatmul.mubr.f32.gmra.mrb[0].mxu0 %v163
  %v726 = vpop.f32.mrb[0].mxu0
  %v727 = vadd.f32 %v537, %v726
  %v728 = vpop.f32.mrb[0].mxu0
  %729 = vmatprep.mubr.f32.mxu0 %v171
  %730 = vmatmul.mubr.f32.gmra.mrb[0].mxu0 %v170
  %v731 = vpop.f32.mrb[0].mxu0
  %v732 = vadd.f32 %v542, %v731
  %v733 = vpop.f32.mrb[0].mxu0
  %734 = vmatprep.mubr.f32.mxu0 %v178
  %735 = vmatmul.mubr.f32.gmra.mrb[0].mxu0 %v177
  %v736 = vpop.f32.mrb[0].mxu0
  %v737 = vadd.f32 %v547, %v736
  %v738 = vpop.f32.mrb[0].mxu0
  %739 = vmatprep.mubr.f32.mxu0 %v185
  %740 = vmatmul.mubr.f32.gmra.mrb[0].mxu0 %v184
  %v741 = vpop.f32.mrb[0].mxu0
  %v742 = vadd.f32 %v552, %v741
  %v743 = vpop.f32.mrb[0].mxu0
  %744 = vdwg.mxu0
  %745 = vmatprep.subr.mxu0 0.0
  %746 = vmatpush1.msra.mxu0 %v253
  %747 = vmatprep.subr.mxu0 0.0
  %748 = vmatpush1.msra.mxu0 %v254
  %749 = vmatprep.subr.mxu0 0.0
  %750 = vmatpush1.msra.mxu0 %v255
  %751 = vmatprep.subr.mxu0 0.0
  %752 = vmatpush1.msra.mxu0 %v256
  %753 = vmatprep.subr.mxu0 0.0
  %754 = vmatpush1.msra.mxu0 %v257
  %755 = vmatprep.subr.mxu0 0.0
  %756 = vmatpush1.msra.mxu0 %v258
  %757 = vmatprep.subr.mxu0 0.0
  %758 = vmatpush1.msra.mxu0 %v259
  %759 = vmatprep.subr.mxu0 0.0
  %760 = vmatpush1.msra.mxu0 %v260
  %761 = vmatprep.subr.mxu0 0.0
  %762 = vmatpush1.msra.mxu0 %v261
  %763 = vmatprep.subr.mxu0 0.0
  %764 = vmatpush1.msra.mxu0 %v262
  %765 = vmatprep.subr.mxu0 0.0
  %766 = vmatpush1.msra.mxu0 %v263
  %767 = vmatprep.subr.mxu0 0.0
  %768 = vmatpush1.msra.mxu0 %v264
  %769 = vmatprep.subr.mxu0 0.0
  %770 = vmatpush1.msra.mxu0 %v265
  %771 = vmatprep.subr.mxu0 0.0
  %772 = vmatpush1.msra.mxu0 %v266
  %773 = vmatprep.subr.mxu0 0.0
  %774 = vmatpush1.msra.mxu0 %v267
  %775 = vmatprep.subr.mxu0 0.0
  %776 = vmatpush1.msra.mxu0 %v268
  %777 = vmatprep.subr.mxu0 0.0
  %778 = vmatpush1.msra.mxu0 %v269
  %779 = vmatprep.subr.mxu0 0.0
  %780 = vmatpush1.msra.mxu0 %v270
  %781 = vmatprep.subr.mxu0 0.0
  %782 = vmatpush1.msra.mxu0 %v271
  %783 = vmatprep.subr.mxu0 0.0
  %784 = vmatpush1.msra.mxu0 %v272
  %785 = vmatprep.subr.mxu0 0.0
  %786 = vmatpush1.msra.mxu0 %v273
  %787 = vmatprep.subr.mxu0 0.0
  %788 = vmatpush1.msra.mxu0 %v274
  %789 = vmatprep.subr.mxu0 0.0
  %790 = vmatpush1.msra.mxu0 %v275
  %791 = vmatprep.subr.mxu0 0.0
  %792 = vmatpush1.msra.mxu0 %v276
  %793 = vmatprep.subr.mxu0 0.0
  %794 = vmatpush1.msra.mxu0 %v277
  %795 = vmatprep.subr.mxu0 0.0
  %796 = vmatpush1.msra.mxu0 %v278
  %797 = vmatprep.subr.mxu0 0.0
  %798 = vmatpush1.msra.mxu0 %v279
  %799 = vmatprep.subr.mxu0 0.0
  %800 = vmatpush1.msra.mxu0 %v280
  %801 = vmatprep.subr.mxu0 0.0
  %802 = vmatpush1.msra.mxu0 %v281
  %803 = vmatprep.subr.mxu0 0.0
  %804 = vmatpush1.msra.mxu0 %v282
  %805 = vmatprep.subr.mxu0 0.0
  %806 = vmatpush1.msra.mxu0 %v283
  %807 = vmatprep.subr.mxu0 0.0
  %808 = vmatpush1.msra.mxu0 %v284
  %809 = vmatprep.mubr.f32.mxu0 %v19
  %810 = vmatmul.mubr.f32.gmra.mrb[0].mxu0 %v18
  %v811 = vpop.f32.mrb[0].mxu0
  %v812 = vadd.f32 %v622, %v811
  %v813 = vpop.f32.mrb[0].mxu0
  %814 = vmatprep.mubr.f32.mxu0 %v26
  %815 = vmatmul.mubr.f32.gmra.mrb[0].mxu0 %v25
  %v816 = vpop.f32.mrb[0].mxu0
  %v817 = vadd.f32 %v627, %v816
  %v818 = vpop.f32.mrb[0].mxu0
  %819 = vmatprep.mubr.f32.mxu0 %v33
  %820 = vmatmul.mubr.f32.gmra.mrb[0].mxu0 %v32
  %v821 = vpop.f32.mrb[0].mxu0
  %v822 = vadd.f32 %v632, %v821
  %v823 = vpop.f32.mrb[0].mxu0
  %824 = vmatprep.mubr.f32.mxu0 %v40
  %825 = vmatmul.mubr.f32.gmra.mrb[0].mxu0 %v39
  %v826 = vpop.f32.mrb[0].mxu0
  %v827 = vadd.f32 %v637, %v826
  %v828 = vpop.f32.mrb[0].mxu0
  %829 = vmatprep.mubr.f32.mxu0 %v47
  %830 = vmatmul.mubr.f32.gmra.mrb[0].mxu0 %v46
  %v831 = vpop.f32.mrb[0].mxu0
  %v832 = vadd.f32 %v642, %v831
  %v833 = vpop.f32.mrb[0].mxu0
  %834 = vmatprep.mubr.f32.mxu0 %v54
  %835 = vmatmul.mubr.f32.gmra.mrb[0].mxu0 %v53
  %v836 = vpop.f32.mrb[0].mxu0
  %v837 = vadd.f32 %v647, %v836
  %v838 = vpop.f32.mrb[0].mxu0
  %839 = vmatprep.mubr.f32.mxu0 %v61
  %840 = vmatmul.mubr.f32.gmra.mrb[0].mxu0 %v60
  %v841 = vpop.f32.mrb[0].mxu0
  %v842 = vadd.f32 %v652, %v841
  %v843 = vpop.f32.mrb[0].mxu0
  %844 = vmatprep.mubr.f32.mxu0 %v68
  %845 = vmatmul.mubr.f32.gmra.mrb[0].mxu0 %v67
  %v846 = vpop.f32.mrb[0].mxu0
  %v847 = vadd.f32 %v657, %v846
  %v848 = vpop.f32.mrb[0].mxu0
  %849 = vmatprep.mubr.f32.mxu0 %v75
  %850 = vmatmul.mubr.f32.gmra.mrb[0].mxu0 %v74
  %v851 = vpop.f32.mrb[0].mxu0
  %v852 = vadd.f32 %v662, %v851
  %v853 = vpop.f32.mrb[0].mxu0
  %854 = vmatprep.mubr.f32.mxu0 %v82
  %855 = vmatmul.mubr.f32.gmra.mrb[0].mxu0 %v81
  %v856 = vpop.f32.mrb[0].mxu0
  %v857 = vadd.f32 %v667, %v856
  %v858 = vpop.f32.mrb[0].mxu0
  %859 = vmatprep.mubr.f32.mxu0 %v89
  %860 = vmatmul.mubr.f32.gmra.mrb[0].mxu0 %v88
  %v861 = vpop.f32.mrb[0].mxu0
  %v862 = vadd.f32 %v672, %v861
  %v863 = vpop.f32.mrb[0].mxu0
  %864 = vmatprep.mubr.f32.mxu0 %v96
  %865 = vmatmul.mubr.f32.gmra.mrb[0].mxu0 %v95
  %v866 = vpop.f32.mrb[0].mxu0
  %v867 = vadd.f32 %v677, %v866
  %v868 = vpop.f32.mrb[0].mxu0
  %869 = vmatprep.mubr.f32.mxu0 %v103
  %870 = vmatmul.mubr.f32.gmra.mrb[0].mxu0 %v102
  %v871 = vpop.f32.mrb[0].mxu0
  %v872 = vadd.f32 %v682, %v871
  %v873 = vpop.f32.mrb[0].mxu0
  %874 = vmatprep.mubr.f32.mxu0 %v110
  %875 = vmatmul.mubr.f32.gmra.mrb[0].mxu0 %v109
  %v876 = vpop.f32.mrb[0].mxu0
  %v877 = vadd.f32 %v687, %v876
  %v878 = vpop.f32.mrb[0].mxu0
  %879 = vmatprep.mubr.f32.mxu0 %v117
  %880 = vmatmul.mubr.f32.gmra.mrb[0].mxu0 %v116
  %v881 = vpop.f32.mrb[0].mxu0
  %v882 = vadd.f32 %v692, %v881
  %v883 = vpop.f32.mrb[0].mxu0
  %884 = vmatprep.mubr.f32.mxu0 %v124
  %885 = vmatmul.mubr.f32.gmra.mrb[0].mxu0 %v123
  %v886 = vpop.f32.mrb[0].mxu0
  %v887 = vadd.f32 %v697, %v886
  %v888 = vpop.f32.mrb[0].mxu0
  %889 = vmatprep.mubr.f32.mxu0 %v131
  %890 = vmatmul.mubr.f32.gmra.mrb[0].mxu0 %v130
  %v891 = vpop.f32.mrb[0].mxu0
  %v892 = vadd.f32 %v702, %v891
  %v893 = vpop.f32.mrb[0].mxu0
  %894 = vmatprep.mubr.f32.mxu0 %v138
  %895 = vmatmul.mubr.f32.gmra.mrb[0].mxu0 %v137
  %v896 = vpop.f32.mrb[0].mxu0
  %v897 = vadd.f32 %v707, %v896
  %v898 = vpop.f32.mrb[0].mxu0
  %899 = vmatprep.mubr.f32.mxu0 %v145
  %900 = vmatmul.mubr.f32.gmra.mrb[0].mxu0 %v144
  %v901 = vpop.f32.mrb[0].mxu0
  %v902 = vadd.f32 %v712, %v901
  %v903 = vpop.f32.mrb[0].mxu0
  %904 = vmatprep.mubr.f32.mxu0 %v152
  %905 = vmatmul.mubr.f32.gmra.mrb[0].mxu0 %v151
  %v906 = vpop.f32.mrb[0].mxu0
  %v907 = vadd.f32 %v717, %v906
  %v908 = vpop.f32.mrb[0].mxu0
  %909 = vmatprep.mubr.f32.mxu0 %v159
  %910 = vmatmul.mubr.f32.gmra.mrb[0].mxu0 %v158
  %v911 = vpop.f32.mrb[0].mxu0
  %v912 = vadd.f32 %v722, %v911
  %v913 = vpop.f32.mrb[0].mxu0
  %914 = vmatprep.mubr.f32.mxu0 %v166
  %915 = vmatmul.mubr.f32.gmra.mrb[0].mxu0 %v165
  %v916 = vpop.f32.mrb[0].mxu0
  %v917 = vadd.f32 %v727, %v916
  %v918 = vpop.f32.mrb[0].mxu0
  %919 = vmatprep.mubr.f32.mxu0 %v173
  %920 = vmatmul.mubr.f32.gmra.mrb[0].mxu0 %v172
  %v921 = vpop.f32.mrb[0].mxu0
  %v922 = vadd.f32 %v732, %v921
  %v923 = vpop.f32.mrb[0].mxu0
  %924 = vmatprep.mubr.f32.mxu0 %v180
  %925 = vmatmul.mubr.f32.gmra.mrb[0].mxu0 %v179
  %v926 = vpop.f32.mrb[0].mxu0
  %v927 = vadd.f32 %v737, %v926
  %v928 = vpop.f32.mrb[0].mxu0
  %929 = vmatprep.mubr.f32.mxu0 %v187
  %930 = vmatmul.mubr.f32.gmra.mrb[0].mxu0 %v186
  %v931 = vpop.f32.mrb[0].mxu0
  %v932 = vadd.f32 %v742, %v931
  %v933 = vpop.f32.mrb[0].mxu0
  %934 = vdwg.mxu0
  %935 = vmatprep.subr.mxu0 0.0
  %936 = vmatpush1.msra.mxu0 %v285
  %937 = vmatprep.subr.mxu0 0.0
  %938 = vmatpush1.msra.mxu0 %v286
  %939 = vmatprep.subr.mxu0 0.0
  %940 = vmatpush1.msra.mxu0 %v287
  %941 = vmatprep.subr.mxu0 0.0
  %942 = vmatpush1.msra.mxu0 %v288
  %943 = vmatprep.subr.mxu0 0.0
  %944 = vmatpush1.msra.mxu0 0.0
  %945 = vmatprep.subr.mxu0 0.0
  %946 = vmatpush1.msra.mxu0 0.0
  %947 = vmatprep.subr.mxu0 0.0
  %948 = vmatpush1.msra.mxu0 0.0
  %949 = vmatprep.subr.mxu0 0.0
  %950 = vmatpush1.msra.mxu0 0.0
  %951 = vmatprep.subr.mxu0 0.0
  %952 = vmatpush1.msra.mxu0 0.0
  %953 = vmatprep.subr.mxu0 0.0
  %954 = vmatpush1.msra.mxu0 0.0
  %955 = vmatprep.subr.mxu0 0.0
  %956 = vmatpush1.msra.mxu0 0.0
  %957 = vmatprep.subr.mxu0 0.0
  %958 = vmatpush1.msra.mxu0 0.0
  %959 = vmatprep.subr.mxu0 0.0
  %960 = vmatpush1.msra.mxu0 0.0
  %961 = vmatprep.subr.mxu0 0.0
  %962 = vmatpush1.msra.mxu0 0.0
  %963 = vmatprep.subr.mxu0 0.0
  %964 = vmatpush1.msra.mxu0 0.0
  %965 = vmatprep.subr.mxu0 0.0
  %966 = vmatpush1.msra.mxu0 0.0
  %967 = vmatprep.subr.mxu0 0.0
  %968 = vmatpush1.msra.mxu0 0.0
  %969 = vmatprep.subr.mxu0 0.0
  %970 = vmatpush1.msra.mxu0 0.0
  %971 = vmatprep.subr.mxu0 0.0
  %972 = vmatpush1.msra.mxu0 0.0
  %973 = vmatprep.subr.mxu0 0.0
  %974 = vmatpush1.msra.mxu0 0.0
  %975 = vmatprep.subr.mxu0 0.0
  %976 = vmatpush1.msra.mxu0 0.0
  %977 = vmatprep.subr.mxu0 0.0
  %978 = vmatpush1.msra.mxu0 0.0
  %979 = vmatprep.subr.mxu0 0.0
  %980 = vmatpush1.msra.mxu0 0.0
  %981 = vmatprep.subr.mxu0 0.0
  %982 = vmatpush1.msra.mxu0 0.0
  %983 = vmatprep.subr.mxu0 0.0
  %984 = vmatpush1.msra.mxu0 0.0
  %985 = vmatprep.subr.mxu0 0.0
  %986 = vmatpush1.msra.mxu0 0.0
  %987 = vmatprep.subr.mxu0 0.0
  %988 = vmatpush1.msra.mxu0 0.0
  %989 = vmatprep.subr.mxu0 0.0
  %990 = vmatpush1.msra.mxu0 0.0
  %991 = vmatprep.subr.mxu0 0.0
  %992 = vmatpush1.msra.mxu0 0.0
  %993 = vmatprep.subr.mxu0 0.0
  %994 = vmatpush1.msra.mxu0 0.0
  %995 = vmatprep.subr.mxu0 0.0
  %996 = vmatpush1.msra.mxu0 0.0
  %997 = vmatprep.subr.mxu0 0.0
  %998 = vmatpush1.msra.mxu0 0.0
  %999 = vmatprep.mubr.f32.mxu0 0.0
  %1000 = vmatmul.mubr.f32.gmra.mrb[0].mxu0 %v291
  %v1001 = vpop.f32.mrb[0].mxu0
  %v1002 = vadd.f32 %v812, %v1001
  %v1003 = vpop.f32.mrb[0].mxu0
  %1004 = vmatprep.mubr.f32.mxu0 0.0
  %1005 = vmatmul.mubr.f32.gmra.mrb[0].mxu0 %v294
  %v1006 = vpop.f32.mrb[0].mxu0
  %v1007 = vadd.f32 %v817, %v1006
  %v1008 = vpop.f32.mrb[0].mxu0
  %1009 = vmatprep.mubr.f32.mxu0 0.0
  %1010 = vmatmul.mubr.f32.gmra.mrb[0].mxu0 %v297
  %v1011 = vpop.f32.mrb[0].mxu0
  %v1012 = vadd.f32 %v822, %v1011
  %v1013 = vpop.f32.mrb[0].mxu0
  %1014 = vmatprep.mubr.f32.mxu0 0.0
  %1015 = vmatmul.mubr.f32.gmra.mrb[0].mxu0 %v300
  %v1016 = vpop.f32.mrb[0].mxu0
  %v1017 = vadd.f32 %v827, %v1016
  %v1018 = vpop.f32.mrb[0].mxu0
  %1019 = vmatprep.mubr.f32.mxu0 0.0
  %1020 = vmatmul.mubr.f32.gmra.mrb[0].mxu0 %v303
  %v1021 = vpop.f32.mrb[0].mxu0
  %v1022 = vadd.f32 %v832, %v1021
  %v1023 = vpop.f32.mrb[0].mxu0
  %1024 = vmatprep.mubr.f32.mxu0 0.0
  %1025 = vmatmul.mubr.f32.gmra.mrb[0].mxu0 %v306
  %v1026 = vpop.f32.mrb[0].mxu0
  %v1027 = vadd.f32 %v837, %v1026
  %v1028 = vpop.f32.mrb[0].mxu0
  %1029 = vmatprep.mubr.f32.mxu0 0.0
  %1030 = vmatmul.mubr.f32.gmra.mrb[0].mxu0 %v309
  %v1031 = vpop.f32.mrb[0].mxu0
  %v1032 = vadd.f32 %v842, %v1031
  %v1033 = vpop.f32.mrb[0].mxu0
  %1034 = vmatprep.mubr.f32.mxu0 0.0
  %1035 = vmatmul.mubr.f32.gmra.mrb[0].mxu0 %v312
  %v1036 = vpop.f32.mrb[0].mxu0
  %v1037 = vadd.f32 %v847, %v1036
  %v1038 = vpop.f32.mrb[0].mxu0
  %1039 = vmatprep.mubr.f32.mxu0 0.0
  %1040 = vmatmul.mubr.f32.gmra.mrb[0].mxu0 %v315
  %v1041 = vpop.f32.mrb[0].mxu0
  %v1042 = vadd.f32 %v852, %v1041
  %v1043 = vpop.f32.mrb[0].mxu0
  %1044 = vmatprep.mubr.f32.mxu0 0.0
  %1045 = vmatmul.mubr.f32.gmra.mrb[0].mxu0 %v318
  %v1046 = vpop.f32.mrb[0].mxu0
  %v1047 = vadd.f32 %v857, %v1046
  %v1048 = vpop.f32.mrb[0].mxu0
  %1049 = vmatprep.mubr.f32.mxu0 0.0
  %1050 = vmatmul.mubr.f32.gmra.mrb[0].mxu0 %v321
  %v1051 = vpop.f32.mrb[0].mxu0
  %v1052 = vadd.f32 %v862, %v1051
  %v1053 = vpop.f32.mrb[0].mxu0
  %1054 = vmatprep.mubr.f32.mxu0 0.0
  %1055 = vmatmul.mubr.f32.gmra.mrb[0].mxu0 %v324
  %v1056 = vpop.f32.mrb[0].mxu0
  %v1057 = vadd.f32 %v867, %v1056
  %v1058 = vpop.f32.mrb[0].mxu0
  %1059 = vmatprep.mubr.f32.mxu0 0.0
  %1060 = vmatmul.mubr.f32.gmra.mrb[0].mxu0 %v327
  %v1061 = vpop.f32.mrb[0].mxu0
  %v1062 = vadd.f32 %v872, %v1061
  %v1063 = vpop.f32.mrb[0].mxu0
  %1064 = vmatprep.mubr.f32.mxu0 0.0
  %1065 = vmatmul.mubr.f32.gmra.mrb[0].mxu0 %v330
  %v1066 = vpop.f32.mrb[0].mxu0
  %v1067 = vadd.f32 %v877, %v1066
  %v1068 = vpop.f32.mrb[0].mxu0
  %1069 = vmatprep.mubr.f32.mxu0 0.0
  %1070 = vmatmul.mubr.f32.gmra.mrb[0].mxu0 %v333
  %v1071 = vpop.f32.mrb[0].mxu0
  %v1072 = vadd.f32 %v882, %v1071
  %v1073 = vpop.f32.mrb[0].mxu0
  %1074 = vmatprep.mubr.f32.mxu0 0.0
  %1075 = vmatmul.mubr.f32.gmra.mrb[0].mxu0 %v336
  %v1076 = vpop.f32.mrb[0].mxu0
  %v1077 = vadd.f32 %v887, %v1076
  %v1078 = vpop.f32.mrb[0].mxu0
  %1079 = vmatprep.mubr.f32.mxu0 0.0
  %1080 = vmatmul.mubr.f32.gmra.mrb[0].mxu0 %v339
  %v1081 = vpop.f32.mrb[0].mxu0
  %v1082 = vadd.f32 %v892, %v1081
  %v1083 = vpop.f32.mrb[0].mxu0
  %1084 = vmatprep.mubr.f32.mxu0 0.0
  %1085 = vmatmul.mubr.f32.gmra.mrb[0].mxu0 %v342
  %v1086 = vpop.f32.mrb[0].mxu0
  %v1087 = vadd.f32 %v897, %v1086
  %v1088 = vpop.f32.mrb[0].mxu0
  %1089 = vmatprep.mubr.f32.mxu0 0.0
  %1090 = vmatmul.mubr.f32.gmra.mrb[0].mxu0 %v345
  %v1091 = vpop.f32.mrb[0].mxu0
  %v1092 = vadd.f32 %v902, %v1091
  %v1093 = vpop.f32.mrb[0].mxu0
  %1094 = vmatprep.mubr.f32.mxu0 0.0
  %1095 = vmatmul.mubr.f32.gmra.mrb[0].mxu0 %v348
  %v1096 = vpop.f32.mrb[0].mxu0
  %v1097 = vadd.f32 %v907, %v1096
  %v1098 = vpop.f32.mrb[0].mxu0
  %1099 = vmatprep.mubr.f32.mxu0 0.0
  %1100 = vmatmul.mubr.f32.gmra.mrb[0].mxu0 %v351
  %v1101 = vpop.f32.mrb[0].mxu0
  %v1102 = vadd.f32 %v912, %v1101
  %v1103 = vpop.f32.mrb[0].mxu0
  %1104 = vmatprep.mubr.f32.mxu0 0.0
  %1105 = vmatmul.mubr.f32.gmra.mrb[0].mxu0 %v354
  %v1106 = vpop.f32.mrb[0].mxu0
  %v1107 = vadd.f32 %v917, %v1106
  %v1108 = vpop.f32.mrb[0].mxu0
  %1109 = vmatprep.mubr.f32.mxu0 0.0
  %1110 = vmatmul.mubr.f32.gmra.mrb[0].mxu0 %v357
  %v1111 = vpop.f32.mrb[0].mxu0
  %v1112 = vadd.f32 %v922, %v1111
  %v1113 = vpop.f32.mrb[0].mxu0
  %1114 = vmatprep.mubr.f32.mxu0 0.0
  %1115 = vmatmul.mubr.f32.gmra.mrb[0].mxu0 %v360
  %v1116 = vpop.f32.mrb[0].mxu0
  %v1117 = vadd.f32 %v927, %v1116
  %v1118 = vpop.f32.mrb[0].mxu0
  %1119 = vmatprep.mubr.f32.mxu0 0.0
  %1120 = vmatmul.mubr.f32.gmra.mrb[0].mxu0 %v363
  %v1121 = vpop.f32.mrb[0].mxu0
  %v1122 = vadd.f32 %v932, %v1121
  %v1123 = vpop.f32.mrb[0].mxu0
  %1124 = vdwg.mxu0
  %vm1125 = vcmask 523264
  %1126 = vst.msk [vmem:[%s2] sm:$0xff] %vm1125, %v1002
  %1127 = vst.msk [vmem:[%s2 + $0x8] sm:$0xff] %vm1125, %v1007
  %1128 = vst.msk [vmem:[%s2 + $0x10] sm:$0xff] %vm1125, %v1012
  %1129 = vst.msk [vmem:[%s2 + $0x18] sm:$0xff] %vm1125, %v1017
  %1130 = vst.msk [vmem:[%s2 + $0x20] sm:$0xff] %vm1125, %v1022
  %1131 = vst.msk [vmem:[%s2 + $0x28] sm:$0xff] %vm1125, %v1027
  %1132 = vst.msk [vmem:[%s2 + $0x30] sm:$0xff] %vm1125, %v1032
  %1133 = vst.msk [vmem:[%s2 + $0x38] sm:$0xff] %vm1125, %v1037
  %1134 = vst.msk [vmem:[%s2 + $0x40] sm:$0xff] %vm1125, %v1042
  %1135 = vst.msk [vmem:[%s2 + $0x48] sm:$0xff] %vm1125, %v1047
  %1136 = vst.msk [vmem:[%s2 + $0x50] sm:$0xff] %vm1125, %v1052
  %1137 = vst.msk [vmem:[%s2 + $0x58] sm:$0xff] %vm1125, %v1057
  %1138 = vst.msk [vmem:[%s2 + $0x60] sm:$0xff] %vm1125, %v1062
  %1139 = vst.msk [vmem:[%s2 + $0x68] sm:$0xff] %vm1125, %v1067
  %1140 = vst.msk [vmem:[%s2 + $0x70] sm:$0xff] %vm1125, %v1072
  %1141 = vst.msk [vmem:[%s2 + $0x78] sm:$0xff] %vm1125, %v1077
  %1142 = vst.msk [vmem:[%s2 + $0x80] sm:$0xff] %vm1125, %v1082
  %1143 = vst.msk [vmem:[%s2 + $0x88] sm:$0xff] %vm1125, %v1087
  %1144 = vst.msk [vmem:[%s2 + $0x90] sm:$0xff] %vm1125, %v1092
  %1145 = vst.msk [vmem:[%s2 + $0x98] sm:$0xff] %vm1125, %v1097
  %1146 = vst.msk [vmem:[%s2 + $0xa0] sm:$0xff] %vm1125, %v1102
  %1147 = vst.msk [vmem:[%s2 + $0xa8] sm:$0xff] %vm1125, %v1107
  %1148 = vst.msk [vmem:[%s2 + $0xb0] sm:$0xff] %vm1125, %v1112
  %1149 = vst.msk [vmem:[%s2 + $0xb8] sm:$0xff] %vm1125, %v1117
  %1150 = vst.msk [vmem:[%s2 + $0xc0] sm:$0xff] %vm1125, %v1122
  %v1151 = vsel %vm1125, %v1002, 0.0
  %v1152 = vsel %vm1125, %v1007, 0.0
  %v1153 = vadd.f32 %v1151, %v1152
  %v1154 = vsel %vm1125, %v1012, 0.0
  %v1155 = vadd.f32 %v1153, %v1154
  %v1156 = vsel %vm1125, %v1017, 0.0
  %v1157 = vadd.f32 %v1155, %v1156
  %v1158 = vsel %vm1125, %v1022, 0.0
  %v1159 = vadd.f32 %v1157, %v1158
  %v1160 = vsel %vm1125, %v1027, 0.0
  %v1161 = vadd.f32 %v1159, %v1160
  %v1162 = vsel %vm1125, %v1032, 0.0
  %v1163 = vadd.f32 %v1161, %v1162
  %v1164 = vsel %vm1125, %v1037, 0.0
  %v1165 = vadd.f32 %v1163, %v1164
  %v1166 = vsel %vm1125, %v1042, 0.0
  %v1167 = vadd.f32 %v1165, %v1166
  %v1168 = vsel %vm1125, %v1047, 0.0
  %v1169 = vadd.f32 %v1167, %v1168
  %v1170 = vsel %vm1125, %v1052, 0.0
  %v1171 = vadd.f32 %v1169, %v1170
  %v1172 = vsel %vm1125, %v1057, 0.0
  %v1173 = vadd.f32 %v1171, %v1172
  %v1174 = vsel %vm1125, %v1062, 0.0
  %v1175 = vadd.f32 %v1173, %v1174
  %v1176 = vsel %vm1125, %v1067, 0.0
  %v1177 = vadd.f32 %v1175, %v1176
  %v1178 = vsel %vm1125, %v1072, 0.0
  %v1179 = vadd.f32 %v1177, %v1178
  %v1180 = vsel %vm1125, %v1077, 0.0
  %v1181 = vadd.f32 %v1179, %v1180
  %v1182 = vsel %vm1125, %v1082, 0.0
  %v1183 = vadd.f32 %v1181, %v1182
  %v1184 = vsel %vm1125, %v1087, 0.0
  %v1185 = vadd.f32 %v1183, %v1184
  %v1186 = vsel %vm1125, %v1092, 0.0
  %v1187 = vadd.f32 %v1185, %v1186
  %v1188 = vsel %vm1125, %v1097, 0.0
  %v1189 = vadd.f32 %v1187, %v1188
  %v1190 = vsel %vm1125, %v1102, 0.0
  %v1191 = vadd.f32 %v1189, %v1190
  %v1192 = vsel %vm1125, %v1107, 0.0
  %v1193 = vadd.f32 %v1191, %v1192
  %v1194 = vsel %vm1125, %v1112, 0.0
  %v1195 = vadd.f32 %v1193, %v1194
  %v1196 = vsel %vm1125, %v1117, 0.0
  %v1197 = vadd.f32 %v1195, %v1196
  %v1198 = vsel %vm1125, %v1122, 0.0
  %v1199 = vadd.f32 %v1197, %v1198
  %v1200 = vrot.slane %v1199, 4
  %v1201 = vadd.f32 %v1199, %v1200
  %v1202 = vrot.slane %v1201, 2
  %v1203 = vadd.f32 %v1201, %v1202
  %v1204 = vrot.slane %v1203, 1
  %v1205 = vadd.f32 %v1203, %v1204
  %vm1206 = vcmask 516096
  %1207 = vst.msk [vmem:[%s3] sm:$0x1] %vm1206, %v1205
  %v1208 = vmul.f32 %v1002, %v1002
  %v1209 = vmul.f32 %v1007, %v1007
  %v1210 = vmul.f32 %v1012, %v1012
  %v1211 = vmul.f32 %v1017, %v1017
  %v1212 = vmul.f32 %v1022, %v1022
  %v1213 = vmul.f32 %v1027, %v1027
  %v1214 = vmul.f32 %v1032, %v1032
  %v1215 = vmul.f32 %v1037, %v1037
  %v1216 = vmul.f32 %v1042, %v1042
  %v1217 = vmul.f32 %v1047, %v1047
  %v1218 = vmul.f32 %v1052, %v1052
  %v1219 = vmul.f32 %v1057, %v1057
  %v1220 = vmul.f32 %v1062, %v1062
  %v1221 = vmul.f32 %v1067, %v1067
  %v1222 = vmul.f32 %v1072, %v1072
  %v1223 = vmul.f32 %v1077, %v1077
  %v1224 = vmul.f32 %v1082, %v1082
  %v1225 = vmul.f32 %v1087, %v1087
  %v1226 = vmul.f32 %v1092, %v1092
  %v1227 = vmul.f32 %v1097, %v1097
  %v1228 = vmul.f32 %v1102, %v1102
  %v1229 = vmul.f32 %v1107, %v1107
  %v1230 = vmul.f32 %v1112, %v1112
  %v1231 = vmul.f32 %v1117, %v1117
  %v1232 = vmul.f32 %v1122, %v1122
  %v1233 = vsel %vm1125, %v1208, 0.0
  %v1234 = vsel %vm1125, %v1209, 0.0
  %v1235 = vadd.f32 %v1233, %v1234
  %v1236 = vsel %vm1125, %v1210, 0.0
  %v1237 = vadd.f32 %v1235, %v1236
  %v1238 = vsel %vm1125, %v1211, 0.0
  %v1239 = vadd.f32 %v1237, %v1238
  %v1240 = vsel %vm1125, %v1212, 0.0
  %v1241 = vadd.f32 %v1239, %v1240
  %v1242 = vsel %vm1125, %v1213, 0.0
  %v1243 = vadd.f32 %v1241, %v1242
  %v1244 = vsel %vm1125, %v1214, 0.0
  %v1245 = vadd.f32 %v1243, %v1244
  %v1246 = vsel %vm1125, %v1215, 0.0
  %v1247 = vadd.f32 %v1245, %v1246
  %v1248 = vsel %vm1125, %v1216, 0.0
  %v1249 = vadd.f32 %v1247, %v1248
  %v1250 = vsel %vm1125, %v1217, 0.0
  %v1251 = vadd.f32 %v1249, %v1250
  %v1252 = vsel %vm1125, %v1218, 0.0
  %v1253 = vadd.f32 %v1251, %v1252
  %v1254 = vsel %vm1125, %v1219, 0.0
  %v1255 = vadd.f32 %v1253, %v1254
  %v1256 = vsel %vm1125, %v1220, 0.0
  %v1257 = vadd.f32 %v1255, %v1256
  %v1258 = vsel %vm1125, %v1221, 0.0
  %v1259 = vadd.f32 %v1257, %v1258
  %v1260 = vsel %vm1125, %v1222, 0.0
  %v1261 = vadd.f32 %v1259, %v1260
  %v1262 = vsel %vm1125, %v1223, 0.0
  %v1263 = vadd.f32 %v1261, %v1262
  %v1264 = vsel %vm1125, %v1224, 0.0
  %v1265 = vadd.f32 %v1263, %v1264
  %v1266 = vsel %vm1125, %v1225, 0.0
  %v1267 = vadd.f32 %v1265, %v1266
  %v1268 = vsel %vm1125, %v1226, 0.0
  %v1269 = vadd.f32 %v1267, %v1268
  %v1270 = vsel %vm1125, %v1227, 0.0
  %v1271 = vadd.f32 %v1269, %v1270
  %v1272 = vsel %vm1125, %v1228, 0.0
  %v1273 = vadd.f32 %v1271, %v1272
  %v1274 = vsel %vm1125, %v1229, 0.0
  %v1275 = vadd.f32 %v1273, %v1274
  %v1276 = vsel %vm1125, %v1230, 0.0
  %v1277 = vadd.f32 %v1275, %v1276
  %v1278 = vsel %vm1125, %v1231, 0.0
  %v1279 = vadd.f32 %v1277, %v1278
  %v1280 = vsel %vm1125, %v1232, 0.0
  %v1281 = vadd.f32 %v1279, %v1280
  %v1282 = vrot.slane %v1281, 4
  %v1283 = vadd.f32 %v1281, %v1282
  %v1284 = vrot.slane %v1283, 2
  %v1285 = vadd.f32 %v1283, %v1284
  %v1286 = vrot.slane %v1285, 1
  %v1287 = vadd.f32 %v1285, %v1286
  %1288 = vst.msk [vmem:[%s4] sm:$0x1] %vm1206, %v1287
  // Predicated region
  $region10: #{discriminator1_forward.4} parent=0 // pred_check
    _
  $region11: #{discriminator1_forward.4} parent=0 // pred_check_branch
    %1290 = sbr.rel (0) target = $region13
  $region12: #{discriminator1_forward.4} parent=0 // pred_region
    _
  $region13: #{discriminator1_forward.4} parent=0 // pred_fallthru
    _
  // Predicated region
  $region14: #{discriminator1_forward.4} parent=0 // pred_check
    _
  $region15: #{discriminator1_forward.4} parent=0 // pred_check_branch
    %1292 = sbr.rel (0) target = $region17
  $region16: #{discriminator1_forward.4} parent=0 // pred_region
    _
  $region17: #{discriminator1_forward.4} parent=0 // pred_fallthru
    _
  // Predicated region
  $region18: #{discriminator1_forward.4} parent=0 // pred_check
    _
  $region19: #{discriminator1_forward.4} parent=0 // pred_check_branch
    %1294 = sbr.rel (0) target = $region21
  $region20: #{discriminator1_forward.4} parent=0 // pred_region
    _
  $region21: #{discriminator1_forward.4} parent=0 // pred_fallthru
    _
  // Predicated region
  $region22: #{discriminator1_forward.4} parent=0 // pred_check
    _
  $region23: #{discriminator1_forward.4} parent=0 // pred_check_branch
    %1296 = sbr.rel (0) target = $region25
  $region24: #{discriminator1_forward.4} parent=0 // pred_region
    _
  $region25: #{discriminator1_forward.4} parent=0 // pred_fallthru
    _
  // Predicated region
  $region26: #{discriminator1_forward.4} parent=0 // pred_check
    _
  $region27: #{discriminator1_forward.4} parent=0 // pred_check_branch
    %1298 = sbr.rel (0) target = $region29
  $region28: #{discriminator1_forward.4} parent=0 // pred_region
    _
  $region29: #{discriminator1_forward.4} parent=0 // pred_fallthru
    _
  // Predicated region
  $region30: #{discriminator1_forward.4} parent=0 // pred_check
    _
  $region31: #{discriminator1_forward.4} parent=0 // pred_check_branch
    %1300 = sbr.rel (0) target = $region33
  $region32: #{discriminator1_forward.4} parent=0 // pred_region
    _
  $region33: #{discriminator1_forward.4} parent=0 // pred_fallthru
    _

</llo_original>
